<compile_context>
chip_gen: v7x
topology: tpu7x:2x2x1
jax: 0.10.0
libtpu: 0.0.40
codegen_flags: <defaults>
</compile_context>

<pallas_src>
import jax
import jax.numpy as jnp
from jax.experimental import pallas as pl
from jax.experimental.pallas import tpu as pltpu

# ------------------------- small synthetic BERT config -------------------------
VOCAB = 100
HIDDEN = 32
N_HEADS = 4
HEAD_DIM = HIDDEN // N_HEADS
N_LAYERS = 2
INTERMEDIATE = 64
MAX_POS = 64
N_LABELS = 5
LN_EPS = 1e-12                       # BERT LayerNorm eps
LANE = 128                           # lane-pad classifier logits to a full vreg
ATTN_SCALE = 1.0 / float(HEAD_DIM) ** 0.5
_PER_LAYER = 12                      # packed arrays per encoder layer

_VMEM = pl.BlockSpec(memory_space=pltpu.MemorySpace.VMEM)


# ------------------------------ in-kernel helpers -------------------------------
def _layernorm(x, g, b):
    mu = jnp.mean(x, axis=-1, keepdims=True)
    var = jnp.mean((x - mu) ** 2, axis=-1, keepdims=True)
    return (x - mu) * jax.lax.rsqrt(var + LN_EPS) * g + b


def _gelu(x):
    # TODO(synk): HF BERT default is exact erf-GELU; tanh approximation used
    # since erf has no guaranteed Mosaic lowering.
    return 0.5 * x * (1.0 + jnp.tanh(0.7978845608028654 * (x + 0.044715 * x * x * x)))


def _attention_block(x, mask3, bsz, seq, wqkv, bqkv, wo, bo):
    m = x.shape[0]
    xb = x.astype(jnp.bfloat16)
    # fused QKV projection over all batch rows at once (bf16 in, f32 acc)
    qkv = jnp.dot(xb, wqkv, preferred_element_type=jnp.float32) + bqkv
    q = qkv[:, :HIDDEN]
    k = qkv[:, HIDDEN:2 * HIDDEN]
    v = qkv[:, 2 * HIDDEN:]

    ctx_heads = []
    for h in range(N_HEADS):                       # static, unrolled
        lo, hi = h * HEAD_DIM, (h + 1) * HEAD_DIM
        qh = q[:, lo:hi].reshape(bsz, seq, HEAD_DIM).astype(jnp.bfloat16)
        kh = k[:, lo:hi].reshape(bsz, seq, HEAD_DIM).astype(jnp.bfloat16)
        vh = v[:, lo:hi].reshape(bsz, seq, HEAD_DIM).astype(jnp.bfloat16)
        # batched over the whole batch dim in a single einsum per head
        s = jnp.einsum('bqd,bkd->bqk', qh, kh,
                       preferred_element_type=jnp.float32) * ATTN_SCALE
        s = s + mask3                               # (B,1,S) additive mask
        s = s - jnp.max(s, axis=-1, keepdims=True)
        p = jnp.exp(s)
        p = p / jnp.sum(p, axis=-1, keepdims=True)  # exact softmax denominator
        ctx = jnp.einsum('bqk,bkd->bqd', p.astype(jnp.bfloat16), vh,
                         preferred_element_type=jnp.float32)
        ctx_heads.append(ctx.reshape(m, HEAD_DIM))

    # merge heads along lanes (static concat) -> single output projection matmul
    ctx_all = jnp.concatenate(ctx_heads, axis=-1)   # (M, HIDDEN)
    return jnp.dot(ctx_all.astype(jnp.bfloat16), wo,
                   preferred_element_type=jnp.float32) + bo


def _encoder_layer(x, mask3, bsz, seq, lw):
    (wqkv, bqkv, wo, bo, l1g, l1b, wi, bi, wo2, bo2, l2g, l2b) = lw
    attn = _attention_block(x, mask3, bsz, seq, wqkv, bqkv, wo, bo)
    x1 = _layernorm(attn + x, l1g, l1b)
    h1 = jnp.dot(x1.astype(jnp.bfloat16), wi,
                 preferred_element_type=jnp.float32) + bi
    h1 = _gelu(h1)
    ff = jnp.dot(h1.astype(jnp.bfloat16), wo2,
                 preferred_element_type=jnp.float32) + bo2
    return _layernorm(ff + x1, l2g, l2b)


# --------------------------- single fused Pallas kernel -------------------------
def _fused_forward_kernel(ids_ref, am_ref, lab_ref, wemb_ref, pemb_ref, temb_ref,
                          eg_ref, eb_ref, *rest):
    n_layer = N_LAYERS * _PER_LAYER
    layer_refs = rest[:n_layer]
    clsw_ref = rest[n_layer]
    clsb_ref = rest[n_layer + 1]
    logits_ref = rest[n_layer + 2]
    loss_ref = rest[n_layer + 3]

    bsz, seq = am_ref.shape
    m = ids_ref.shape[0]

    # ---- embeddings: exact one-hot-matmul gather + pos + type, then LayerNorm ----
    ids = ids_ref[...]                                        # (M, 1) int32
    vcols = jax.lax.broadcasted_iota(jnp.int32, (m, VOCAB), 1)
    onehot = (vcols == ids).astype(jnp.float32)
    we = jnp.dot(onehot, wemb_ref[...], preferred_element_type=jnp.float32)  # (M, H)
    # token_type_ids assumed all-zero (HF default): type_emb row 0 only.
    emb = we.reshape(bsz, seq, HIDDEN) + pemb_ref[0:seq, :] + temb_ref[...]
    x = _layernorm(emb.reshape(m, HIDDEN), eg_ref[...], eb_ref[...])

    # ---- extended additive attention mask, [B, 1, S] ----
    am = am_ref[...].astype(jnp.float32)
    mask3 = ((1.0 - am) * -1e9).reshape(bsz, 1, seq)

    # ---- encoder layers; activations never leave VMEM/vregs ----
    for li in range(N_LAYERS):
        base = li * _PER_LAYER
        lw = tuple(layer_refs[base + j][...] for j in range(_PER_LAYER))
        x = _encoder_layer(x, mask3, bsz, seq, lw)

    # ---- classifier (lane-padded to 128) + masked token-level cross-entropy ----
    logits = jnp.dot(x.astype(jnp.bfloat16), clsw_ref[...],
                     preferred_element_type=jnp.float32) + clsb_ref[...]
    logits_ref[...] = logits                                  # lane-dense [M,128] store

    labels = lab_ref[...]                                     # (M, 1) int32
    cols = jax.lax.broadcasted_iota(jnp.int32, (m, LANE), 1)
    masked = jnp.where(cols < N_LABELS, logits, jnp.float32(-1e30))
    mx = jnp.max(masked, axis=-1, keepdims=True)
    lse = jnp.log(jnp.sum(jnp.exp(masked - mx), axis=-1, keepdims=True)) + mx
    onehot_l = (cols == labels).astype(jnp.float32)
    picked = jnp.sum(masked * onehot_l, axis=-1, keepdims=True)
    valid = (labels != -100).astype(jnp.float32)              # ignore_index = -100
    total = jnp.sum((lse - picked) * valid)
    denom = jnp.maximum(jnp.sum(valid), 1.0)
    loss_ref[...] = (total / denom).reshape(1, 1)


# --------------------------- params & one-time packing ---------------------------
def init_params(key):
    keys = iter(jax.random.split(key, 64))

    def nrm(shape):
        return 0.02 * jax.random.normal(next(keys), shape, dtype=jnp.float32)

    params = {
        "word_emb": nrm((VOCAB, HIDDEN)),
        "pos_emb": nrm((MAX_POS, HIDDEN)),
        "type_emb": nrm((2, HIDDEN)),
        "emb_ln_g": jnp.ones((HIDDEN,), jnp.float32),
        "emb_ln_b": jnp.zeros((HIDDEN,), jnp.float32),
        "cls_w": nrm((HIDDEN, N_LABELS)),
        "cls_b": jnp.zeros((N_LABELS,), jnp.float32),
        "layers": [],
    }
    for _ in range(N_LAYERS):
        params["layers"].append({
            "wq": nrm((HIDDEN, HIDDEN)), "bq": jnp.zeros((HIDDEN,), jnp.float32),
            "wk": nrm((HIDDEN, HIDDEN)), "bk": jnp.zeros((HIDDEN,), jnp.float32),
            "wv": nrm((HIDDEN, HIDDEN)), "bv": jnp.zeros((HIDDEN,), jnp.float32),
            "wo": nrm((HIDDEN, HIDDEN)), "bo": jnp.zeros((HIDDEN,), jnp.float32),
            "ln1_g": jnp.ones((HIDDEN,), jnp.float32), "ln1_b": jnp.zeros((HIDDEN,), jnp.float32),
            "wi": nrm((HIDDEN, INTERMEDIATE)), "bi": jnp.zeros((INTERMEDIATE,), jnp.float32),
            "wo2": nrm((INTERMEDIATE, HIDDEN)), "bo2": jnp.zeros((HIDDEN,), jnp.float32),
            "ln2_g": jnp.ones((HIDDEN,), jnp.float32), "ln2_b": jnp.zeros((HIDDEN,), jnp.float32),
        })
    return params


def prep_params(params):
    """One-time packing: QKV concat, bias reshapes, bf16 casts, classifier padding."""
    h = HIDDEN
    cls_w_pad = jnp.zeros((h, LANE), jnp.float32).at[:, :N_LABELS].set(params["cls_w"])
    cls_b_pad = jnp.zeros((1, LANE), jnp.float32).at[:, :N_LABELS].set(params["cls_b"])
    layers = []
    for lp in params["layers"]:
        wqkv = jnp.concatenate([lp["wq"], lp["wk"], lp["wv"]], axis=1).astype(jnp.bfloat16)
        bqkv = jnp.concatenate([lp["bq"], lp["bk"], lp["bv"]]).reshape(1, 3 * h)
        layers.append((
            wqkv, bqkv,
            lp["wo"].astype(jnp.bfloat16), lp["bo"].reshape(1, h),
            lp["ln1_g"].reshape(1, h), lp["ln1_b"].reshape(1, h),
            lp["wi"].astype(jnp.bfloat16), lp["bi"].reshape(1, INTERMEDIATE),
            lp["wo2"].astype(jnp.bfloat16), lp["bo2"].reshape(1, h),
            lp["ln2_g"].reshape(1, h), lp["ln2_b"].reshape(1, h),
        ))
    return {
        "wemb": params["word_emb"],
        "pemb": params["pos_emb"],
        "temb": params["type_emb"][0:1],       # token_type_ids == 0 assumed
        "eg": params["emb_ln_g"].reshape(1, h),
        "eb": params["emb_ln_b"].reshape(1, h),
        "layers": layers,
        "cls_w": cls_w_pad.astype(jnp.bfloat16),
        "cls_b": cls_b_pad,
    }


# -------------------------------- model (glue) ---------------------------------
def forward(prepped, input_ids, attention_mask, labels):
    b, s = input_ids.shape
    m = b * s

    args = [input_ids.reshape(m, 1).astype(jnp.int32),
            attention_mask.astype(jnp.int32),
            labels.reshape(m, 1).astype(jnp.int32),
            prepped["wemb"], prepped["pemb"], prepped["temb"],
            prepped["eg"], prepped["eb"]]
    for lw in prepped["layers"]:
        args.extend(lw)
    args.extend([prepped["cls_w"], prepped["cls_b"]])

    logits_pad, loss = pl.pallas_call(
        _fused_forward_kernel,
        out_shape=(jax.ShapeDtypeStruct((m, LANE), jnp.float32),
                   jax.ShapeDtypeStruct((1, 1), jnp.float32)),
        in_specs=[_VMEM] * len(args),
        out_specs=(_VMEM, _VMEM),
    )(*args)

    # Dropout is identity in eval mode.
    logits = logits_pad[:, :N_LABELS].reshape(b, s, N_LABELS)
    return {"loss": loss[0, 0], "logits": logits}


if __name__ == "__main__":
    key = jax.random.PRNGKey(0)
    pkey, ikey, lkey = jax.random.split(key, 3)
    params = init_params(pkey)
    prepped = prep_params(params)

    B, S = 2, 8
    input_ids = jax.random.randint(ikey, (B, S), 0, VOCAB, dtype=jnp.int32)
    attention_mask = jnp.ones((B, S), jnp.int32).at[1, 5:].set(0)
    labels = jax.random.randint(lkey, (B, S), 0, N_LABELS, dtype=jnp.int32)
    labels = jnp.where(attention_mask == 1, labels, -100)   # padded tokens ignored

    out = jax.jit(forward)(prepped, input_ids, attention_mask, labels)
    jax.block_until_ready(out)

    assert out["logits"].shape == (B, S, N_LABELS)
    assert out["loss"].shape == ()
    assert bool(jnp.isfinite(out["loss"]))
    print("KERNEL_OK")
</pallas_src>

<mosaic_0001>
module attributes {stable_mosaic.version = 11 : i64} {
  func.func @_fused_forward_kernel(%arg0: memref<16x1xi32, #tpu.memory_space<vmem>>, %arg1: memref<2x8xi32, #tpu.memory_space<vmem>>, %arg2: memref<16x1xi32, #tpu.memory_space<vmem>>, %arg3: memref<100x32xf32, #tpu.memory_space<vmem>>, %arg4: memref<64x32xf32, #tpu.memory_space<vmem>>, %arg5: memref<1x32xf32, #tpu.memory_space<vmem>>, %arg6: memref<1x32xf32, #tpu.memory_space<vmem>>, %arg7: memref<1x32xf32, #tpu.memory_space<vmem>>, %arg8: memref<32x96xbf16, #tpu.memory_space<vmem>>, %arg9: memref<1x96xf32, #tpu.memory_space<vmem>>, %arg10: memref<32x32xbf16, #tpu.memory_space<vmem>>, %arg11: memref<1x32xf32, #tpu.memory_space<vmem>>, %arg12: memref<1x32xf32, #tpu.memory_space<vmem>>, %arg13: memref<1x32xf32, #tpu.memory_space<vmem>>, %arg14: memref<32x64xbf16, #tpu.memory_space<vmem>>, %arg15: memref<1x64xf32, #tpu.memory_space<vmem>>, %arg16: memref<64x32xbf16, #tpu.memory_space<vmem>>, %arg17: memref<1x32xf32, #tpu.memory_space<vmem>>, %arg18: memref<1x32xf32, #tpu.memory_space<vmem>>, %arg19: memref<1x32xf32, #tpu.memory_space<vmem>>, %arg20: memref<32x96xbf16, #tpu.memory_space<vmem>>, %arg21: memref<1x96xf32, #tpu.memory_space<vmem>>, %arg22: memref<32x32xbf16, #tpu.memory_space<vmem>>, %arg23: memref<1x32xf32, #tpu.memory_space<vmem>>, %arg24: memref<1x32xf32, #tpu.memory_space<vmem>>, %arg25: memref<1x32xf32, #tpu.memory_space<vmem>>, %arg26: memref<32x64xbf16, #tpu.memory_space<vmem>>, %arg27: memref<1x64xf32, #tpu.memory_space<vmem>>, %arg28: memref<64x32xbf16, #tpu.memory_space<vmem>>, %arg29: memref<1x32xf32, #tpu.memory_space<vmem>>, %arg30: memref<1x32xf32, #tpu.memory_space<vmem>>, %arg31: memref<1x32xf32, #tpu.memory_space<vmem>>, %arg32: memref<32x128xbf16, #tpu.memory_space<vmem>>, %arg33: memref<1x128xf32, #tpu.memory_space<vmem>>, %arg34: memref<16x128xf32, #tpu.memory_space<vmem>>, %arg35: memref<1x1xf32, #tpu.memory_space<vmem>>) attributes {dimension_semantics = [], scalar_prefetch = 0 : i64, scratch_operands = 0 : i64, tpu.core_type = #tpu.core_type<tc>} {
    %c0 = arith.constant 0 : index
    %c0_0 = arith.constant 0 : index
    %0 = vector.load %arg0[%c0, %c0_0] : memref<16x1xi32, #tpu.memory_space<vmem>>, vector<16x1xi32>
    %1 = tpu.iota {dimensions = array<i32: 1>} : vector<16x100xi32>
    %2 = vector.broadcast %0 : vector<16x1xi32> to vector<16x100xi32>
    %3 = arith.cmpi eq, %1, %2 : vector<16x100xi32>
    %4 = arith.extui %3 : vector<16x100xi1> to vector<16x100xi32>
    %5 = arith.sitofp %4 : vector<16x100xi32> to vector<16x100xf32>
    %c0_1 = arith.constant 0 : index
    %c0_2 = arith.constant 0 : index
    %6 = vector.load %arg3[%c0_1, %c0_2] : memref<100x32xf32, #tpu.memory_space<vmem>>, vector<100x32xf32>
    %cst = arith.constant dense<0.000000e+00> : vector<16x32xf32>
    %7 = tpu.matmul %5, %6, %cst {dimension_numbers = #tpu.dot_dimension_numbers<[1], [0], [0], [1], [0, 0, 1, 1], [], []>} : vector<16x100xf32>, vector<100x32xf32>, vector<16x32xf32> -> vector<16x32xf32>
    %8 = vector.shape_cast %7 : vector<16x32xf32> to vector<2x8x32xf32>
    %c0_3 = arith.constant 0 : index
    %c0_4 = arith.constant 0 : index
    %9 = vector.load %arg4[%c0_3, %c0_4] : memref<64x32xf32, #tpu.memory_space<vmem>>, vector<8x32xf32>
    %10 = vector.shape_cast %9 : vector<8x32xf32> to vector<1x8x32xf32>
    %11 = vector.broadcast %10 : vector<1x8x32xf32> to vector<2x8x32xf32>
    %12 = arith.addf %8, %11 : vector<2x8x32xf32>
    %c0_5 = arith.constant 0 : index
    %c0_6 = arith.constant 0 : index
    %13 = vector.load %arg5[%c0_5, %c0_6] : memref<1x32xf32, #tpu.memory_space<vmem>>, vector<1x32xf32>
    %14 = vector.shape_cast %13 : vector<1x32xf32> to vector<1x1x32xf32>
    %15 = vector.broadcast %14 : vector<1x1x32xf32> to vector<2x8x32xf32>
    %16 = arith.addf %12, %15 : vector<2x8x32xf32>
    %17 = vector.shape_cast %16 : vector<2x8x32xf32> to vector<16x32xf32>
    %c0_7 = arith.constant 0 : index
    %c0_8 = arith.constant 0 : index
    %18 = vector.load %arg6[%c0_7, %c0_8] : memref<1x32xf32, #tpu.memory_space<vmem>>, vector<1x32xf32>
    %c0_9 = arith.constant 0 : index
    %c0_10 = arith.constant 0 : index
    %19 = vector.load %arg7[%c0_9, %c0_10] : memref<1x32xf32, #tpu.memory_space<vmem>>, vector<1x32xf32>
    %cst_11 = arith.constant dense<0.000000e+00> : vector<16xf32>
    %20 = vector.multi_reduction <add>, %17, %cst_11 [1] : vector<16x32xf32> to vector<16xf32>
    %21 = vector.shape_cast %20 : vector<16xf32> to vector<16x1xf32>
    %cst_12 = arith.constant 3.200000e+01 : f32
    %22 = vector.broadcast %cst_12 : f32 to vector<16x1xf32>
    %23 = arith.divf %21, %22 : vector<16x1xf32>
    %24 = vector.broadcast %23 : vector<16x1xf32> to vector<16x32xf32>
    %25 = arith.subf %17, %24 : vector<16x32xf32>
    %26 = arith.mulf %25, %25 : vector<16x32xf32>
    %cst_13 = arith.constant dense<0.000000e+00> : vector<16xf32>
    %27 = vector.multi_reduction <add>, %26, %cst_13 [1] : vector<16x32xf32> to vector<16xf32>
    %28 = vector.shape_cast %27 : vector<16xf32> to vector<16x1xf32>
    %cst_14 = arith.constant 3.200000e+01 : f32
    %29 = vector.broadcast %cst_14 : f32 to vector<16x1xf32>
    %30 = arith.divf %28, %29 : vector<16x1xf32>
    %31 = vector.broadcast %23 : vector<16x1xf32> to vector<16x32xf32>
    %32 = arith.subf %17, %31 : vector<16x32xf32>
    %cst_15 = arith.constant 9.99999996E-13 : f32
    %33 = vector.broadcast %cst_15 : f32 to vector<16x1xf32>
    %34 = arith.addf %30, %33 : vector<16x1xf32>
    %35 = math.rsqrt %34 : vector<16x1xf32>
    %36 = vector.broadcast %35 : vector<16x1xf32> to vector<16x32xf32>
    %37 = arith.mulf %32, %36 : vector<16x32xf32>
    %38 = vector.broadcast %18 : vector<1x32xf32> to vector<16x32xf32>
    %39 = arith.mulf %37, %38 : vector<16x32xf32>
    %40 = vector.broadcast %19 : vector<1x32xf32> to vector<16x32xf32>
    %41 = arith.addf %39, %40 : vector<16x32xf32>
    %c0_16 = arith.constant 0 : index
    %c0_17 = arith.constant 0 : index
    %42 = vector.load %arg1[%c0_16, %c0_17] : memref<2x8xi32, #tpu.memory_space<vmem>>, vector<2x8xi32>
    %43 = arith.sitofp %42 : vector<2x8xi32> to vector<2x8xf32>
    %cst_18 = arith.constant 1.000000e+00 : f32
    %44 = vector.broadcast %cst_18 : f32 to vector<2x8xf32>
    %45 = arith.subf %44, %43 : vector<2x8xf32>
    %cst_19 = arith.constant -1.000000e+09 : f32
    %46 = vector.broadcast %cst_19 : f32 to vector<2x8xf32>
    %47 = arith.mulf %45, %46 : vector<2x8xf32>
    %48 = vector.shape_cast %47 : vector<2x8xf32> to vector<2x1x8xf32>
    %c0_20 = arith.constant 0 : index
    %c0_21 = arith.constant 0 : index
    %49 = vector.load %arg8[%c0_20, %c0_21] : memref<32x96xbf16, #tpu.memory_space<vmem>>, vector<32x96xbf16>
    %c0_22 = arith.constant 0 : index
    %c0_23 = arith.constant 0 : index
    %50 = vector.load %arg9[%c0_22, %c0_23] : memref<1x96xf32, #tpu.memory_space<vmem>>, vector<1x96xf32>
    %c0_24 = arith.constant 0 : index
    %c0_25 = arith.constant 0 : index
    %51 = vector.load %arg10[%c0_24, %c0_25] : memref<32x32xbf16, #tpu.memory_space<vmem>>, vector<32x32xbf16>
    %c0_26 = arith.constant 0 : index
    %c0_27 = arith.constant 0 : index
    %52 = vector.load %arg11[%c0_26, %c0_27] : memref<1x32xf32, #tpu.memory_space<vmem>>, vector<1x32xf32>
    %c0_28 = arith.constant 0 : index
    %c0_29 = arith.constant 0 : index
    %53 = vector.load %arg12[%c0_28, %c0_29] : memref<1x32xf32, #tpu.memory_space<vmem>>, vector<1x32xf32>
    %c0_30 = arith.constant 0 : index
    %c0_31 = arith.constant 0 : index
    %54 = vector.load %arg13[%c0_30, %c0_31] : memref<1x32xf32, #tpu.memory_space<vmem>>, vector<1x32xf32>
    %c0_32 = arith.constant 0 : index
    %c0_33 = arith.constant 0 : index
    %55 = vector.load %arg14[%c0_32, %c0_33] : memref<32x64xbf16, #tpu.memory_space<vmem>>, vector<32x64xbf16>
    %c0_34 = arith.constant 0 : index
    %c0_35 = arith.constant 0 : index
    %56 = vector.load %arg15[%c0_34, %c0_35] : memref<1x64xf32, #tpu.memory_space<vmem>>, vector<1x64xf32>
    %c0_36 = arith.constant 0 : index
    %c0_37 = arith.constant 0 : index
    %57 = vector.load %arg16[%c0_36, %c0_37] : memref<64x32xbf16, #tpu.memory_space<vmem>>, vector<64x32xbf16>
    %c0_38 = arith.constant 0 : index
    %c0_39 = arith.constant 0 : index
    %58 = vector.load %arg17[%c0_38, %c0_39] : memref<1x32xf32, #tpu.memory_space<vmem>>, vector<1x32xf32>
    %c0_40 = arith.constant 0 : index
    %c0_41 = arith.constant 0 : index
    %59 = vector.load %arg18[%c0_40, %c0_41] : memref<1x32xf32, #tpu.memory_space<vmem>>, vector<1x32xf32>
    %c0_42 = arith.constant 0 : index
    %c0_43 = arith.constant 0 : index
    %60 = vector.load %arg19[%c0_42, %c0_43] : memref<1x32xf32, #tpu.memory_space<vmem>>, vector<1x32xf32>
    %61 = arith.truncf %41 : vector<16x32xf32> to vector<16x32xbf16>
    %cst_44 = arith.constant dense<0.000000e+00> : vector<16x96xf32>
    %62 = tpu.matmul %61, %49, %cst_44 {dimension_numbers = #tpu.dot_dimension_numbers<[1], [0], [0], [1], [0, 0, 1, 1], [], []>} : vector<16x32xbf16>, vector<32x96xbf16>, vector<16x96xf32> -> vector<16x96xf32>
    %63 = vector.broadcast %50 : vector<1x96xf32> to vector<16x96xf32>
    %64 = arith.addf %62, %63 : vector<16x96xf32>
    %65 = vector.extract_strided_slice %64 {offsets = [0, 0], sizes = [16, 32], strides = [1, 1]} : vector<16x96xf32> to vector<16x32xf32>
    %66 = vector.extract_strided_slice %64 {offsets = [0, 32], sizes = [16, 32], strides = [1, 1]} : vector<16x96xf32> to vector<16x32xf32>
    %67 = vector.extract_strided_slice %64 {offsets = [0, 64], sizes = [16, 32], strides = [1, 1]} : vector<16x96xf32> to vector<16x32xf32>
    %68 = vector.extract_strided_slice %65 {offsets = [0, 0], sizes = [16, 8], strides = [1, 1]} : vector<16x32xf32> to vector<16x8xf32>
    %69 = vector.shape_cast %68 : vector<16x8xf32> to vector<2x8x8xf32>
    %70 = arith.truncf %69 : vector<2x8x8xf32> to vector<2x8x8xbf16>
    %71 = vector.extract_strided_slice %66 {offsets = [0, 0], sizes = [16, 8], strides = [1, 1]} : vector<16x32xf32> to vector<16x8xf32>
    %72 = vector.shape_cast %71 : vector<16x8xf32> to vector<2x8x8xf32>
    %73 = arith.truncf %72 : vector<2x8x8xf32> to vector<2x8x8xbf16>
    %74 = vector.extract_strided_slice %67 {offsets = [0, 0], sizes = [16, 8], strides = [1, 1]} : vector<16x32xf32> to vector<16x8xf32>
    %75 = vector.shape_cast %74 : vector<16x8xf32> to vector<2x8x8xf32>
    %76 = arith.truncf %75 : vector<2x8x8xf32> to vector<2x8x8xbf16>
    "tpu.trace_start"() <{level = 10 : i32, message = "bqd,bkd->bqk"}> : () -> ()
    %cst_45 = arith.constant dense<0.000000e+00> : vector<2x8x8xf32>
    %77 = tpu.matmul %70, %73, %cst_45 {dimension_numbers = #tpu.dot_dimension_numbers<[2], [2], [1], [1], [0, 0, 0, 1, 1, 1], [0], [0]>} : vector<2x8x8xbf16>, vector<2x8x8xbf16>, vector<2x8x8xf32> -> vector<2x8x8xf32>
    "tpu.trace_stop"() : () -> ()
    %cst_46 = arith.constant 0.353553385 : f32
    %78 = vector.broadcast %cst_46 : f32 to vector<2x8x8xf32>
    %79 = arith.mulf %77, %78 : vector<2x8x8xf32>
    %80 = vector.broadcast %48 : vector<2x1x8xf32> to vector<2x8x8xf32>
    %81 = arith.addf %79, %80 : vector<2x8x8xf32>
    %cst_47 = arith.constant dense<0xFF800000> : vector<2x8xf32>
    %82 = vector.multi_reduction <maximumf>, %81, %cst_47 [2] : vector<2x8x8xf32> to vector<2x8xf32>
    %83 = vector.shape_cast %82 : vector<2x8xf32> to vector<2x8x1xf32>
    %84 = vector.broadcast %83 : vector<2x8x1xf32> to vector<2x8x8xf32>
    %85 = arith.subf %81, %84 : vector<2x8x8xf32>
    %86 = math.exp %85 : vector<2x8x8xf32>
    %cst_48 = arith.constant dense<0.000000e+00> : vector<2x8xf32>
    %87 = vector.multi_reduction <add>, %86, %cst_48 [2] : vector<2x8x8xf32> to vector<2x8xf32>
    %88 = vector.shape_cast %87 : vector<2x8xf32> to vector<2x8x1xf32>
    %89 = vector.broadcast %88 : vector<2x8x1xf32> to vector<2x8x8xf32>
    %90 = arith.divf %86, %89 : vector<2x8x8xf32>
    %91 = arith.truncf %90 : vector<2x8x8xf32> to vector<2x8x8xbf16>
    "tpu.trace_start"() <{level = 10 : i32, message = "bqk,bkd->bqd"}> : () -> ()
    %cst_49 = arith.constant dense<0.000000e+00> : vector<2x8x8xf32>
    %92 = tpu.matmul %91, %76, %cst_49 {dimension_numbers = #tpu.dot_dimension_numbers<[2], [1], [1], [2], [0, 0, 0, 1, 1, 2], [0], [0]>} : vector<2x8x8xbf16>, vector<2x8x8xbf16>, vector<2x8x8xf32> -> vector<2x8x8xf32>
    "tpu.trace_stop"() : () -> ()
    %93 = vector.shape_cast %92 : vector<2x8x8xf32> to vector<16x8xf32>
    %94 = vector.extract_strided_slice %65 {offsets = [0, 8], sizes = [16, 8], strides = [1, 1]} : vector<16x32xf32> to vector<16x8xf32>
    %95 = vector.shape_cast %94 : vector<16x8xf32> to vector<2x8x8xf32>
    %96 = arith.truncf %95 : vector<2x8x8xf32> to vector<2x8x8xbf16>
    %97 = vector.extract_strided_slice %66 {offsets = [0, 8], sizes = [16, 8], strides = [1, 1]} : vector<16x32xf32> to vector<16x8xf32>
    %98 = vector.shape_cast %97 : vector<16x8xf32> to vector<2x8x8xf32>
    %99 = arith.truncf %98 : vector<2x8x8xf32> to vector<2x8x8xbf16>
    %100 = vector.extract_strided_slice %67 {offsets = [0, 8], sizes = [16, 8], strides = [1, 1]} : vector<16x32xf32> to vector<16x8xf32>
    %101 = vector.shape_cast %100 : vector<16x8xf32> to vector<2x8x8xf32>
    %102 = arith.truncf %101 : vector<2x8x8xf32> to vector<2x8x8xbf16>
    "tpu.trace_start"() <{level = 10 : i32, message = "bqd,bkd->bqk"}> : () -> ()
    %cst_50 = arith.constant dense<0.000000e+00> : vector<2x8x8xf32>
    %103 = tpu.matmul %96, %99, %cst_50 {dimension_numbers = #tpu.dot_dimension_numbers<[2], [2], [1], [1], [0, 0, 0, 1, 1, 1], [0], [0]>} : vector<2x8x8xbf16>, vector<2x8x8xbf16>, vector<2x8x8xf32> -> vector<2x8x8xf32>
    "tpu.trace_stop"() : () -> ()
    %cst_51 = arith.constant 0.353553385 : f32
    %104 = vector.broadcast %cst_51 : f32 to vector<2x8x8xf32>
    %105 = arith.mulf %103, %104 : vector<2x8x8xf32>
    %106 = vector.broadcast %48 : vector<2x1x8xf32> to vector<2x8x8xf32>
    %107 = arith.addf %105, %106 : vector<2x8x8xf32>
    %cst_52 = arith.constant dense<0xFF800000> : vector<2x8xf32>
    %108 = vector.multi_reduction <maximumf>, %107, %cst_52 [2] : vector<2x8x8xf32> to vector<2x8xf32>
    %109 = vector.shape_cast %108 : vector<2x8xf32> to vector<2x8x1xf32>
    %110 = vector.broadcast %109 : vector<2x8x1xf32> to vector<2x8x8xf32>
    %111 = arith.subf %107, %110 : vector<2x8x8xf32>
    %112 = math.exp %111 : vector<2x8x8xf32>
    %cst_53 = arith.constant dense<0.000000e+00> : vector<2x8xf32>
    %113 = vector.multi_reduction <add>, %112, %cst_53 [2] : vector<2x8x8xf32> to vector<2x8xf32>
    %114 = vector.shape_cast %113 : vector<2x8xf32> to vector<2x8x1xf32>
    %115 = vector.broadcast %114 : vector<2x8x1xf32> to vector<2x8x8xf32>
    %116 = arith.divf %112, %115 : vector<2x8x8xf32>
    %117 = arith.truncf %116 : vector<2x8x8xf32> to vector<2x8x8xbf16>
    "tpu.trace_start"() <{level = 10 : i32, message = "bqk,bkd->bqd"}> : () -> ()
    %cst_54 = arith.constant dense<0.000000e+00> : vector<2x8x8xf32>
    %118 = tpu.matmul %117, %102, %cst_54 {dimension_numbers = #tpu.dot_dimension_numbers<[2], [1], [1], [2], [0, 0, 0, 1, 1, 2], [0], [0]>} : vector<2x8x8xbf16>, vector<2x8x8xbf16>, vector<2x8x8xf32> -> vector<2x8x8xf32>
    "tpu.trace_stop"() : () -> ()
    %119 = vector.shape_cast %118 : vector<2x8x8xf32> to vector<16x8xf32>
    %120 = vector.extract_strided_slice %65 {offsets = [0, 16], sizes = [16, 8], strides = [1, 1]} : vector<16x32xf32> to vector<16x8xf32>
    %121 = vector.shape_cast %120 : vector<16x8xf32> to vector<2x8x8xf32>
    %122 = arith.truncf %121 : vector<2x8x8xf32> to vector<2x8x8xbf16>
    %123 = vector.extract_strided_slice %66 {offsets = [0, 16], sizes = [16, 8], strides = [1, 1]} : vector<16x32xf32> to vector<16x8xf32>
    %124 = vector.shape_cast %123 : vector<16x8xf32> to vector<2x8x8xf32>
    %125 = arith.truncf %124 : vector<2x8x8xf32> to vector<2x8x8xbf16>
    %126 = vector.extract_strided_slice %67 {offsets = [0, 16], sizes = [16, 8], strides = [1, 1]} : vector<16x32xf32> to vector<16x8xf32>
    %127 = vector.shape_cast %126 : vector<16x8xf32> to vector<2x8x8xf32>
    %128 = arith.truncf %127 : vector<2x8x8xf32> to vector<2x8x8xbf16>
    "tpu.trace_start"() <{level = 10 : i32, message = "bqd,bkd->bqk"}> : () -> ()
    %cst_55 = arith.constant dense<0.000000e+00> : vector<2x8x8xf32>
    %129 = tpu.matmul %122, %125, %cst_55 {dimension_numbers = #tpu.dot_dimension_numbers<[2], [2], [1], [1], [0, 0, 0, 1, 1, 1], [0], [0]>} : vector<2x8x8xbf16>, vector<2x8x8xbf16>, vector<2x8x8xf32> -> vector<2x8x8xf32>
    "tpu.trace_stop"() : () -> ()
    %cst_56 = arith.constant 0.353553385 : f32
    %130 = vector.broadcast %cst_56 : f32 to vector<2x8x8xf32>
    %131 = arith.mulf %129, %130 : vector<2x8x8xf32>
    %132 = vector.broadcast %48 : vector<2x1x8xf32> to vector<2x8x8xf32>
    %133 = arith.addf %131, %132 : vector<2x8x8xf32>
    %cst_57 = arith.constant dense<0xFF800000> : vector<2x8xf32>
    %134 = vector.multi_reduction <maximumf>, %133, %cst_57 [2] : vector<2x8x8xf32> to vector<2x8xf32>
    %135 = vector.shape_cast %134 : vector<2x8xf32> to vector<2x8x1xf32>
    %136 = vector.broadcast %135 : vector<2x8x1xf32> to vector<2x8x8xf32>
    %137 = arith.subf %133, %136 : vector<2x8x8xf32>
    %138 = math.exp %137 : vector<2x8x8xf32>
    %cst_58 = arith.constant dense<0.000000e+00> : vector<2x8xf32>
    %139 = vector.multi_reduction <add>, %138, %cst_58 [2] : vector<2x8x8xf32> to vector<2x8xf32>
    %140 = vector.shape_cast %139 : vector<2x8xf32> to vector<2x8x1xf32>
    %141 = vector.broadcast %140 : vector<2x8x1xf32> to vector<2x8x8xf32>
    %142 = arith.divf %138, %141 : vector<2x8x8xf32>
    %143 = arith.truncf %142 : vector<2x8x8xf32> to vector<2x8x8xbf16>
    "tpu.trace_start"() <{level = 10 : i32, message = "bqk,bkd->bqd"}> : () -> ()
    %cst_59 = arith.constant dense<0.000000e+00> : vector<2x8x8xf32>
    %144 = tpu.matmul %143, %128, %cst_59 {dimension_numbers = #tpu.dot_dimension_numbers<[2], [1], [1], [2], [0, 0, 0, 1, 1, 2], [0], [0]>} : vector<2x8x8xbf16>, vector<2x8x8xbf16>, vector<2x8x8xf32> -> vector<2x8x8xf32>
    "tpu.trace_stop"() : () -> ()
    %145 = vector.shape_cast %144 : vector<2x8x8xf32> to vector<16x8xf32>
    %146 = vector.extract_strided_slice %65 {offsets = [0, 24], sizes = [16, 8], strides = [1, 1]} : vector<16x32xf32> to vector<16x8xf32>
    %147 = vector.shape_cast %146 : vector<16x8xf32> to vector<2x8x8xf32>
    %148 = arith.truncf %147 : vector<2x8x8xf32> to vector<2x8x8xbf16>
    %149 = vector.extract_strided_slice %66 {offsets = [0, 24], sizes = [16, 8], strides = [1, 1]} : vector<16x32xf32> to vector<16x8xf32>
    %150 = vector.shape_cast %149 : vector<16x8xf32> to vector<2x8x8xf32>
    %151 = arith.truncf %150 : vector<2x8x8xf32> to vector<2x8x8xbf16>
    %152 = vector.extract_strided_slice %67 {offsets = [0, 24], sizes = [16, 8], strides = [1, 1]} : vector<16x32xf32> to vector<16x8xf32>
    %153 = vector.shape_cast %152 : vector<16x8xf32> to vector<2x8x8xf32>
    %154 = arith.truncf %153 : vector<2x8x8xf32> to vector<2x8x8xbf16>
    "tpu.trace_start"() <{level = 10 : i32, message = "bqd,bkd->bqk"}> : () -> ()
    %cst_60 = arith.constant dense<0.000000e+00> : vector<2x8x8xf32>
    %155 = tpu.matmul %148, %151, %cst_60 {dimension_numbers = #tpu.dot_dimension_numbers<[2], [2], [1], [1], [0, 0, 0, 1, 1, 1], [0], [0]>} : vector<2x8x8xbf16>, vector<2x8x8xbf16>, vector<2x8x8xf32> -> vector<2x8x8xf32>
    "tpu.trace_stop"() : () -> ()
    %cst_61 = arith.constant 0.353553385 : f32
    %156 = vector.broadcast %cst_61 : f32 to vector<2x8x8xf32>
    %157 = arith.mulf %155, %156 : vector<2x8x8xf32>
    %158 = vector.broadcast %48 : vector<2x1x8xf32> to vector<2x8x8xf32>
    %159 = arith.addf %157, %158 : vector<2x8x8xf32>
    %cst_62 = arith.constant dense<0xFF800000> : vector<2x8xf32>
    %160 = vector.multi_reduction <maximumf>, %159, %cst_62 [2] : vector<2x8x8xf32> to vector<2x8xf32>
    %161 = vector.shape_cast %160 : vector<2x8xf32> to vector<2x8x1xf32>
    %162 = vector.broadcast %161 : vector<2x8x1xf32> to vector<2x8x8xf32>
    %163 = arith.subf %159, %162 : vector<2x8x8xf32>
    %164 = math.exp %163 : vector<2x8x8xf32>
    %cst_63 = arith.constant dense<0.000000e+00> : vector<2x8xf32>
    %165 = vector.multi_reduction <add>, %164, %cst_63 [2] : vector<2x8x8xf32> to vector<2x8xf32>
    %166 = vector.shape_cast %165 : vector<2x8xf32> to vector<2x8x1xf32>
    %167 = vector.broadcast %166 : vector<2x8x1xf32> to vector<2x8x8xf32>
    %168 = arith.divf %164, %167 : vector<2x8x8xf32>
    %169 = arith.truncf %168 : vector<2x8x8xf32> to vector<2x8x8xbf16>
    "tpu.trace_start"() <{level = 10 : i32, message = "bqk,bkd->bqd"}> : () -> ()
    %cst_64 = arith.constant dense<0.000000e+00> : vector<2x8x8xf32>
    %170 = tpu.matmul %169, %154, %cst_64 {dimension_numbers = #tpu.dot_dimension_numbers<[2], [1], [1], [2], [0, 0, 0, 1, 1, 2], [0], [0]>} : vector<2x8x8xbf16>, vector<2x8x8xbf16>, vector<2x8x8xf32> -> vector<2x8x8xf32>
    "tpu.trace_stop"() : () -> ()
    %171 = vector.shape_cast %170 : vector<2x8x8xf32> to vector<16x8xf32>
    %172 = tpu.concatenate %93, %119, %145, %171 in 1 : vector<16x8xf32>, vector<16x8xf32>, vector<16x8xf32>, vector<16x8xf32> -> vector<16x32xf32>
    %173 = arith.truncf %172 : vector<16x32xf32> to vector<16x32xbf16>
    %cst_65 = arith.constant dense<0.000000e+00> : vector<16x32xf32>
    %174 = tpu.matmul %173, %51, %cst_65 {dimension_numbers = #tpu.dot_dimension_numbers<[1], [0], [0], [1], [0, 0, 1, 1], [], []>} : vector<16x32xbf16>, vector<32x32xbf16>, vector<16x32xf32> -> vector<16x32xf32>
    %175 = vector.broadcast %52 : vector<1x32xf32> to vector<16x32xf32>
    %176 = arith.addf %174, %175 : vector<16x32xf32>
    %177 = arith.addf %176, %41 : vector<16x32xf32>
    %cst_66 = arith.constant dense<0.000000e+00> : vector<16xf32>
    %178 = vector.multi_reduction <add>, %177, %cst_66 [1] : vector<16x32xf32> to vector<16xf32>
    %179 = vector.shape_cast %178 : vector<16xf32> to vector<16x1xf32>
    %cst_67 = arith.constant 3.200000e+01 : f32
    %180 = vector.broadcast %cst_67 : f32 to vector<16x1xf32>
    %181 = arith.divf %179, %180 : vector<16x1xf32>
    %182 = vector.broadcast %181 : vector<16x1xf32> to vector<16x32xf32>
    %183 = arith.subf %177, %182 : vector<16x32xf32>
    %184 = arith.mulf %183, %183 : vector<16x32xf32>
    %cst_68 = arith.constant dense<0.000000e+00> : vector<16xf32>
    %185 = vector.multi_reduction <add>, %184, %cst_68 [1] : vector<16x32xf32> to vector<16xf32>
    %186 = vector.shape_cast %185 : vector<16xf32> to vector<16x1xf32>
    %cst_69 = arith.constant 3.200000e+01 : f32
    %187 = vector.broadcast %cst_69 : f32 to vector<16x1xf32>
    %188 = arith.divf %186, %187 : vector<16x1xf32>
    %189 = vector.broadcast %181 : vector<16x1xf32> to vector<16x32xf32>
    %190 = arith.subf %177, %189 : vector<16x32xf32>
    %cst_70 = arith.constant 9.99999996E-13 : f32
    %191 = vector.broadcast %cst_70 : f32 to vector<16x1xf32>
    %192 = arith.addf %188, %191 : vector<16x1xf32>
    %193 = math.rsqrt %192 : vector<16x1xf32>
    %194 = vector.broadcast %193 : vector<16x1xf32> to vector<16x32xf32>
    %195 = arith.mulf %190, %194 : vector<16x32xf32>
    %196 = vector.broadcast %53 : vector<1x32xf32> to vector<16x32xf32>
    %197 = arith.mulf %195, %196 : vector<16x32xf32>
    %198 = vector.broadcast %54 : vector<1x32xf32> to vector<16x32xf32>
    %199 = arith.addf %197, %198 : vector<16x32xf32>
    %200 = arith.truncf %199 : vector<16x32xf32> to vector<16x32xbf16>
    %cst_71 = arith.constant dense<0.000000e+00> : vector<16x64xf32>
    %201 = tpu.matmul %200, %55, %cst_71 {dimension_numbers = #tpu.dot_dimension_numbers<[1], [0], [0], [1], [0, 0, 1, 1], [], []>} : vector<16x32xbf16>, vector<32x64xbf16>, vector<16x64xf32> -> vector<16x64xf32>
    %202 = vector.broadcast %56 : vector<1x64xf32> to vector<16x64xf32>
    %203 = arith.addf %201, %202 : vector<16x64xf32>
    %cst_72 = arith.constant 5.000000e-01 : f32
    %204 = vector.broadcast %cst_72 : f32 to vector<16x64xf32>
    %205 = arith.mulf %204, %203 : vector<16x64xf32>
    %cst_73 = arith.constant 4.471500e-02 : f32
    %206 = vector.broadcast %cst_73 : f32 to vector<16x64xf32>
    %207 = arith.mulf %206, %203 : vector<16x64xf32>
    %208 = arith.mulf %207, %203 : vector<16x64xf32>
    %209 = arith.mulf %208, %203 : vector<16x64xf32>
    %210 = arith.addf %203, %209 : vector<16x64xf32>
    %cst_74 = arith.constant 0.797884583 : f32
    %211 = vector.broadcast %cst_74 : f32 to vector<16x64xf32>
    %212 = arith.mulf %211, %210 : vector<16x64xf32>
    %213 = math.tanh %212 : vector<16x64xf32>
    %cst_75 = arith.constant 1.000000e+00 : f32
    %214 = vector.broadcast %cst_75 : f32 to vector<16x64xf32>
    %215 = arith.addf %214, %213 : vector<16x64xf32>
    %216 = arith.mulf %205, %215 : vector<16x64xf32>
    %217 = arith.truncf %216 : vector<16x64xf32> to vector<16x64xbf16>
    %cst_76 = arith.constant dense<0.000000e+00> : vector<16x32xf32>
    %218 = tpu.matmul %217, %57, %cst_76 {dimension_numbers = #tpu.dot_dimension_numbers<[1], [0], [0], [1], [0, 0, 1, 1], [], []>} : vector<16x64xbf16>, vector<64x32xbf16>, vector<16x32xf32> -> vector<16x32xf32>
    %219 = vector.broadcast %58 : vector<1x32xf32> to vector<16x32xf32>
    %220 = arith.addf %218, %219 : vector<16x32xf32>
    %221 = arith.addf %220, %199 : vector<16x32xf32>
    %cst_77 = arith.constant dense<0.000000e+00> : vector<16xf32>
    %222 = vector.multi_reduction <add>, %221, %cst_77 [1] : vector<16x32xf32> to vector<16xf32>
    %223 = vector.shape_cast %222 : vector<16xf32> to vector<16x1xf32>
    %cst_78 = arith.constant 3.200000e+01 : f32
    %224 = vector.broadcast %cst_78 : f32 to vector<16x1xf32>
    %225 = arith.divf %223, %224 : vector<16x1xf32>
    %226 = vector.broadcast %225 : vector<16x1xf32> to vector<16x32xf32>
    %227 = arith.subf %221, %226 : vector<16x32xf32>
    %228 = arith.mulf %227, %227 : vector<16x32xf32>
    %cst_79 = arith.constant dense<0.000000e+00> : vector<16xf32>
    %229 = vector.multi_reduction <add>, %228, %cst_79 [1] : vector<16x32xf32> to vector<16xf32>
    %230 = vector.shape_cast %229 : vector<16xf32> to vector<16x1xf32>
    %cst_80 = arith.constant 3.200000e+01 : f32
    %231 = vector.broadcast %cst_80 : f32 to vector<16x1xf32>
    %232 = arith.divf %230, %231 : vector<16x1xf32>
    %233 = vector.broadcast %225 : vector<16x1xf32> to vector<16x32xf32>
    %234 = arith.subf %221, %233 : vector<16x32xf32>
    %cst_81 = arith.constant 9.99999996E-13 : f32
    %235 = vector.broadcast %cst_81 : f32 to vector<16x1xf32>
    %236 = arith.addf %232, %235 : vector<16x1xf32>
    %237 = math.rsqrt %236 : vector<16x1xf32>
    %238 = vector.broadcast %237 : vector<16x1xf32> to vector<16x32xf32>
    %239 = arith.mulf %234, %238 : vector<16x32xf32>
    %240 = vector.broadcast %59 : vector<1x32xf32> to vector<16x32xf32>
    %241 = arith.mulf %239, %240 : vector<16x32xf32>
    %242 = vector.broadcast %60 : vector<1x32xf32> to vector<16x32xf32>
    %243 = arith.addf %241, %242 : vector<16x32xf32>
    %c0_82 = arith.constant 0 : index
    %c0_83 = arith.constant 0 : index
    %244 = vector.load %arg20[%c0_82, %c0_83] : memref<32x96xbf16, #tpu.memory_space<vmem>>, vector<32x96xbf16>
    %c0_84 = arith.constant 0 : index
    %c0_85 = arith.constant 0 : index
    %245 = vector.load %arg21[%c0_84, %c0_85] : memref<1x96xf32, #tpu.memory_space<vmem>>, vector<1x96xf32>
    %c0_86 = arith.constant 0 : index
    %c0_87 = arith.constant 0 : index
    %246 = vector.load %arg22[%c0_86, %c0_87] : memref<32x32xbf16, #tpu.memory_space<vmem>>, vector<32x32xbf16>
    %c0_88 = arith.constant 0 : index
    %c0_89 = arith.constant 0 : index
    %247 = vector.load %arg23[%c0_88, %c0_89] : memref<1x32xf32, #tpu.memory_space<vmem>>, vector<1x32xf32>
    %c0_90 = arith.constant 0 : index
    %c0_91 = arith.constant 0 : index
    %248 = vector.load %arg24[%c0_90, %c0_91] : memref<1x32xf32, #tpu.memory_space<vmem>>, vector<1x32xf32>
    %c0_92 = arith.constant 0 : index
    %c0_93 = arith.constant 0 : index
    %249 = vector.load %arg25[%c0_92, %c0_93] : memref<1x32xf32, #tpu.memory_space<vmem>>, vector<1x32xf32>
    %c0_94 = arith.constant 0 : index
    %c0_95 = arith.constant 0 : index
    %250 = vector.load %arg26[%c0_94, %c0_95] : memref<32x64xbf16, #tpu.memory_space<vmem>>, vector<32x64xbf16>
    %c0_96 = arith.constant 0 : index
    %c0_97 = arith.constant 0 : index
    %251 = vector.load %arg27[%c0_96, %c0_97] : memref<1x64xf32, #tpu.memory_space<vmem>>, vector<1x64xf32>
    %c0_98 = arith.constant 0 : index
    %c0_99 = arith.constant 0 : index
    %252 = vector.load %arg28[%c0_98, %c0_99] : memref<64x32xbf16, #tpu.memory_space<vmem>>, vector<64x32xbf16>
    %c0_100 = arith.constant 0 : index
    %c0_101 = arith.constant 0 : index
    %253 = vector.load %arg29[%c0_100, %c0_101] : memref<1x32xf32, #tpu.memory_space<vmem>>, vector<1x32xf32>
    %c0_102 = arith.constant 0 : index
    %c0_103 = arith.constant 0 : index
    %254 = vector.load %arg30[%c0_102, %c0_103] : memref<1x32xf32, #tpu.memory_space<vmem>>, vector<1x32xf32>
    %c0_104 = arith.constant 0 : index
    %c0_105 = arith.constant 0 : index
    %255 = vector.load %arg31[%c0_104, %c0_105] : memref<1x32xf32, #tpu.memory_space<vmem>>, vector<1x32xf32>
    %256 = arith.truncf %243 : vector<16x32xf32> to vector<16x32xbf16>
    %cst_106 = arith.constant dense<0.000000e+00> : vector<16x96xf32>
    %257 = tpu.matmul %256, %244, %cst_106 {dimension_numbers = #tpu.dot_dimension_numbers<[1], [0], [0], [1], [0, 0, 1, 1], [], []>} : vector<16x32xbf16>, vector<32x96xbf16>, vector<16x96xf32> -> vector<16x96xf32>
    %258 = vector.broadcast %245 : vector<1x96xf32> to vector<16x96xf32>
    %259 = arith.addf %257, %258 : vector<16x96xf32>
    %260 = vector.extract_strided_slice %259 {offsets = [0, 0], sizes = [16, 32], strides = [1, 1]} : vector<16x96xf32> to vector<16x32xf32>
    %261 = vector.extract_strided_slice %259 {offsets = [0, 32], sizes = [16, 32], strides = [1, 1]} : vector<16x96xf32> to vector<16x32xf32>
    %262 = vector.extract_strided_slice %259 {offsets = [0, 64], sizes = [16, 32], strides = [1, 1]} : vector<16x96xf32> to vector<16x32xf32>
    %263 = vector.extract_strided_slice %260 {offsets = [0, 0], sizes = [16, 8], strides = [1, 1]} : vector<16x32xf32> to vector<16x8xf32>
    %264 = vector.shape_cast %263 : vector<16x8xf32> to vector<2x8x8xf32>
    %265 = arith.truncf %264 : vector<2x8x8xf32> to vector<2x8x8xbf16>
    %266 = vector.extract_strided_slice %261 {offsets = [0, 0], sizes = [16, 8], strides = [1, 1]} : vector<16x32xf32> to vector<16x8xf32>
    %267 = vector.shape_cast %266 : vector<16x8xf32> to vector<2x8x8xf32>
    %268 = arith.truncf %267 : vector<2x8x8xf32> to vector<2x8x8xbf16>
    %269 = vector.extract_strided_slice %262 {offsets = [0, 0], sizes = [16, 8], strides = [1, 1]} : vector<16x32xf32> to vector<16x8xf32>
    %270 = vector.shape_cast %269 : vector<16x8xf32> to vector<2x8x8xf32>
    %271 = arith.truncf %270 : vector<2x8x8xf32> to vector<2x8x8xbf16>
    "tpu.trace_start"() <{level = 10 : i32, message = "bqd,bkd->bqk"}> : () -> ()
    %cst_107 = arith.constant dense<0.000000e+00> : vector<2x8x8xf32>
    %272 = tpu.matmul %265, %268, %cst_107 {dimension_numbers = #tpu.dot_dimension_numbers<[2], [2], [1], [1], [0, 0, 0, 1, 1, 1], [0], [0]>} : vector<2x8x8xbf16>, vector<2x8x8xbf16>, vector<2x8x8xf32> -> vector<2x8x8xf32>
    "tpu.trace_stop"() : () -> ()
    %cst_108 = arith.constant 0.353553385 : f32
    %273 = vector.broadcast %cst_108 : f32 to vector<2x8x8xf32>
    %274 = arith.mulf %272, %273 : vector<2x8x8xf32>
    %275 = vector.broadcast %48 : vector<2x1x8xf32> to vector<2x8x8xf32>
    %276 = arith.addf %274, %275 : vector<2x8x8xf32>
    %cst_109 = arith.constant dense<0xFF800000> : vector<2x8xf32>
    %277 = vector.multi_reduction <maximumf>, %276, %cst_109 [2] : vector<2x8x8xf32> to vector<2x8xf32>
    %278 = vector.shape_cast %277 : vector<2x8xf32> to vector<2x8x1xf32>
    %279 = vector.broadcast %278 : vector<2x8x1xf32> to vector<2x8x8xf32>
    %280 = arith.subf %276, %279 : vector<2x8x8xf32>
    %281 = math.exp %280 : vector<2x8x8xf32>
    %cst_110 = arith.constant dense<0.000000e+00> : vector<2x8xf32>
    %282 = vector.multi_reduction <add>, %281, %cst_110 [2] : vector<2x8x8xf32> to vector<2x8xf32>
    %283 = vector.shape_cast %282 : vector<2x8xf32> to vector<2x8x1xf32>
    %284 = vector.broadcast %283 : vector<2x8x1xf32> to vector<2x8x8xf32>
    %285 = arith.divf %281, %284 : vector<2x8x8xf32>
    %286 = arith.truncf %285 : vector<2x8x8xf32> to vector<2x8x8xbf16>
    "tpu.trace_start"() <{level = 10 : i32, message = "bqk,bkd->bqd"}> : () -> ()
    %cst_111 = arith.constant dense<0.000000e+00> : vector<2x8x8xf32>
    %287 = tpu.matmul %286, %271, %cst_111 {dimension_numbers = #tpu.dot_dimension_numbers<[2], [1], [1], [2], [0, 0, 0, 1, 1, 2], [0], [0]>} : vector<2x8x8xbf16>, vector<2x8x8xbf16>, vector<2x8x8xf32> -> vector<2x8x8xf32>
    "tpu.trace_stop"() : () -> ()
    %288 = vector.shape_cast %287 : vector<2x8x8xf32> to vector<16x8xf32>
    %289 = vector.extract_strided_slice %260 {offsets = [0, 8], sizes = [16, 8], strides = [1, 1]} : vector<16x32xf32> to vector<16x8xf32>
    %290 = vector.shape_cast %289 : vector<16x8xf32> to vector<2x8x8xf32>
    %291 = arith.truncf %290 : vector<2x8x8xf32> to vector<2x8x8xbf16>
    %292 = vector.extract_strided_slice %261 {offsets = [0, 8], sizes = [16, 8], strides = [1, 1]} : vector<16x32xf32> to vector<16x8xf32>
    %293 = vector.shape_cast %292 : vector<16x8xf32> to vector<2x8x8xf32>
    %294 = arith.truncf %293 : vector<2x8x8xf32> to vector<2x8x8xbf16>
    %295 = vector.extract_strided_slice %262 {offsets = [0, 8], sizes = [16, 8], strides = [1, 1]} : vector<16x32xf32> to vector<16x8xf32>
    %296 = vector.shape_cast %295 : vector<16x8xf32> to vector<2x8x8xf32>
    %297 = arith.truncf %296 : vector<2x8x8xf32> to vector<2x8x8xbf16>
    "tpu.trace_start"() <{level = 10 : i32, message = "bqd,bkd->bqk"}> : () -> ()
    %cst_112 = arith.constant dense<0.000000e+00> : vector<2x8x8xf32>
    %298 = tpu.matmul %291, %294, %cst_112 {dimension_numbers = #tpu.dot_dimension_numbers<[2], [2], [1], [1], [0, 0, 0, 1, 1, 1], [0], [0]>} : vector<2x8x8xbf16>, vector<2x8x8xbf16>, vector<2x8x8xf32> -> vector<2x8x8xf32>
    "tpu.trace_stop"() : () -> ()
    %cst_113 = arith.constant 0.353553385 : f32
    %299 = vector.broadcast %cst_113 : f32 to vector<2x8x8xf32>
    %300 = arith.mulf %298, %299 : vector<2x8x8xf32>
    %301 = vector.broadcast %48 : vector<2x1x8xf32> to vector<2x8x8xf32>
    %302 = arith.addf %300, %301 : vector<2x8x8xf32>
    %cst_114 = arith.constant dense<0xFF800000> : vector<2x8xf32>
    %303 = vector.multi_reduction <maximumf>, %302, %cst_114 [2] : vector<2x8x8xf32> to vector<2x8xf32>
    %304 = vector.shape_cast %303 : vector<2x8xf32> to vector<2x8x1xf32>
    %305 = vector.broadcast %304 : vector<2x8x1xf32> to vector<2x8x8xf32>
    %306 = arith.subf %302, %305 : vector<2x8x8xf32>
    %307 = math.exp %306 : vector<2x8x8xf32>
    %cst_115 = arith.constant dense<0.000000e+00> : vector<2x8xf32>
    %308 = vector.multi_reduction <add>, %307, %cst_115 [2] : vector<2x8x8xf32> to vector<2x8xf32>
    %309 = vector.shape_cast %308 : vector<2x8xf32> to vector<2x8x1xf32>
    %310 = vector.broadcast %309 : vector<2x8x1xf32> to vector<2x8x8xf32>
    %311 = arith.divf %307, %310 : vector<2x8x8xf32>
    %312 = arith.truncf %311 : vector<2x8x8xf32> to vector<2x8x8xbf16>
    "tpu.trace_start"() <{level = 10 : i32, message = "bqk,bkd->bqd"}> : () -> ()
    %cst_116 = arith.constant dense<0.000000e+00> : vector<2x8x8xf32>
    %313 = tpu.matmul %312, %297, %cst_116 {dimension_numbers = #tpu.dot_dimension_numbers<[2], [1], [1], [2], [0, 0, 0, 1, 1, 2], [0], [0]>} : vector<2x8x8xbf16>, vector<2x8x8xbf16>, vector<2x8x8xf32> -> vector<2x8x8xf32>
    "tpu.trace_stop"() : () -> ()
    %314 = vector.shape_cast %313 : vector<2x8x8xf32> to vector<16x8xf32>
    %315 = vector.extract_strided_slice %260 {offsets = [0, 16], sizes = [16, 8], strides = [1, 1]} : vector<16x32xf32> to vector<16x8xf32>
    %316 = vector.shape_cast %315 : vector<16x8xf32> to vector<2x8x8xf32>
    %317 = arith.truncf %316 : vector<2x8x8xf32> to vector<2x8x8xbf16>
    %318 = vector.extract_strided_slice %261 {offsets = [0, 16], sizes = [16, 8], strides = [1, 1]} : vector<16x32xf32> to vector<16x8xf32>
    %319 = vector.shape_cast %318 : vector<16x8xf32> to vector<2x8x8xf32>
    %320 = arith.truncf %319 : vector<2x8x8xf32> to vector<2x8x8xbf16>
    %321 = vector.extract_strided_slice %262 {offsets = [0, 16], sizes = [16, 8], strides = [1, 1]} : vector<16x32xf32> to vector<16x8xf32>
    %322 = vector.shape_cast %321 : vector<16x8xf32> to vector<2x8x8xf32>
    %323 = arith.truncf %322 : vector<2x8x8xf32> to vector<2x8x8xbf16>
    "tpu.trace_start"() <{level = 10 : i32, message = "bqd,bkd->bqk"}> : () -> ()
    %cst_117 = arith.constant dense<0.000000e+00> : vector<2x8x8xf32>
    %324 = tpu.matmul %317, %320, %cst_117 {dimension_numbers = #tpu.dot_dimension_numbers<[2], [2], [1], [1], [0, 0, 0, 1, 1, 1], [0], [0]>} : vector<2x8x8xbf16>, vector<2x8x8xbf16>, vector<2x8x8xf32> -> vector<2x8x8xf32>
    "tpu.trace_stop"() : () -> ()
    %cst_118 = arith.constant 0.353553385 : f32
    %325 = vector.broadcast %cst_118 : f32 to vector<2x8x8xf32>
    %326 = arith.mulf %324, %325 : vector<2x8x8xf32>
    %327 = vector.broadcast %48 : vector<2x1x8xf32> to vector<2x8x8xf32>
    %328 = arith.addf %326, %327 : vector<2x8x8xf32>
    %cst_119 = arith.constant dense<0xFF800000> : vector<2x8xf32>
    %329 = vector.multi_reduction <maximumf>, %328, %cst_119 [2] : vector<2x8x8xf32> to vector<2x8xf32>
    %330 = vector.shape_cast %329 : vector<2x8xf32> to vector<2x8x1xf32>
    %331 = vector.broadcast %330 : vector<2x8x1xf32> to vector<2x8x8xf32>
    %332 = arith.subf %328, %331 : vector<2x8x8xf32>
    %333 = math.exp %332 : vector<2x8x8xf32>
    %cst_120 = arith.constant dense<0.000000e+00> : vector<2x8xf32>
    %334 = vector.multi_reduction <add>, %333, %cst_120 [2] : vector<2x8x8xf32> to vector<2x8xf32>
    %335 = vector.shape_cast %334 : vector<2x8xf32> to vector<2x8x1xf32>
    %336 = vector.broadcast %335 : vector<2x8x1xf32> to vector<2x8x8xf32>
    %337 = arith.divf %333, %336 : vector<2x8x8xf32>
    %338 = arith.truncf %337 : vector<2x8x8xf32> to vector<2x8x8xbf16>
    "tpu.trace_start"() <{level = 10 : i32, message = "bqk,bkd->bqd"}> : () -> ()
    %cst_121 = arith.constant dense<0.000000e+00> : vector<2x8x8xf32>
    %339 = tpu.matmul %338, %323, %cst_121 {dimension_numbers = #tpu.dot_dimension_numbers<[2], [1], [1], [2], [0, 0, 0, 1, 1, 2], [0], [0]>} : vector<2x8x8xbf16>, vector<2x8x8xbf16>, vector<2x8x8xf32> -> vector<2x8x8xf32>
    "tpu.trace_stop"() : () -> ()
    %340 = vector.shape_cast %339 : vector<2x8x8xf32> to vector<16x8xf32>
    %341 = vector.extract_strided_slice %260 {offsets = [0, 24], sizes = [16, 8], strides = [1, 1]} : vector<16x32xf32> to vector<16x8xf32>
    %342 = vector.shape_cast %341 : vector<16x8xf32> to vector<2x8x8xf32>
    %343 = arith.truncf %342 : vector<2x8x8xf32> to vector<2x8x8xbf16>
    %344 = vector.extract_strided_slice %261 {offsets = [0, 24], sizes = [16, 8], strides = [1, 1]} : vector<16x32xf32> to vector<16x8xf32>
    %345 = vector.shape_cast %344 : vector<16x8xf32> to vector<2x8x8xf32>
    %346 = arith.truncf %345 : vector<2x8x8xf32> to vector<2x8x8xbf16>
    %347 = vector.extract_strided_slice %262 {offsets = [0, 24], sizes = [16, 8], strides = [1, 1]} : vector<16x32xf32> to vector<16x8xf32>
    %348 = vector.shape_cast %347 : vector<16x8xf32> to vector<2x8x8xf32>
    %349 = arith.truncf %348 : vector<2x8x8xf32> to vector<2x8x8xbf16>
    "tpu.trace_start"() <{level = 10 : i32, message = "bqd,bkd->bqk"}> : () -> ()
    %cst_122 = arith.constant dense<0.000000e+00> : vector<2x8x8xf32>
    %350 = tpu.matmul %343, %346, %cst_122 {dimension_numbers = #tpu.dot_dimension_numbers<[2], [2], [1], [1], [0, 0, 0, 1, 1, 1], [0], [0]>} : vector<2x8x8xbf16>, vector<2x8x8xbf16>, vector<2x8x8xf32> -> vector<2x8x8xf32>
    "tpu.trace_stop"() : () -> ()
    %cst_123 = arith.constant 0.353553385 : f32
    %351 = vector.broadcast %cst_123 : f32 to vector<2x8x8xf32>
    %352 = arith.mulf %350, %351 : vector<2x8x8xf32>
    %353 = vector.broadcast %48 : vector<2x1x8xf32> to vector<2x8x8xf32>
    %354 = arith.addf %352, %353 : vector<2x8x8xf32>
    %cst_124 = arith.constant dense<0xFF800000> : vector<2x8xf32>
    %355 = vector.multi_reduction <maximumf>, %354, %cst_124 [2] : vector<2x8x8xf32> to vector<2x8xf32>
    %356 = vector.shape_cast %355 : vector<2x8xf32> to vector<2x8x1xf32>
    %357 = vector.broadcast %356 : vector<2x8x1xf32> to vector<2x8x8xf32>
    %358 = arith.subf %354, %357 : vector<2x8x8xf32>
    %359 = math.exp %358 : vector<2x8x8xf32>
    %cst_125 = arith.constant dense<0.000000e+00> : vector<2x8xf32>
    %360 = vector.multi_reduction <add>, %359, %cst_125 [2] : vector<2x8x8xf32> to vector<2x8xf32>
    %361 = vector.shape_cast %360 : vector<2x8xf32> to vector<2x8x1xf32>
    %362 = vector.broadcast %361 : vector<2x8x1xf32> to vector<2x8x8xf32>
    %363 = arith.divf %359, %362 : vector<2x8x8xf32>
    %364 = arith.truncf %363 : vector<2x8x8xf32> to vector<2x8x8xbf16>
    "tpu.trace_start"() <{level = 10 : i32, message = "bqk,bkd->bqd"}> : () -> ()
    %cst_126 = arith.constant dense<0.000000e+00> : vector<2x8x8xf32>
    %365 = tpu.matmul %364, %349, %cst_126 {dimension_numbers = #tpu.dot_dimension_numbers<[2], [1], [1], [2], [0, 0, 0, 1, 1, 2], [0], [0]>} : vector<2x8x8xbf16>, vector<2x8x8xbf16>, vector<2x8x8xf32> -> vector<2x8x8xf32>
    "tpu.trace_stop"() : () -> ()
    %366 = vector.shape_cast %365 : vector<2x8x8xf32> to vector<16x8xf32>
    %367 = tpu.concatenate %288, %314, %340, %366 in 1 : vector<16x8xf32>, vector<16x8xf32>, vector<16x8xf32>, vector<16x8xf32> -> vector<16x32xf32>
    %368 = arith.truncf %367 : vector<16x32xf32> to vector<16x32xbf16>
    %cst_127 = arith.constant dense<0.000000e+00> : vector<16x32xf32>
    %369 = tpu.matmul %368, %246, %cst_127 {dimension_numbers = #tpu.dot_dimension_numbers<[1], [0], [0], [1], [0, 0, 1, 1], [], []>} : vector<16x32xbf16>, vector<32x32xbf16>, vector<16x32xf32> -> vector<16x32xf32>
    %370 = vector.broadcast %247 : vector<1x32xf32> to vector<16x32xf32>
    %371 = arith.addf %369, %370 : vector<16x32xf32>
    %372 = arith.addf %371, %243 : vector<16x32xf32>
    %cst_128 = arith.constant dense<0.000000e+00> : vector<16xf32>
    %373 = vector.multi_reduction <add>, %372, %cst_128 [1] : vector<16x32xf32> to vector<16xf32>
    %374 = vector.shape_cast %373 : vector<16xf32> to vector<16x1xf32>
    %cst_129 = arith.constant 3.200000e+01 : f32
    %375 = vector.broadcast %cst_129 : f32 to vector<16x1xf32>
    %376 = arith.divf %374, %375 : vector<16x1xf32>
    %377 = vector.broadcast %376 : vector<16x1xf32> to vector<16x32xf32>
    %378 = arith.subf %372, %377 : vector<16x32xf32>
    %379 = arith.mulf %378, %378 : vector<16x32xf32>
    %cst_130 = arith.constant dense<0.000000e+00> : vector<16xf32>
    %380 = vector.multi_reduction <add>, %379, %cst_130 [1] : vector<16x32xf32> to vector<16xf32>
    %381 = vector.shape_cast %380 : vector<16xf32> to vector<16x1xf32>
    %cst_131 = arith.constant 3.200000e+01 : f32
    %382 = vector.broadcast %cst_131 : f32 to vector<16x1xf32>
    %383 = arith.divf %381, %382 : vector<16x1xf32>
    %384 = vector.broadcast %376 : vector<16x1xf32> to vector<16x32xf32>
    %385 = arith.subf %372, %384 : vector<16x32xf32>
    %cst_132 = arith.constant 9.99999996E-13 : f32
    %386 = vector.broadcast %cst_132 : f32 to vector<16x1xf32>
    %387 = arith.addf %383, %386 : vector<16x1xf32>
    %388 = math.rsqrt %387 : vector<16x1xf32>
    %389 = vector.broadcast %388 : vector<16x1xf32> to vector<16x32xf32>
    %390 = arith.mulf %385, %389 : vector<16x32xf32>
    %391 = vector.broadcast %248 : vector<1x32xf32> to vector<16x32xf32>
    %392 = arith.mulf %390, %391 : vector<16x32xf32>
    %393 = vector.broadcast %249 : vector<1x32xf32> to vector<16x32xf32>
    %394 = arith.addf %392, %393 : vector<16x32xf32>
    %395 = arith.truncf %394 : vector<16x32xf32> to vector<16x32xbf16>
    %cst_133 = arith.constant dense<0.000000e+00> : vector<16x64xf32>
    %396 = tpu.matmul %395, %250, %cst_133 {dimension_numbers = #tpu.dot_dimension_numbers<[1], [0], [0], [1], [0, 0, 1, 1], [], []>} : vector<16x32xbf16>, vector<32x64xbf16>, vector<16x64xf32> -> vector<16x64xf32>
    %397 = vector.broadcast %251 : vector<1x64xf32> to vector<16x64xf32>
    %398 = arith.addf %396, %397 : vector<16x64xf32>
    %cst_134 = arith.constant 5.000000e-01 : f32
    %399 = vector.broadcast %cst_134 : f32 to vector<16x64xf32>
    %400 = arith.mulf %399, %398 : vector<16x64xf32>
    %cst_135 = arith.constant 4.471500e-02 : f32
    %401 = vector.broadcast %cst_135 : f32 to vector<16x64xf32>
    %402 = arith.mulf %401, %398 : vector<16x64xf32>
    %403 = arith.mulf %402, %398 : vector<16x64xf32>
    %404 = arith.mulf %403, %398 : vector<16x64xf32>
    %405 = arith.addf %398, %404 : vector<16x64xf32>
    %cst_136 = arith.constant 0.797884583 : f32
    %406 = vector.broadcast %cst_136 : f32 to vector<16x64xf32>
    %407 = arith.mulf %406, %405 : vector<16x64xf32>
    %408 = math.tanh %407 : vector<16x64xf32>
    %cst_137 = arith.constant 1.000000e+00 : f32
    %409 = vector.broadcast %cst_137 : f32 to vector<16x64xf32>
    %410 = arith.addf %409, %408 : vector<16x64xf32>
    %411 = arith.mulf %400, %410 : vector<16x64xf32>
    %412 = arith.truncf %411 : vector<16x64xf32> to vector<16x64xbf16>
    %cst_138 = arith.constant dense<0.000000e+00> : vector<16x32xf32>
    %413 = tpu.matmul %412, %252, %cst_138 {dimension_numbers = #tpu.dot_dimension_numbers<[1], [0], [0], [1], [0, 0, 1, 1], [], []>} : vector<16x64xbf16>, vector<64x32xbf16>, vector<16x32xf32> -> vector<16x32xf32>
    %414 = vector.broadcast %253 : vector<1x32xf32> to vector<16x32xf32>
    %415 = arith.addf %413, %414 : vector<16x32xf32>
    %416 = arith.addf %415, %394 : vector<16x32xf32>
    %cst_139 = arith.constant dense<0.000000e+00> : vector<16xf32>
    %417 = vector.multi_reduction <add>, %416, %cst_139 [1] : vector<16x32xf32> to vector<16xf32>
    %418 = vector.shape_cast %417 : vector<16xf32> to vector<16x1xf32>
    %cst_140 = arith.constant 3.200000e+01 : f32
    %419 = vector.broadcast %cst_140 : f32 to vector<16x1xf32>
    %420 = arith.divf %418, %419 : vector<16x1xf32>
    %421 = vector.broadcast %420 : vector<16x1xf32> to vector<16x32xf32>
    %422 = arith.subf %416, %421 : vector<16x32xf32>
    %423 = arith.mulf %422, %422 : vector<16x32xf32>
    %cst_141 = arith.constant dense<0.000000e+00> : vector<16xf32>
    %424 = vector.multi_reduction <add>, %423, %cst_141 [1] : vector<16x32xf32> to vector<16xf32>
    %425 = vector.shape_cast %424 : vector<16xf32> to vector<16x1xf32>
    %cst_142 = arith.constant 3.200000e+01 : f32
    %426 = vector.broadcast %cst_142 : f32 to vector<16x1xf32>
    %427 = arith.divf %425, %426 : vector<16x1xf32>
    %428 = vector.broadcast %420 : vector<16x1xf32> to vector<16x32xf32>
    %429 = arith.subf %416, %428 : vector<16x32xf32>
    %cst_143 = arith.constant 9.99999996E-13 : f32
    %430 = vector.broadcast %cst_143 : f32 to vector<16x1xf32>
    %431 = arith.addf %427, %430 : vector<16x1xf32>
    %432 = math.rsqrt %431 : vector<16x1xf32>
    %433 = vector.broadcast %432 : vector<16x1xf32> to vector<16x32xf32>
    %434 = arith.mulf %429, %433 : vector<16x32xf32>
    %435 = vector.broadcast %254 : vector<1x32xf32> to vector<16x32xf32>
    %436 = arith.mulf %434, %435 : vector<16x32xf32>
    %437 = vector.broadcast %255 : vector<1x32xf32> to vector<16x32xf32>
    %438 = arith.addf %436, %437 : vector<16x32xf32>
    %439 = arith.truncf %438 : vector<16x32xf32> to vector<16x32xbf16>
    %c0_144 = arith.constant 0 : index
    %c0_145 = arith.constant 0 : index
    %440 = vector.load %arg32[%c0_144, %c0_145] : memref<32x128xbf16, #tpu.memory_space<vmem>>, vector<32x128xbf16>
    %cst_146 = arith.constant dense<0.000000e+00> : vector<16x128xf32>
    %441 = tpu.matmul %439, %440, %cst_146 {dimension_numbers = #tpu.dot_dimension_numbers<[1], [0], [0], [1], [0, 0, 1, 1], [], []>} : vector<16x32xbf16>, vector<32x128xbf16>, vector<16x128xf32> -> vector<16x128xf32>
    %c0_147 = arith.constant 0 : index
    %c0_148 = arith.constant 0 : index
    %442 = vector.load %arg33[%c0_147, %c0_148] : memref<1x128xf32, #tpu.memory_space<vmem>>, vector<1x128xf32>
    %443 = vector.broadcast %442 : vector<1x128xf32> to vector<16x128xf32>
    %444 = arith.addf %441, %443 : vector<16x128xf32>
    %c0_149 = arith.constant 0 : index
    %c0_150 = arith.constant 0 : index
    %445 = vector.load %arg34[%c0_149, %c0_150] : memref<16x128xf32, #tpu.memory_space<vmem>>, vector<16x128xf32>
    tpu.vector_store %arg34[%c0_149, %c0_150], %444 {strides = array<i32>} : memref<16x128xf32, #tpu.memory_space<vmem>>, vector<16x128xf32>,
    %c0_151 = arith.constant 0 : index
    %c0_152 = arith.constant 0 : index
    %446 = vector.load %arg2[%c0_151, %c0_152] : memref<16x1xi32, #tpu.memory_space<vmem>>, vector<16x1xi32>
    %447 = tpu.iota {dimensions = array<i32: 1>} : vector<16x128xi32>
    %c5_i32 = arith.constant 5 : i32
    %448 = vector.broadcast %c5_i32 : i32 to vector<16x128xi32>
    %449 = arith.cmpi slt, %447, %448 : vector<16x128xi32>
    %cst_153 = arith.constant -1.000000e+30 : f32
    %450 = vector.broadcast %cst_153 : f32 to vector<16x128xf32>
    %451 = arith.select %449, %444, %450 : vector<16x128xi1>, vector<16x128xf32>
    %cst_154 = arith.constant dense<0xFF800000> : vector<16xf32>
    %452 = vector.multi_reduction <maximumf>, %451, %cst_154 [1] : vector<16x128xf32> to vector<16xf32>
    %453 = vector.shape_cast %452 : vector<16xf32> to vector<16x1xf32>
    %454 = vector.broadcast %453 : vector<16x1xf32> to vector<16x128xf32>
    %455 = arith.subf %451, %454 : vector<16x128xf32>
    %456 = math.exp %455 : vector<16x128xf32>
    %cst_155 = arith.constant dense<0.000000e+00> : vector<16xf32>
    %457 = vector.multi_reduction <add>, %456, %cst_155 [1] : vector<16x128xf32> to vector<16xf32>
    %458 = vector.shape_cast %457 : vector<16xf32> to vector<16x1xf32>
    %459 = math.log %458 : vector<16x1xf32>
    %460 = arith.addf %459, %453 : vector<16x1xf32>
    %461 = vector.broadcast %446 : vector<16x1xi32> to vector<16x128xi32>
    %462 = arith.cmpi eq, %447, %461 : vector<16x128xi32>
    %463 = arith.extui %462 : vector<16x128xi1> to vector<16x128xi32>
    %464 = arith.sitofp %463 : vector<16x128xi32> to vector<16x128xf32>
    %465 = arith.mulf %451, %464 : vector<16x128xf32>
    %cst_156 = arith.constant dense<0.000000e+00> : vector<16xf32>
    %466 = vector.multi_reduction <add>, %465, %cst_156 [1] : vector<16x128xf32> to vector<16xf32>
    %467 = vector.shape_cast %466 : vector<16xf32> to vector<16x1xf32>
    %c-100_i32 = arith.constant -100 : i32
    %468 = vector.broadcast %c-100_i32 : i32 to vector<16x1xi32>
    %469 = arith.cmpi ne, %446, %468 : vector<16x1xi32>
    %470 = arith.extui %469 : vector<16x1xi1> to vector<16x1xi32>
    %471 = arith.sitofp %470 : vector<16x1xi32> to vector<16x1xf32>
    %472 = arith.subf %460, %467 : vector<16x1xf32>
    %473 = arith.mulf %472, %471 : vector<16x1xf32>
    %474 = vector.shape_cast %473 : vector<16x1xf32> to vector<1x16x1xf32>
    %cst_157 = arith.constant dense<0.000000e+00> : vector<1xf32>
    %475 = vector.multi_reduction <add>, %474, %cst_157 [1, 2] : vector<1x16x1xf32> to vector<1xf32>
    %476 = vector.shape_cast %475 : vector<1xf32> to vector<1x1x1xf32>
    %477 = vector.extract %476[0, 0, 0] : f32 from vector<1x1x1xf32>
    %478 = vector.shape_cast %471 : vector<16x1xf32> to vector<1x16x1xf32>
    %cst_158 = arith.constant dense<0.000000e+00> : vector<1xf32>
    %479 = vector.multi_reduction <add>, %478, %cst_158 [1, 2] : vector<1x16x1xf32> to vector<1xf32>
    %480 = vector.shape_cast %479 : vector<1xf32> to vector<1x1x1xf32>
    %481 = vector.extract %480[0, 0, 0] : f32 from vector<1x1x1xf32>
    %cst_159 = arith.constant 1.000000e+00 : f32
    %482 = arith.maximumf %481, %cst_159 : f32
    %483 = arith.divf %477, %482 : f32
    %484 = vector.broadcast %483 : f32 to vector<1x1xf32>
    %c0_160 = arith.constant 0 : index
    %c0_161 = arith.constant 0 : index
    %485 = vector.load %arg35[%c0_160, %c0_161] : memref<1x1xf32, #tpu.memory_space<vmem>>, vector<1x1xf32>
    tpu.vector_store %arg35[%c0_160, %c0_161], %484 {strides = array<i32>} : memref<1x1xf32, #tpu.memory_space<vmem>>, vector<1x1xf32>,
    return
  }
}

</mosaic_0001>

<llo_original>
// kernel: forward.1
$region0: #{forward.1}
  #allocation0 [shape = 'u32[]', space=smem, size = 0x4, offset = 0x4, fixed_abs, tag = 'smem constant byte address 0x4 - core index']
  #allocation1 [shape = 'u32[144,128]{1,0:T(1,128)}', space=vmem, size = 0x12000, scoped, tag = 'internal scratch']
  %s0 = inlined_call_operand.smem [shape: u32[36], index: -1, kind: input, shape index: {}]
  %s1 = sld [smem:[%s0]]
  %s2 = scalar_lea.smem %s0, 1
  %s3 = sld [smem:[%s2]]
  %s4 = scalar_lea.smem %s0, 2
  %s5 = sld [smem:[%s4]]
  %s6 = scalar_lea.smem %s0, 3
  %s7 = sld [smem:[%s6]]
  %s8 = scalar_lea.smem %s0, 4
  %s9 = sld [smem:[%s8]]
  %s10 = scalar_lea.smem %s0, 5
  %s11 = sld [smem:[%s10]]
  %s12 = scalar_lea.smem %s0, 6
  %s13 = sld [smem:[%s12]]
  %s14 = scalar_lea.smem %s0, 7
  %s15 = sld [smem:[%s14]]
  %s16 = scalar_lea.smem %s0, 8
  %s17 = sld [smem:[%s16]]
  %s18 = scalar_lea.smem %s0, 9
  %s19 = sld [smem:[%s18]]
  %s20 = scalar_lea.smem %s0, 10
  %s21 = sld [smem:[%s20]]
  %s22 = scalar_lea.smem %s0, 11
  %s23 = sld [smem:[%s22]]
  %s24 = scalar_lea.smem %s0, 12
  %s25 = sld [smem:[%s24]]
  %s26 = scalar_lea.smem %s0, 13
  %s27 = sld [smem:[%s26]]
  %s28 = scalar_lea.smem %s0, 14
  %s29 = sld [smem:[%s28]]
  %s30 = scalar_lea.smem %s0, 15
  %s31 = sld [smem:[%s30]]
  %s32 = scalar_lea.smem %s0, 16
  %s33 = sld [smem:[%s32]]
  %s34 = scalar_lea.smem %s0, 17
  %s35 = sld [smem:[%s34]]
  %s36 = scalar_lea.smem %s0, 18
  %s37 = sld [smem:[%s36]]
  %s38 = scalar_lea.smem %s0, 19
  %s39 = sld [smem:[%s38]]
  %s40 = scalar_lea.smem %s0, 20
  %s41 = sld [smem:[%s40]]
  %s42 = scalar_lea.smem %s0, 21
  %s43 = sld [smem:[%s42]]
  %s44 = scalar_lea.smem %s0, 22
  %s45 = sld [smem:[%s44]]
  %s46 = scalar_lea.smem %s0, 23
  %s47 = sld [smem:[%s46]]
  %s48 = scalar_lea.smem %s0, 24
  %s49 = sld [smem:[%s48]]
  %s50 = scalar_lea.smem %s0, 25
  %s51 = sld [smem:[%s50]]
  %s52 = scalar_lea.smem %s0, 26
  %s53 = sld [smem:[%s52]]
  %s54 = scalar_lea.smem %s0, 27
  %s55 = sld [smem:[%s54]]
  %s56 = scalar_lea.smem %s0, 28
  %s57 = sld [smem:[%s56]]
  %s58 = scalar_lea.smem %s0, 29
  %s59 = sld [smem:[%s58]]
  %s60 = scalar_lea.smem %s0, 30
  %s61 = sld [smem:[%s60]]
  %s62 = scalar_lea.smem %s0, 31
  %s63 = sld [smem:[%s62]]
  %s64 = scalar_lea.smem %s0, 32
  %s65 = sld [smem:[%s64]]
  %s66 = scalar_lea.smem %s0, 33
  %s67 = sld [smem:[%s66]]
  %s68 = scalar_lea.smem %s0, 34
  %s69 = sld [smem:[%s68]]
  %s70 = scalar_lea.smem %s0, 35
  %s71 = sld [smem:[%s70]]
  %72 = xla_tuple %s69, %s71
  %s73 = sld [smem:[#allocation0]]
  $region154: #{forward.1} parent=0
    _
  %s75 = ssub.s32 1, %s73
  %s76 = scalar_select 0, %s75, %s73
  $region1: #{forward.1} parent=0
    #allocation2 [shape = 'u8[512]{0}', space=vmem, size = 0x400, scoped, tag = 'output window, operand 1, single buffered']
    #allocation3 [shape = 's32[1]{0}', space=sflag, size = 0x4, scoped, tag = 'scoped memory for forward.1']
    %77 = vsyncpa [#allocation3], 0
    // Predicated region
    $region2: #{forward.1} parent=1 // pred_check
      _
    $region3: #{forward.1} parent=1 // pred_check_branch
      %79 = sbr.rel (0) target = $region5
    $region4: #{forward.1} parent=1 // pred_region
      _
    $region5: #{forward.1} parent=1 // pred_fallthru
      _
    // Predicated region
    $region6: #{forward.1} parent=1 // pred_check
      _
    $region7: #{forward.1} parent=1 // pred_check_branch
      %81 = sbr.rel (0) target = $region9
    $region8: #{forward.1} parent=1 // pred_region
      _
    $region9: #{forward.1} parent=1 // pred_fallthru
      _
    // Predicated region
    $region10: #{forward.1} parent=1 // pred_check
      _
    $region11: #{forward.1} parent=1 // pred_check_branch
      %83 = sbr.rel (0) target = $region13
    $region12: #{forward.1} parent=1 // pred_region
      _
    $region13: #{forward.1} parent=1 // pred_fallthru
      _
    // Predicated region
    $region14: #{forward.1} parent=1 // pred_check
      _
    $region15: #{forward.1} parent=1 // pred_check_branch
      %85 = sbr.rel (0) target = $region17
    $region16: #{forward.1} parent=1 // pred_region
      _
    $region17: #{forward.1} parent=1 // pred_fallthru
      _
    // Predicated region
    $region18: #{forward.1} parent=1 // pred_check
      _
    $region19: #{forward.1} parent=1 // pred_check_branch
      %87 = sbr.rel (0) target = $region21
    $region20: #{forward.1} parent=1 // pred_region
      _
    $region21: #{forward.1} parent=1 // pred_fallthru
      _
    // Predicated region
    $region22: #{forward.1} parent=1 // pred_check
      _
    $region23: #{forward.1} parent=1 // pred_check_branch
      %89 = sbr.rel (0) target = $region25
    $region24: #{forward.1} parent=1 // pred_region
      _
    $region25: #{forward.1} parent=1 // pred_fallthru
      _
    // Predicated region
    $region26: #{forward.1} parent=1 // pred_check
      _
    $region27: #{forward.1} parent=1 // pred_check_branch
      %91 = sbr.rel (0) target = $region29
    $region28: #{forward.1} parent=1 // pred_region
      _
    $region29: #{forward.1} parent=1 // pred_fallthru
      _
    // Predicated region
    $region30: #{forward.1} parent=1 // pred_check
      _
    $region31: #{forward.1} parent=1 // pred_check_branch
      %93 = sbr.rel (0) target = $region33
    $region32: #{forward.1} parent=1 // pred_region
      _
    $region33: #{forward.1} parent=1 // pred_fallthru
      _
    // Predicated region
    $region34: #{forward.1} parent=1 // pred_check
      _
    $region35: #{forward.1} parent=1 // pred_check_branch
      %95 = sbr.rel (0) target = $region37
    $region36: #{forward.1} parent=1 // pred_region
      _
    $region37: #{forward.1} parent=1 // pred_fallthru
      _
    // Predicated region
    $region38: #{forward.1} parent=1 // pred_check
      _
    $region39: #{forward.1} parent=1 // pred_check_branch
      %97 = sbr.rel (0) target = $region41
    $region40: #{forward.1} parent=1 // pred_region
      _
    $region41: #{forward.1} parent=1 // pred_fallthru
      _
    // Predicated region
    $region42: #{forward.1} parent=1 // pred_check
      _
    $region43: #{forward.1} parent=1 // pred_check_branch
      %99 = sbr.rel (0) target = $region45
    $region44: #{forward.1} parent=1 // pred_region
      _
    $region45: #{forward.1} parent=1 // pred_fallthru
      _
    // Predicated region
    $region46: #{forward.1} parent=1 // pred_check
      _
    $region47: #{forward.1} parent=1 // pred_check_branch
      %101 = sbr.rel (0) target = $region49
    $region48: #{forward.1} parent=1 // pred_region
      _
    $region49: #{forward.1} parent=1 // pred_fallthru
      _
    // Predicated region
    $region50: #{forward.1} parent=1 // pred_check
      _
    $region51: #{forward.1} parent=1 // pred_check_branch
      %103 = sbr.rel (0) target = $region53
    $region52: #{forward.1} parent=1 // pred_region
      _
    $region53: #{forward.1} parent=1 // pred_fallthru
      _
    // Predicated region
    $region54: #{forward.1} parent=1 // pred_check
      _
    $region55: #{forward.1} parent=1 // pred_check_branch
      %105 = sbr.rel (0) target = $region57
    $region56: #{forward.1} parent=1 // pred_region
      _
    $region57: #{forward.1} parent=1 // pred_fallthru
      _
    // Predicated region
    $region58: #{forward.1} parent=1 // pred_check
      _
    $region59: #{forward.1} parent=1 // pred_check_branch
      %107 = sbr.rel (0) target = $region61
    $region60: #{forward.1} parent=1 // pred_region
      _
    $region61: #{forward.1} parent=1 // pred_fallthru
      _
    // Predicated region
    $region62: #{forward.1} parent=1 // pred_check
      _
    $region63: #{forward.1} parent=1 // pred_check_branch
      %109 = sbr.rel (0) target = $region65
    $region64: #{forward.1} parent=1 // pred_region
      _
    $region65: #{forward.1} parent=1 // pred_fallthru
      _
    // Predicated region
    $region66: #{forward.1} parent=1 // pred_check
      _
    $region67: #{forward.1} parent=1 // pred_check_branch
      %111 = sbr.rel (0) target = $region69
    $region68: #{forward.1} parent=1 // pred_region
      _
    $region69: #{forward.1} parent=1 // pred_fallthru
      _
    // Predicated region
    $region70: #{forward.1} parent=1 // pred_check
      _
    $region71: #{forward.1} parent=1 // pred_check_branch
      %113 = sbr.rel (0) target = $region73
    $region72: #{forward.1} parent=1 // pred_region
      _
    $region73: #{forward.1} parent=1 // pred_fallthru
      _
    // Predicated region
    $region74: #{forward.1} parent=1 // pred_check
      _
    $region75: #{forward.1} parent=1 // pred_check_branch
      %115 = sbr.rel (0) target = $region77
    $region76: #{forward.1} parent=1 // pred_region
      _
    $region77: #{forward.1} parent=1 // pred_fallthru
      _
    // Predicated region
    $region78: #{forward.1} parent=1 // pred_check
      _
    $region79: #{forward.1} parent=1 // pred_check_branch
      %117 = sbr.rel (0) target = $region81
    $region80: #{forward.1} parent=1 // pred_region
      _
    $region81: #{forward.1} parent=1 // pred_fallthru
      _
    // Predicated region
    $region82: #{forward.1} parent=1 // pred_check
      _
    $region83: #{forward.1} parent=1 // pred_check_branch
      %119 = sbr.rel (0) target = $region85
    $region84: #{forward.1} parent=1 // pred_region
      _
    $region85: #{forward.1} parent=1 // pred_fallthru
      _
    // Predicated region
    $region86: #{forward.1} parent=1 // pred_check
      _
    $region87: #{forward.1} parent=1 // pred_check_branch
      %121 = sbr.rel (0) target = $region89
    $region88: #{forward.1} parent=1 // pred_region
      _
    $region89: #{forward.1} parent=1 // pred_fallthru
      _
    // Predicated region
    $region90: #{forward.1} parent=1 // pred_check
      _
    $region91: #{forward.1} parent=1 // pred_check_branch
      %123 = sbr.rel (0) target = $region93
    $region92: #{forward.1} parent=1 // pred_region
      _
    $region93: #{forward.1} parent=1 // pred_fallthru
      _
    // Predicated region
    $region94: #{forward.1} parent=1 // pred_check
      _
    $region95: #{forward.1} parent=1 // pred_check_branch
      %125 = sbr.rel (0) target = $region97
    $region96: #{forward.1} parent=1 // pred_region
      _
    $region97: #{forward.1} parent=1 // pred_fallthru
      _
    // Predicated region
    $region98: #{forward.1} parent=1 // pred_check
      _
    $region99: #{forward.1} parent=1 // pred_check_branch
      %127 = sbr.rel (0) target = $region101
    $region100: #{forward.1} parent=1 // pred_region
      _
    $region101: #{forward.1} parent=1 // pred_fallthru
      _
    // Predicated region
    $region102: #{forward.1} parent=1 // pred_check
      _
    $region103: #{forward.1} parent=1 // pred_check_branch
      %129 = sbr.rel (0) target = $region105
    $region104: #{forward.1} parent=1 // pred_region
      _
    $region105: #{forward.1} parent=1 // pred_fallthru
      _
    // Predicated region
    $region106: #{forward.1} parent=1 // pred_check
      _
    $region107: #{forward.1} parent=1 // pred_check_branch
      %131 = sbr.rel (0) target = $region109
    $region108: #{forward.1} parent=1 // pred_region
      _
    $region109: #{forward.1} parent=1 // pred_fallthru
      _
    // Predicated region
    $region110: #{forward.1} parent=1 // pred_check
      _
    $region111: #{forward.1} parent=1 // pred_check_branch
      %133 = sbr.rel (0) target = $region113
    $region112: #{forward.1} parent=1 // pred_region
      _
    $region113: #{forward.1} parent=1 // pred_fallthru
      _
    // Predicated region
    $region114: #{forward.1} parent=1 // pred_check
      _
    $region115: #{forward.1} parent=1 // pred_check_branch
      %135 = sbr.rel (0) target = $region117
    $region116: #{forward.1} parent=1 // pred_region
      _
    $region117: #{forward.1} parent=1 // pred_fallthru
      _
    // Predicated region
    $region118: #{forward.1} parent=1 // pred_check
      _
    $region119: #{forward.1} parent=1 // pred_check_branch
      %137 = sbr.rel (0) target = $region121
    $region120: #{forward.1} parent=1 // pred_region
      _
    $region121: #{forward.1} parent=1 // pred_fallthru
      _
    // Predicated region
    $region122: #{forward.1} parent=1 // pred_check
      _
    $region123: #{forward.1} parent=1 // pred_check_branch
      %139 = sbr.rel (0) target = $region125
    $region124: #{forward.1} parent=1 // pred_region
      _
    $region125: #{forward.1} parent=1 // pred_fallthru
      _
    // Predicated region
    $region126: #{forward.1} parent=1 // pred_check
      _
    $region127: #{forward.1} parent=1 // pred_check_branch
      %141 = sbr.rel (0) target = $region129
    $region128: #{forward.1} parent=1 // pred_region
      _
    $region129: #{forward.1} parent=1 // pred_fallthru
      _
    // Predicated region
    $region130: #{forward.1} parent=1 // pred_check
      _
    $region131: #{forward.1} parent=1 // pred_check_branch
      %143 = sbr.rel (0) target = $region133
    $region132: #{forward.1} parent=1 // pred_region
      _
    $region133: #{forward.1} parent=1 // pred_fallthru
      _
    // Predicated region
    $region134: #{forward.1} parent=1 // pred_check
      _
    $region135: #{forward.1} parent=1 // pred_check_branch
      %145 = sbr.rel (0) target = $region137
    $region136: #{forward.1} parent=1 // pred_region
      _
    $region137: #{forward.1} parent=1 // pred_fallthru
      _
    %v147 = vld [vmem:[%s1] sm:$0xff]
    %v148 = vld [vmem:[%s1 + $0x8] sm:$0xff]
    %v149 = vlaneseq
    %v150 = vand.u32 %v149, 127
    %151 = vset.pattern.permute.xlu0 0
    %152 = vperm.xlu0 %151, %v147
    %v153 = vpop.permute.xlu0 %152
    %154 = vset.pattern.permute.xlu0 0
    %155 = vperm.xlu0 %154, %v148
    %v156 = vpop.permute.xlu0 %155
    %vm157 = vcmp.eq.s32.totalorder %v150, %v153
    %vm158 = vcmp.eq.s32.totalorder %v150, %v156
    %v159 = vsel %vm157, 1, 0
    %v160 = vsel %vm158, 1, 0
    %v161 = vcvt.s32.f32 %v159
    %v162 = vcvt.s32.f32 %v160
    %v163 = vld [vmem:[%s7] sm:$0xff]
    %v164 = vld [vmem:[%s7 + $0x8] sm:$0xff]
    %v165 = vld [vmem:[%s7 + $0x10] sm:$0xff]
    %v166 = vld [vmem:[%s7 + $0x18] sm:$0xff]
    %v167 = vld [vmem:[%s7 + $0x20] sm:$0xff]
    %v168 = vld [vmem:[%s7 + $0x28] sm:$0xff]
    %v169 = vld [vmem:[%s7 + $0x30] sm:$0xff]
    %v170 = vld [vmem:[%s7 + $0x38] sm:$0xff]
    %v171 = vld [vmem:[%s7 + $0x40] sm:$0xff]
    %v172 = vld [vmem:[%s7 + $0x48] sm:$0xff]
    %v173 = vld [vmem:[%s7 + $0x50] sm:$0xff]
    %v174 = vld [vmem:[%s7 + $0x58] sm:$0xff]
    %v175 = vld [vmem:[%s7 + $0x60] sm:$0xf]
    %vm176 = vcmask 818176
    %v178 = vsel %vm176, %v161, 0
    %v181 = vsel %vm176, %v162, 0
    %vm183 = vcmask 1043456
    %v185 = vsel %vm183, %v175, 0
    %187 = vmatprep.subr.mxu0 0.0
    %188 = vmatpush1.msra.mxu0 %v163
    %189 = vmatprep.subr.mxu0 0.0
    %190 = vmatpush1.msra.mxu0 %v164
    %191 = vmatprep.subr.mxu0 0.0
    %192 = vmatpush1.msra.mxu0 %v165
    %193 = vmatprep.subr.mxu0 0.0
    %194 = vmatpush1.msra.mxu0 %v166
    %195 = vmatprep.subr.mxu0 0.0
    %196 = vmatpush1.msra.mxu0 %v167
    %197 = vmatprep.subr.mxu0 0.0
    %198 = vmatpush1.msra.mxu0 %v168
    %199 = vmatprep.subr.mxu0 0.0
    %200 = vmatpush1.msra.mxu0 %v169
    %201 = vmatprep.subr.mxu0 0.0
    %202 = vmatpush1.msra.mxu0 %v170
    %203 = vmatprep.subr.mxu0 0.0
    %204 = vmatpush1.msra.mxu0 %v171
    %205 = vmatprep.subr.mxu0 0.0
    %206 = vmatpush1.msra.mxu0 %v172
    %207 = vmatprep.subr.mxu0 0.0
    %208 = vmatpush1.msra.mxu0 %v173
    %209 = vmatprep.subr.mxu0 0.0
    %210 = vmatpush1.msra.mxu0 %v174
    %211 = vmatprep.subr.mxu0 0.0
    %212 = vmatpush1.msra.mxu0 %v185
    %213 = vmatprep.subr.mxu0 0.0
    %214 = vmatpush1.msra.mxu0 0.0
    %215 = vmatprep.subr.mxu0 0.0
    %216 = vmatpush1.msra.mxu0 0.0
    %217 = vmatprep.subr.mxu0 0.0
    %218 = vmatpush1.msra.mxu0 0.0
    %219 = vmatprep.subr.mxu0 0.0
    %220 = vmatpush1.msra.mxu0 0.0
    %221 = vmatprep.subr.mxu0 0.0
    %222 = vmatpush1.msra.mxu0 0.0
    %223 = vmatprep.subr.mxu0 0.0
    %224 = vmatpush1.msra.mxu0 0.0
    %225 = vmatprep.subr.mxu0 0.0
    %226 = vmatpush1.msra.mxu0 0.0
    %227 = vmatprep.subr.mxu0 0.0
    %228 = vmatpush1.msra.mxu0 0.0
    %229 = vmatprep.subr.mxu0 0.0
    %230 = vmatpush1.msra.mxu0 0.0
    %231 = vmatprep.subr.mxu0 0.0
    %232 = vmatpush1.msra.mxu0 0.0
    %233 = vmatprep.subr.mxu0 0.0
    %234 = vmatpush1.msra.mxu0 0.0
    %235 = vmatprep.subr.mxu0 0.0
    %236 = vmatpush1.msra.mxu0 0.0
    %237 = vmatprep.subr.mxu0 0.0
    %238 = vmatpush1.msra.mxu0 0.0
    %239 = vmatprep.subr.mxu0 0.0
    %240 = vmatpush1.msra.mxu0 0.0
    %241 = vmatprep.subr.mxu0 0.0
    %242 = vmatpush1.msra.mxu0 0.0
    %243 = vmatprep.subr.mxu0 0.0
    %244 = vmatpush1.msra.mxu0 0.0
    %245 = vmatprep.subr.mxu0 0.0
    %246 = vmatpush1.msra.mxu0 0.0
    %247 = vmatprep.subr.mxu0 0.0
    %248 = vmatpush1.msra.mxu0 0.0
    %249 = vmatprep.subr.mxu0 0.0
    %250 = vmatpush1.msra.mxu0 0.0
    %251 = vmatprep.mubr.f32.mxu0 0.0
    %252 = vmatmul.mubr.f32.gmra.mrb[0].mxu0 %v178
    %v253 = vpop.f32.mrb[0].mxu0
    %v254 = vadd.f32 0.0, %v253
    %v255 = vpop.f32.mrb[0].mxu0
    %256 = vmatprep.mubr.f32.mxu0 0.0
    %257 = vmatmul.mubr.f32.gmra.mrb[0].mxu0 %v181
    %v258 = vpop.f32.mrb[0].mxu0
    %v259 = vadd.f32 0.0, %v258
    %v260 = vpop.f32.mrb[0].mxu0
    %261 = vdwg.mxu0
    %v262 = vld [vmem:[%s9] sm:$0xff]
    %v263 = vadd.f32 %v254, %v262
    %v264 = vadd.f32 %v259, %v262
    %v265 = vld [vmem:[%s11] sm:$0x1]
    %v267 = vlaneseq
    %v268 = vshrl.u32 %v267, 7
    %v269 = vsub.s32 0, %v268
    %v270 = vrot.slane %v265, %v269
    %v272 = vadd.f32 %v263, %v270
    %v273 = vadd.f32 %v264, %v270
    %v274 = vld [vmem:[%s13] sm:$0x1]
    %v275 = vld [vmem:[%s15] sm:$0x1]
    %vm276 = vcmask 261120
    %v277 = vsel %vm276, %v272, 0.0
    %278 = vadd.xlane.f32.xlu0 %v277
    %v279 = vpop.xlane.xlu0 %278
    %v280 = vsel %vm276, %v273, 0.0
    %281 = vadd.xlane.f32.xlu0 %v280
    %v282 = vpop.xlane.xlu0 %281
    %v283 = vrcp.pop 32.0
    %v284 = vmul.f32 %v279, %v283
    %v285 = vmul.f32 %v282, %v283
    %v286 = vsub.f32 %v272, %v284
    %v287 = vsub.f32 %v273, %v285
    %v288 = vmul.f32 %v286, %v286
    %v289 = vmul.f32 %v287, %v287
    %v290 = vsel %vm276, %v288, 0.0
    %291 = vadd.xlane.f32.xlu0 %v290
    %v292 = vpop.xlane.xlu0 %291
    %v293 = vsel %vm276, %v289, 0.0
    %294 = vadd.xlane.f32.xlu0 %v293
    %v295 = vpop.xlane.xlu0 %294
    %v296 = vmul.f32 %v292, %v283
    %v297 = vmul.f32 %v295, %v283
    %v298 = vadd.f32 %v296, 1e-12
    %v299 = vadd.f32 %v297, 1e-12
    %v300 = vrsqrt.pop %v298
    %v301 = vrsqrt.pop %v299
    %v302 = vmul.f32 %v286, %v300
    %v303 = vmul.f32 %v287, %v301
    %v305 = vlaneseq
    %v306 = vshrl.u32 %v305, 7
    %v307 = vsub.s32 0, %v306
    %v308 = vrot.slane %v274, %v307
    %v310 = vmul.f32 %v302, %v308
    %v311 = vmul.f32 %v303, %v308
    %v313 = vlaneseq
    %v314 = vshrl.u32 %v313, 7
    %v315 = vsub.s32 0, %v314
    %v316 = vrot.slane %v275, %v315
    %v318 = vadd.f32 %v310, %v316
    %v319 = vadd.f32 %v311, %v316
    %v320 = vld [vmem:[%s3] sm:$0x3]
    %v321 = vcvt.s32.f32 %v320
    %v322 = vsub.f32 1.0, %v321
    %v323 = vmul.f32 %v322, -1e+09
    %v326 = vunpack.c.l.s4 1966171168
    %v327 = vunpack.c.0.s8 %v326
    %v328 = vlaneseq
    %v329 = vshrl.u32 %v328, 7
    %v330 = vsub.s32 %v327, %v329
    %v331 = vrot.slane %v323, %v330
    %v332 = vcombine.high %v331, %v331
    %v334 = vunpack.c.l.s4 1966171168
    %v335 = vunpack.c.0.s8 %v334
    %v336 = vlaneseq
    %v337 = vshrl.u32 %v336, 7
    %v338 = vsub.s32 %v335, %v337
    %v339 = vrot.slane %v331, %v338
    %v341 = vunpack.c.l.s4 1966171168
    %v342 = vunpack.c.0.s8 %v341
    %v343 = vlaneseq
    %v344 = vshrl.u32 %v343, 7
    %v345 = vsub.s32 %v342, %v344
    %v346 = vrot.slane %v332, %v345
    %v347 = vld [vmem:[%s17] sm:$0xf]
    %v348 = vld [vmem:[%s17 + $0x4] sm:$0xf]
    %v349 = vld [vmem:[%s17 + $0x8] sm:$0xf]
    %v350 = vld [vmem:[%s17 + $0xc] sm:$0xf]
    %v351 = vld [vmem:[%s19] sm:$0x1]
    %v352 = vld [vmem:[%s21] sm:$0xf]
    %v353 = vld [vmem:[%s21 + $0x4] sm:$0xf]
    %v354 = vld [vmem:[%s21 + $0x8] sm:$0xf]
    %v355 = vld [vmem:[%s21 + $0xc] sm:$0xf]
    %v356 = vld [vmem:[%s23] sm:$0x1]
    %v357 = vld [vmem:[%s25] sm:$0x1]
    %v358 = vld [vmem:[%s27] sm:$0x1]
    %v359 = vld [vmem:[%s29] sm:$0xf]
    %v360 = vld [vmem:[%s29 + $0x4] sm:$0xf]
    %v361 = vld [vmem:[%s29 + $0x8] sm:$0xf]
    %v362 = vld [vmem:[%s29 + $0xc] sm:$0xf]
    %v363 = vld [vmem:[%s31] sm:$0x1]
    %v364 = vld [vmem:[%s33] sm:$0xf]
    %v365 = vld [vmem:[%s33 + $0x4] sm:$0xf]
    %v366 = vld [vmem:[%s33 + $0x8] sm:$0xf]
    %v367 = vld [vmem:[%s33 + $0xc] sm:$0xf]
    %v368 = vld [vmem:[%s33 + $0x10] sm:$0xf]
    %v369 = vld [vmem:[%s33 + $0x14] sm:$0xf]
    %v370 = vld [vmem:[%s33 + $0x18] sm:$0xf]
    %v371 = vld [vmem:[%s33 + $0x1c] sm:$0xf]
    %v372 = vld [vmem:[%s35] sm:$0x1]
    %v373 = vld [vmem:[%s37] sm:$0x1]
    %v374 = vld [vmem:[%s39] sm:$0x1]
    %v375 = vpack.c.bf16 %v319, %v318
    %v377 = vlaneseq
    %v378 = vshrl.u32 %v377, 7
    %v379 = vsub.s32 0, %v378
    %v380 = vrot.slane %v351, %v379
    %v386 = vunpack.c.l.b16 %v347
    %v387 = vunpack.c.l.b16 %v348
    %v388 = vunpack.c.l.b16 %v349
    %v389 = vunpack.c.l.b16 %v350
    %v390 = vpack.c.b16 %v387, %v386
    %v391 = vpack.c.b16 %v389, %v388
    %v395 = vsel %vm276, %v375, 0
    %397 = vmatprep.subr.bf16.mxu0 0
    %398 = vmatpush1.bf16.msra.mxu0 %v390
    %399 = vmatprep.subr.bf16.mxu0 0
    %400 = vmatpush1.bf16.msra.mxu0 %v391
    %401 = vmatprep.subr.bf16.mxu0 0
    %402 = vmatpush1.bf16.msra.mxu0 0
    %403 = vmatprep.subr.bf16.mxu0 0
    %404 = vmatpush1.bf16.msra.mxu0 0
    %405 = vmatprep.subr.bf16.mxu0 0
    %406 = vmatpush1.bf16.msra.mxu0 0
    %407 = vmatprep.subr.bf16.mxu0 0
    %408 = vmatpush1.bf16.msra.mxu0 0
    %409 = vmatprep.subr.bf16.mxu0 0
    %410 = vmatpush1.bf16.msra.mxu0 0
    %411 = vmatprep.subr.bf16.mxu0 0
    %412 = vmatpush1.bf16.msra.mxu0 0
    %413 = vmatprep.subr.bf16.mxu0 0
    %414 = vmatpush1.bf16.msra.mxu0 0
    %415 = vmatprep.subr.bf16.mxu0 0
    %416 = vmatpush1.bf16.msra.mxu0 0
    %417 = vmatprep.subr.bf16.mxu0 0
    %418 = vmatpush1.bf16.msra.mxu0 0
    %419 = vmatprep.subr.bf16.mxu0 0
    %420 = vmatpush1.bf16.msra.mxu0 0
    %421 = vmatprep.subr.bf16.mxu0 0
    %422 = vmatpush1.bf16.msra.mxu0 0
    %423 = vmatprep.subr.bf16.mxu0 0
    %424 = vmatpush1.bf16.msra.mxu0 0
    %425 = vmatprep.subr.bf16.mxu0 0
    %426 = vmatpush1.bf16.msra.mxu0 0
    %427 = vmatprep.subr.bf16.mxu0 0
    %428 = vmatpush1.bf16.msra.mxu0 0
    %429 = vmatprep.mubr.bf16.mxu0 0
    %430 = vmatmul.mubr.bf16.gmra.mrb[0].mxu0 %v395
    %v431 = vpop.f32.mrb[0].mxu0
    %v432 = vadd.f32 %v380, %v431
    %v433 = vpop.f32.mrb[0].mxu0
    %v434 = vpop.f32.mrb[0].mxu0
    %v435 = vadd.f32 %v380, %v434
    %v436 = vpop.f32.mrb[0].mxu0
    %437 = vdwg.mxu0
    %v438 = vpack.c.bf16 %v432, %v432
    %v439 = vpack.c.bf16 %v435, %v435
    %441 = vrot.lane.b32.xlu0 %v438, 96
    %v442 = vpop.permute.xlu0 %441
    %vm443 = vcmask 64512
    %v445 = vsel %vm443, %v438, 0
    %v448 = vsel %vm443, %v442, 0
    %450 = vmatprep.subr.bf16.mxu0 0
    %451 = vmatpush1.bf16.xpose.msra.mxu0 %v448
    %452 = vmatprep.subr.bf16.mxu0 0
    %453 = vmatpush1.bf16.xpose.msra.mxu0 0
    %454 = vmatprep.subr.bf16.mxu0 0
    %455 = vmatpush1.bf16.xpose.msra.mxu0 0
    %456 = vmatprep.subr.bf16.mxu0 0
    %457 = vmatpush1.bf16.xpose.msra.mxu0 0
    %458 = vmatprep.subr.bf16.mxu0 0
    %459 = vmatpush1.bf16.xpose.msra.mxu0 0
    %460 = vmatprep.subr.bf16.mxu0 0
    %461 = vmatpush1.bf16.xpose.msra.mxu0 0
    %462 = vmatprep.subr.bf16.mxu0 0
    %463 = vmatpush1.bf16.xpose.msra.mxu0 0
    %464 = vmatprep.subr.bf16.mxu0 0
    %465 = vmatpush1.bf16.xpose.msra.mxu0 0
    %466 = vmatprep.subr.bf16.mxu0 0
    %467 = vmatpush1.bf16.xpose.msra.mxu0 0
    %468 = vmatprep.subr.bf16.mxu0 0
    %469 = vmatpush1.bf16.xpose.msra.mxu0 0
    %470 = vmatprep.subr.bf16.mxu0 0
    %471 = vmatpush1.bf16.xpose.msra.mxu0 0
    %472 = vmatprep.subr.bf16.mxu0 0
    %473 = vmatpush1.bf16.xpose.msra.mxu0 0
    %474 = vmatprep.subr.bf16.mxu0 0
    %475 = vmatpush1.bf16.xpose.msra.mxu0 0
    %476 = vmatprep.subr.bf16.mxu0 0
    %477 = vmatpush1.bf16.xpose.msra.mxu0 0
    %478 = vmatprep.subr.bf16.mxu0 0
    %479 = vmatpush1.bf16.xpose.msra.mxu0 0
    %480 = vmatprep.subr.bf16.mxu0 0
    %481 = vmatpush1.bf16.xpose.msra.mxu0 0
    %482 = vmatprep.mubr.bf16.mxu0 0
    %483 = vmatmul.mubr.bf16.gmra.mrb[0].mxu0 %v445
    %v484 = vpop.f32.mrb[0].mxu0
    %v485 = vadd.f32 0.0, %v484
    %v486 = vpop.f32.mrb[0].mxu0
    %v487 = vpop.f32.mrb[0].mxu0
    %v488 = vpop.f32.mrb[0].mxu0
    %489 = vdwg.mxu0
    %491 = vrot.lane.b32.xlu0 %v439, 96
    %v492 = vpop.permute.xlu0 %491
    %v494 = vsel %vm443, %v439, 0
    %v497 = vsel %vm443, %v492, 0
    %499 = vmatprep.subr.bf16.mxu0 0
    %500 = vmatpush1.bf16.xpose.msra.mxu0 %v497
    %501 = vmatprep.subr.bf16.mxu0 0
    %502 = vmatpush1.bf16.xpose.msra.mxu0 0
    %503 = vmatprep.subr.bf16.mxu0 0
    %504 = vmatpush1.bf16.xpose.msra.mxu0 0
    %505 = vmatprep.subr.bf16.mxu0 0
    %506 = vmatpush1.bf16.xpose.msra.mxu0 0
    %507 = vmatprep.subr.bf16.mxu0 0
    %508 = vmatpush1.bf16.xpose.msra.mxu0 0
    %509 = vmatprep.subr.bf16.mxu0 0
    %510 = vmatpush1.bf16.xpose.msra.mxu0 0
    %511 = vmatprep.subr.bf16.mxu0 0
    %512 = vmatpush1.bf16.xpose.msra.mxu0 0
    %513 = vmatprep.subr.bf16.mxu0 0
    %514 = vmatpush1.bf16.xpose.msra.mxu0 0
    %515 = vmatprep.subr.bf16.mxu0 0
    %516 = vmatpush1.bf16.xpose.msra.mxu0 0
    %517 = vmatprep.subr.bf16.mxu0 0
    %518 = vmatpush1.bf16.xpose.msra.mxu0 0
    %519 = vmatprep.subr.bf16.mxu0 0
    %520 = vmatpush1.bf16.xpose.msra.mxu0 0
    %521 = vmatprep.subr.bf16.mxu0 0
    %522 = vmatpush1.bf16.xpose.msra.mxu0 0
    %523 = vmatprep.subr.bf16.mxu0 0
    %524 = vmatpush1.bf16.xpose.msra.mxu0 0
    %525 = vmatprep.subr.bf16.mxu0 0
    %526 = vmatpush1.bf16.xpose.msra.mxu0 0
    %527 = vmatprep.subr.bf16.mxu0 0
    %528 = vmatpush1.bf16.xpose.msra.mxu0 0
    %529 = vmatprep.subr.bf16.mxu0 0
    %530 = vmatpush1.bf16.xpose.msra.mxu0 0
    %531 = vmatprep.mubr.bf16.mxu0 0
    %532 = vmatmul.mubr.bf16.gmra.mrb[0].mxu0 %v494
    %v533 = vpop.f32.mrb[0].mxu0
    %v534 = vadd.f32 0.0, %v533
    %v535 = vpop.f32.mrb[0].mxu0
    %v536 = vpop.f32.mrb[0].mxu0
    %v537 = vpop.f32.mrb[0].mxu0
    %538 = vdwg.mxu0
    %v539 = vmul.f32 %v485, 0.35355338
    %v540 = vmul.f32 %v534, 0.35355338
    %v541 = vlaneseq
    %v542 = vshrl.u32 %v541, 7
    %v543 = vsub.s32 0, %v542
    %v544 = vrot.slane %v339, %v543
    %v545 = vlaneseq
    %v546 = vshrl.u32 %v545, 7
    %v547 = vsub.s32 0, %v546
    %v548 = vrot.slane %v346, %v547
    %v551 = vadd.f32 %v539, %v544
    %v552 = vadd.f32 %v540, %v548
    %v553 = vsel %vm443, %v551, -inf
    %554 = vmax.xlane.f32.xlu0 %v553
    %v555 = vpop.xlane.xlu0 %554
    %v556 = vsel %vm443, %v552, -inf
    %557 = vmax.xlane.f32.xlu0 %v556
    %v558 = vpop.xlane.xlu0 %557
    %v559 = vsub.f32 %v551, %v555
    %v560 = vsub.f32 %v552, %v558
    %v561 = vmul.f32 %v559, 1.442695
    %v562 = vpow.pop %v561
    %v563 = vmul.f32 %v560, 1.442695
    %v564 = vpow.pop %v563
    %v565 = vsel %vm443, %v562, 0.0
    %566 = vadd.xlane.f32.xlu0 %v565
    %v567 = vpop.xlane.xlu0 %566
    %v568 = vsel %vm443, %v564, 0.0
    %569 = vadd.xlane.f32.xlu0 %v568
    %v570 = vpop.xlane.xlu0 %569
    %v571 = vrcp.pop %v567
    %v572 = vmul.f32 %v562, %v571
    %v573 = vrcp.pop %v570
    %v574 = vmul.f32 %v564, %v573
    %v575 = vpack.c.bf16 %v572, %v572
    %v576 = vpack.c.bf16 %v574, %v574
    %577 = vrot.lane.b32.xlu0 %v438, 64
    %v578 = vpop.permute.xlu0 %577
    %v580 = vsel %vm443, %v575, 0
    %v583 = vsel %vm183, %v578, 0
    %585 = vmatprep.subr.bf16.mxu0 0
    %586 = vmatpush1.bf16.msra.mxu0 %v583
    %587 = vmatprep.subr.bf16.mxu0 0
    %588 = vmatpush1.bf16.msra.mxu0 0
    %589 = vmatprep.subr.bf16.mxu0 0
    %590 = vmatpush1.bf16.msra.mxu0 0
    %591 = vmatprep.subr.bf16.mxu0 0
    %592 = vmatpush1.bf16.msra.mxu0 0
    %593 = vmatprep.subr.bf16.mxu0 0
    %594 = vmatpush1.bf16.msra.mxu0 0
    %595 = vmatprep.subr.bf16.mxu0 0
    %596 = vmatpush1.bf16.msra.mxu0 0
    %597 = vmatprep.subr.bf16.mxu0 0
    %598 = vmatpush1.bf16.msra.mxu0 0
    %599 = vmatprep.subr.bf16.mxu0 0
    %600 = vmatpush1.bf16.msra.mxu0 0
    %601 = vmatprep.subr.bf16.mxu0 0
    %602 = vmatpush1.bf16.msra.mxu0 0
    %603 = vmatprep.subr.bf16.mxu0 0
    %604 = vmatpush1.bf16.msra.mxu0 0
    %605 = vmatprep.subr.bf16.mxu0 0
    %606 = vmatpush1.bf16.msra.mxu0 0
    %607 = vmatprep.subr.bf16.mxu0 0
    %608 = vmatpush1.bf16.msra.mxu0 0
    %609 = vmatprep.subr.bf16.mxu0 0
    %610 = vmatpush1.bf16.msra.mxu0 0
    %611 = vmatprep.subr.bf16.mxu0 0
    %612 = vmatpush1.bf16.msra.mxu0 0
    %613 = vmatprep.subr.bf16.mxu0 0
    %614 = vmatpush1.bf16.msra.mxu0 0
    %615 = vmatprep.subr.bf16.mxu0 0
    %616 = vmatpush1.bf16.msra.mxu0 0
    %617 = vmatprep.mubr.bf16.mxu0 0
    %618 = vmatmul.mubr.bf16.gmra.mrb[0].mxu0 %v580
    %v619 = vpop.f32.mrb[0].mxu0
    %v620 = vadd.f32 0.0, %v619
    %v621 = vpop.f32.mrb[0].mxu0
    %v622 = vpop.f32.mrb[0].mxu0
    %v623 = vpop.f32.mrb[0].mxu0
    %624 = vdwg.mxu0
    %625 = vrot.lane.b32.xlu0 %v439, 64
    %v626 = vpop.permute.xlu0 %625
    %v628 = vsel %vm443, %v576, 0
    %v631 = vsel %vm183, %v626, 0
    %633 = vmatprep.subr.bf16.mxu0 0
    %634 = vmatpush1.bf16.msra.mxu0 %v631
    %635 = vmatprep.subr.bf16.mxu0 0
    %636 = vmatpush1.bf16.msra.mxu0 0
    %637 = vmatprep.subr.bf16.mxu0 0
    %638 = vmatpush1.bf16.msra.mxu0 0
    %639 = vmatprep.subr.bf16.mxu0 0
    %640 = vmatpush1.bf16.msra.mxu0 0
    %641 = vmatprep.subr.bf16.mxu0 0
    %642 = vmatpush1.bf16.msra.mxu0 0
    %643 = vmatprep.subr.bf16.mxu0 0
    %644 = vmatpush1.bf16.msra.mxu0 0
    %645 = vmatprep.subr.bf16.mxu0 0
    %646 = vmatpush1.bf16.msra.mxu0 0
    %647 = vmatprep.subr.bf16.mxu0 0
    %648 = vmatpush1.bf16.msra.mxu0 0
    %649 = vmatprep.subr.bf16.mxu0 0
    %650 = vmatpush1.bf16.msra.mxu0 0
    %651 = vmatprep.subr.bf16.mxu0 0
    %652 = vmatpush1.bf16.msra.mxu0 0
    %653 = vmatprep.subr.bf16.mxu0 0
    %654 = vmatpush1.bf16.msra.mxu0 0
    %655 = vmatprep.subr.bf16.mxu0 0
    %656 = vmatpush1.bf16.msra.mxu0 0
    %657 = vmatprep.subr.bf16.mxu0 0
    %658 = vmatpush1.bf16.msra.mxu0 0
    %659 = vmatprep.subr.bf16.mxu0 0
    %660 = vmatpush1.bf16.msra.mxu0 0
    %661 = vmatprep.subr.bf16.mxu0 0
    %662 = vmatpush1.bf16.msra.mxu0 0
    %663 = vmatprep.subr.bf16.mxu0 0
    %664 = vmatpush1.bf16.msra.mxu0 0
    %665 = vmatprep.mubr.bf16.mxu0 0
    %666 = vmatmul.mubr.bf16.gmra.mrb[0].mxu0 %v628
    %v667 = vpop.f32.mrb[0].mxu0
    %v668 = vadd.f32 0.0, %v667
    %v669 = vpop.f32.mrb[0].mxu0
    %v670 = vpop.f32.mrb[0].mxu0
    %v671 = vpop.f32.mrb[0].mxu0
    %672 = vdwg.mxu0
    %673 = vrot.lane.b32.xlu0 %v438, 120
    %v674 = vpop.permute.xlu0 %673
    %675 = vrot.lane.b32.xlu0 %v438, 88
    %v676 = vpop.permute.xlu0 %675
    %v678 = vsel %vm443, %v674, 0
    %v681 = vsel %vm443, %v676, 0
    %683 = vmatprep.subr.bf16.mxu0 0
    %684 = vmatpush1.bf16.xpose.msra.mxu0 %v681
    %685 = vmatprep.subr.bf16.mxu0 0
    %686 = vmatpush1.bf16.xpose.msra.mxu0 0
    %687 = vmatprep.subr.bf16.mxu0 0
    %688 = vmatpush1.bf16.xpose.msra.mxu0 0
    %689 = vmatprep.subr.bf16.mxu0 0
    %690 = vmatpush1.bf16.xpose.msra.mxu0 0
    %691 = vmatprep.subr.bf16.mxu0 0
    %692 = vmatpush1.bf16.xpose.msra.mxu0 0
    %693 = vmatprep.subr.bf16.mxu0 0
    %694 = vmatpush1.bf16.xpose.msra.mxu0 0
    %695 = vmatprep.subr.bf16.mxu0 0
    %696 = vmatpush1.bf16.xpose.msra.mxu0 0
    %697 = vmatprep.subr.bf16.mxu0 0
    %698 = vmatpush1.bf16.xpose.msra.mxu0 0
    %699 = vmatprep.subr.bf16.mxu0 0
    %700 = vmatpush1.bf16.xpose.msra.mxu0 0
    %701 = vmatprep.subr.bf16.mxu0 0
    %702 = vmatpush1.bf16.xpose.msra.mxu0 0
    %703 = vmatprep.subr.bf16.mxu0 0
    %704 = vmatpush1.bf16.xpose.msra.mxu0 0
    %705 = vmatprep.subr.bf16.mxu0 0
    %706 = vmatpush1.bf16.xpose.msra.mxu0 0
    %707 = vmatprep.subr.bf16.mxu0 0
    %708 = vmatpush1.bf16.xpose.msra.mxu0 0
    %709 = vmatprep.subr.bf16.mxu0 0
    %710 = vmatpush1.bf16.xpose.msra.mxu0 0
    %711 = vmatprep.subr.bf16.mxu0 0
    %712 = vmatpush1.bf16.xpose.msra.mxu0 0
    %713 = vmatprep.subr.bf16.mxu0 0
    %714 = vmatpush1.bf16.xpose.msra.mxu0 0
    %715 = vmatprep.mubr.bf16.mxu0 0
    %716 = vmatmul.mubr.bf16.gmra.mrb[0].mxu0 %v678
    %v717 = vpop.f32.mrb[0].mxu0
    %v718 = vadd.f32 0.0, %v717
    %v719 = vpop.f32.mrb[0].mxu0
    %v720 = vpop.f32.mrb[0].mxu0
    %v721 = vpop.f32.mrb[0].mxu0
    %722 = vdwg.mxu0
    %723 = vrot.lane.b32.xlu0 %v439, 120
    %v724 = vpop.permute.xlu0 %723
    %725 = vrot.lane.b32.xlu0 %v439, 88
    %v726 = vpop.permute.xlu0 %725
    %v728 = vsel %vm443, %v724, 0
    %v731 = vsel %vm443, %v726, 0
    %733 = vmatprep.subr.bf16.mxu0 0
    %734 = vmatpush1.bf16.xpose.msra.mxu0 %v731
    %735 = vmatprep.subr.bf16.mxu0 0
    %736 = vmatpush1.bf16.xpose.msra.mxu0 0
    %737 = vmatprep.subr.bf16.mxu0 0
    %738 = vmatpush1.bf16.xpose.msra.mxu0 0
    %739 = vmatprep.subr.bf16.mxu0 0
    %740 = vmatpush1.bf16.xpose.msra.mxu0 0
    %741 = vmatprep.subr.bf16.mxu0 0
    %742 = vmatpush1.bf16.xpose.msra.mxu0 0
    %743 = vmatprep.subr.bf16.mxu0 0
    %744 = vmatpush1.bf16.xpose.msra.mxu0 0
    %745 = vmatprep.subr.bf16.mxu0 0
    %746 = vmatpush1.bf16.xpose.msra.mxu0 0
    %747 = vmatprep.subr.bf16.mxu0 0
    %748 = vmatpush1.bf16.xpose.msra.mxu0 0
    %749 = vmatprep.subr.bf16.mxu0 0
    %750 = vmatpush1.bf16.xpose.msra.mxu0 0
    %751 = vmatprep.subr.bf16.mxu0 0
    %752 = vmatpush1.bf16.xpose.msra.mxu0 0
    %753 = vmatprep.subr.bf16.mxu0 0
    %754 = vmatpush1.bf16.xpose.msra.mxu0 0
    %755 = vmatprep.subr.bf16.mxu0 0
    %756 = vmatpush1.bf16.xpose.msra.mxu0 0
    %757 = vmatprep.subr.bf16.mxu0 0
    %758 = vmatpush1.bf16.xpose.msra.mxu0 0
    %759 = vmatprep.subr.bf16.mxu0 0
    %760 = vmatpush1.bf16.xpose.msra.mxu0 0
    %761 = vmatprep.subr.bf16.mxu0 0
    %762 = vmatpush1.bf16.xpose.msra.mxu0 0
    %763 = vmatprep.subr.bf16.mxu0 0
    %764 = vmatpush1.bf16.xpose.msra.mxu0 0
    %765 = vmatprep.mubr.bf16.mxu0 0
    %766 = vmatmul.mubr.bf16.gmra.mrb[0].mxu0 %v728
    %v767 = vpop.f32.mrb[0].mxu0
    %v768 = vadd.f32 0.0, %v767
    %v769 = vpop.f32.mrb[0].mxu0
    %v770 = vpop.f32.mrb[0].mxu0
    %v771 = vpop.f32.mrb[0].mxu0
    %772 = vdwg.mxu0
    %v773 = vmul.f32 %v718, 0.35355338
    %v774 = vmul.f32 %v768, 0.35355338
    %v775 = vadd.f32 %v773, %v544
    %v776 = vadd.f32 %v774, %v548
    %v777 = vsel %vm443, %v775, -inf
    %778 = vmax.xlane.f32.xlu0 %v777
    %v779 = vpop.xlane.xlu0 %778
    %v780 = vsel %vm443, %v776, -inf
    %781 = vmax.xlane.f32.xlu0 %v780
    %v782 = vpop.xlane.xlu0 %781
    %v783 = vsub.f32 %v775, %v779
    %v784 = vsub.f32 %v776, %v782
    %v785 = vmul.f32 %v783, 1.442695
    %v786 = vpow.pop %v785
    %v787 = vmul.f32 %v784, 1.442695
    %v788 = vpow.pop %v787
    %v789 = vsel %vm443, %v786, 0.0
    %790 = vadd.xlane.f32.xlu0 %v789
    %v791 = vpop.xlane.xlu0 %790
    %v792 = vsel %vm443, %v788, 0.0
    %793 = vadd.xlane.f32.xlu0 %v792
    %v794 = vpop.xlane.xlu0 %793
    %v795 = vrcp.pop %v791
    %v796 = vmul.f32 %v786, %v795
    %v797 = vrcp.pop %v794
    %v798 = vmul.f32 %v788, %v797
    %v799 = vpack.c.bf16 %v796, %v796
    %v800 = vpack.c.bf16 %v798, %v798
    %801 = vrot.lane.b32.xlu0 %v438, 56
    %v802 = vpop.permute.xlu0 %801
    %v804 = vsel %vm443, %v799, 0
    %v807 = vsel %vm183, %v802, 0
    %809 = vmatprep.subr.bf16.mxu0 0
    %810 = vmatpush1.bf16.msra.mxu0 %v807
    %811 = vmatprep.subr.bf16.mxu0 0
    %812 = vmatpush1.bf16.msra.mxu0 0
    %813 = vmatprep.subr.bf16.mxu0 0
    %814 = vmatpush1.bf16.msra.mxu0 0
    %815 = vmatprep.subr.bf16.mxu0 0
    %816 = vmatpush1.bf16.msra.mxu0 0
    %817 = vmatprep.subr.bf16.mxu0 0
    %818 = vmatpush1.bf16.msra.mxu0 0
    %819 = vmatprep.subr.bf16.mxu0 0
    %820 = vmatpush1.bf16.msra.mxu0 0
    %821 = vmatprep.subr.bf16.mxu0 0
    %822 = vmatpush1.bf16.msra.mxu0 0
    %823 = vmatprep.subr.bf16.mxu0 0
    %824 = vmatpush1.bf16.msra.mxu0 0
    %825 = vmatprep.subr.bf16.mxu0 0
    %826 = vmatpush1.bf16.msra.mxu0 0
    %827 = vmatprep.subr.bf16.mxu0 0
    %828 = vmatpush1.bf16.msra.mxu0 0
    %829 = vmatprep.subr.bf16.mxu0 0
    %830 = vmatpush1.bf16.msra.mxu0 0
    %831 = vmatprep.subr.bf16.mxu0 0
    %832 = vmatpush1.bf16.msra.mxu0 0
    %833 = vmatprep.subr.bf16.mxu0 0
    %834 = vmatpush1.bf16.msra.mxu0 0
    %835 = vmatprep.subr.bf16.mxu0 0
    %836 = vmatpush1.bf16.msra.mxu0 0
    %837 = vmatprep.subr.bf16.mxu0 0
    %838 = vmatpush1.bf16.msra.mxu0 0
    %839 = vmatprep.subr.bf16.mxu0 0
    %840 = vmatpush1.bf16.msra.mxu0 0
    %841 = vmatprep.mubr.bf16.mxu0 0
    %842 = vmatmul.mubr.bf16.gmra.mrb[0].mxu0 %v804
    %v843 = vpop.f32.mrb[0].mxu0
    %v844 = vadd.f32 0.0, %v843
    %v845 = vpop.f32.mrb[0].mxu0
    %v846 = vpop.f32.mrb[0].mxu0
    %v847 = vpop.f32.mrb[0].mxu0
    %848 = vdwg.mxu0
    %849 = vrot.lane.b32.xlu0 %v439, 56
    %v850 = vpop.permute.xlu0 %849
    %v852 = vsel %vm443, %v800, 0
    %v855 = vsel %vm183, %v850, 0
    %857 = vmatprep.subr.bf16.mxu0 0
    %858 = vmatpush1.bf16.msra.mxu0 %v855
    %859 = vmatprep.subr.bf16.mxu0 0
    %860 = vmatpush1.bf16.msra.mxu0 0
    %861 = vmatprep.subr.bf16.mxu0 0
    %862 = vmatpush1.bf16.msra.mxu0 0
    %863 = vmatprep.subr.bf16.mxu0 0
    %864 = vmatpush1.bf16.msra.mxu0 0
    %865 = vmatprep.subr.bf16.mxu0 0
    %866 = vmatpush1.bf16.msra.mxu0 0
    %867 = vmatprep.subr.bf16.mxu0 0
    %868 = vmatpush1.bf16.msra.mxu0 0
    %869 = vmatprep.subr.bf16.mxu0 0
    %870 = vmatpush1.bf16.msra.mxu0 0
    %871 = vmatprep.subr.bf16.mxu0 0
    %872 = vmatpush1.bf16.msra.mxu0 0
    %873 = vmatprep.subr.bf16.mxu0 0
    %874 = vmatpush1.bf16.msra.mxu0 0
    %875 = vmatprep.subr.bf16.mxu0 0
    %876 = vmatpush1.bf16.msra.mxu0 0
    %877 = vmatprep.subr.bf16.mxu0 0
    %878 = vmatpush1.bf16.msra.mxu0 0
    %879 = vmatprep.subr.bf16.mxu0 0
    %880 = vmatpush1.bf16.msra.mxu0 0
    %881 = vmatprep.subr.bf16.mxu0 0
    %882 = vmatpush1.bf16.msra.mxu0 0
    %883 = vmatprep.subr.bf16.mxu0 0
    %884 = vmatpush1.bf16.msra.mxu0 0
    %885 = vmatprep.subr.bf16.mxu0 0
    %886 = vmatpush1.bf16.msra.mxu0 0
    %887 = vmatprep.subr.bf16.mxu0 0
    %888 = vmatpush1.bf16.msra.mxu0 0
    %889 = vmatprep.mubr.bf16.mxu0 0
    %890 = vmatmul.mubr.bf16.gmra.mrb[0].mxu0 %v852
    %v891 = vpop.f32.mrb[0].mxu0
    %v892 = vadd.f32 0.0, %v891
    %v893 = vpop.f32.mrb[0].mxu0
    %v894 = vpop.f32.mrb[0].mxu0
    %v895 = vpop.f32.mrb[0].mxu0
    %896 = vdwg.mxu0
    %897 = vrot.lane.b32.xlu0 %v438, 112
    %v898 = vpop.permute.xlu0 %897
    %899 = vrot.lane.b32.xlu0 %v438, 80
    %v900 = vpop.permute.xlu0 %899
    %v902 = vsel %vm443, %v898, 0
    %v905 = vsel %vm443, %v900, 0
    %907 = vmatprep.subr.bf16.mxu0 0
    %908 = vmatpush1.bf16.xpose.msra.mxu0 %v905
    %909 = vmatprep.subr.bf16.mxu0 0
    %910 = vmatpush1.bf16.xpose.msra.mxu0 0
    %911 = vmatprep.subr.bf16.mxu0 0
    %912 = vmatpush1.bf16.xpose.msra.mxu0 0
    %913 = vmatprep.subr.bf16.mxu0 0
    %914 = vmatpush1.bf16.xpose.msra.mxu0 0
    %915 = vmatprep.subr.bf16.mxu0 0
    %916 = vmatpush1.bf16.xpose.msra.mxu0 0
    %917 = vmatprep.subr.bf16.mxu0 0
    %918 = vmatpush1.bf16.xpose.msra.mxu0 0
    %919 = vmatprep.subr.bf16.mxu0 0
    %920 = vmatpush1.bf16.xpose.msra.mxu0 0
    %921 = vmatprep.subr.bf16.mxu0 0
    %922 = vmatpush1.bf16.xpose.msra.mxu0 0
    %923 = vmatprep.subr.bf16.mxu0 0
    %924 = vmatpush1.bf16.xpose.msra.mxu0 0
    %925 = vmatprep.subr.bf16.mxu0 0
    %926 = vmatpush1.bf16.xpose.msra.mxu0 0
    %927 = vmatprep.subr.bf16.mxu0 0
    %928 = vmatpush1.bf16.xpose.msra.mxu0 0
    %929 = vmatprep.subr.bf16.mxu0 0
    %930 = vmatpush1.bf16.xpose.msra.mxu0 0
    %931 = vmatprep.subr.bf16.mxu0 0
    %932 = vmatpush1.bf16.xpose.msra.mxu0 0
    %933 = vmatprep.subr.bf16.mxu0 0
    %934 = vmatpush1.bf16.xpose.msra.mxu0 0
    %935 = vmatprep.subr.bf16.mxu0 0
    %936 = vmatpush1.bf16.xpose.msra.mxu0 0
    %937 = vmatprep.subr.bf16.mxu0 0
    %938 = vmatpush1.bf16.xpose.msra.mxu0 0
    %939 = vmatprep.mubr.bf16.mxu0 0
    %940 = vmatmul.mubr.bf16.gmra.mrb[0].mxu0 %v902
    %v941 = vpop.f32.mrb[0].mxu0
    %v942 = vadd.f32 0.0, %v941
    %v943 = vpop.f32.mrb[0].mxu0
    %v944 = vpop.f32.mrb[0].mxu0
    %v945 = vpop.f32.mrb[0].mxu0
    %946 = vdwg.mxu0
    %947 = vrot.lane.b32.xlu0 %v439, 112
    %v948 = vpop.permute.xlu0 %947
    %949 = vrot.lane.b32.xlu0 %v439, 80
    %v950 = vpop.permute.xlu0 %949
    %v952 = vsel %vm443, %v948, 0
    %v955 = vsel %vm443, %v950, 0
    %957 = vmatprep.subr.bf16.mxu0 0
    %958 = vmatpush1.bf16.xpose.msra.mxu0 %v955
    %959 = vmatprep.subr.bf16.mxu0 0
    %960 = vmatpush1.bf16.xpose.msra.mxu0 0
    %961 = vmatprep.subr.bf16.mxu0 0
    %962 = vmatpush1.bf16.xpose.msra.mxu0 0
    %963 = vmatprep.subr.bf16.mxu0 0
    %964 = vmatpush1.bf16.xpose.msra.mxu0 0
    %965 = vmatprep.subr.bf16.mxu0 0
    %966 = vmatpush1.bf16.xpose.msra.mxu0 0
    %967 = vmatprep.subr.bf16.mxu0 0
    %968 = vmatpush1.bf16.xpose.msra.mxu0 0
    %969 = vmatprep.subr.bf16.mxu0 0
    %970 = vmatpush1.bf16.xpose.msra.mxu0 0
    %971 = vmatprep.subr.bf16.mxu0 0
    %972 = vmatpush1.bf16.xpose.msra.mxu0 0
    %973 = vmatprep.subr.bf16.mxu0 0
    %974 = vmatpush1.bf16.xpose.msra.mxu0 0
    %975 = vmatprep.subr.bf16.mxu0 0
    %976 = vmatpush1.bf16.xpose.msra.mxu0 0
    %977 = vmatprep.subr.bf16.mxu0 0
    %978 = vmatpush1.bf16.xpose.msra.mxu0 0
    %979 = vmatprep.subr.bf16.mxu0 0
    %980 = vmatpush1.bf16.xpose.msra.mxu0 0
    %981 = vmatprep.subr.bf16.mxu0 0
    %982 = vmatpush1.bf16.xpose.msra.mxu0 0
    %983 = vmatprep.subr.bf16.mxu0 0
    %984 = vmatpush1.bf16.xpose.msra.mxu0 0
    %985 = vmatprep.subr.bf16.mxu0 0
    %986 = vmatpush1.bf16.xpose.msra.mxu0 0
    %987 = vmatprep.subr.bf16.mxu0 0
    %988 = vmatpush1.bf16.xpose.msra.mxu0 0
    %989 = vmatprep.mubr.bf16.mxu0 0
    %990 = vmatmul.mubr.bf16.gmra.mrb[0].mxu0 %v952
    %v991 = vpop.f32.mrb[0].mxu0
    %v992 = vadd.f32 0.0, %v991
    %v993 = vpop.f32.mrb[0].mxu0
    %v994 = vpop.f32.mrb[0].mxu0
    %v995 = vpop.f32.mrb[0].mxu0
    %996 = vdwg.mxu0
    %v997 = vmul.f32 %v942, 0.35355338
    %v998 = vmul.f32 %v992, 0.35355338
    %v999 = vadd.f32 %v997, %v544
    %v1000 = vadd.f32 %v998, %v548
    %v1001 = vsel %vm443, %v999, -inf
    %1002 = vmax.xlane.f32.xlu0 %v1001
    %v1003 = vpop.xlane.xlu0 %1002
    %v1004 = vsel %vm443, %v1000, -inf
    %1005 = vmax.xlane.f32.xlu0 %v1004
    %v1006 = vpop.xlane.xlu0 %1005
    %v1007 = vsub.f32 %v999, %v1003
    %v1008 = vsub.f32 %v1000, %v1006
    %v1009 = vmul.f32 %v1007, 1.442695
    %v1010 = vpow.pop %v1009
    %v1011 = vmul.f32 %v1008, 1.442695
    %v1012 = vpow.pop %v1011
    %v1013 = vsel %vm443, %v1010, 0.0
    %1014 = vadd.xlane.f32.xlu0 %v1013
    %v1015 = vpop.xlane.xlu0 %1014
    %v1016 = vsel %vm443, %v1012, 0.0
    %1017 = vadd.xlane.f32.xlu0 %v1016
    %v1018 = vpop.xlane.xlu0 %1017
    %v1019 = vrcp.pop %v1015
    %v1020 = vmul.f32 %v1010, %v1019
    %v1021 = vrcp.pop %v1018
    %v1022 = vmul.f32 %v1012, %v1021
    %v1023 = vpack.c.bf16 %v1020, %v1020
    %v1024 = vpack.c.bf16 %v1022, %v1022
    %1025 = vrot.lane.b32.xlu0 %v438, 48
    %v1026 = vpop.permute.xlu0 %1025
    %v1028 = vsel %vm443, %v1023, 0
    %v1031 = vsel %vm183, %v1026, 0
    %1033 = vmatprep.subr.bf16.mxu0 0
    %1034 = vmatpush1.bf16.msra.mxu0 %v1031
    %1035 = vmatprep.subr.bf16.mxu0 0
    %1036 = vmatpush1.bf16.msra.mxu0 0
    %1037 = vmatprep.subr.bf16.mxu0 0
    %1038 = vmatpush1.bf16.msra.mxu0 0
    %1039 = vmatprep.subr.bf16.mxu0 0
    %1040 = vmatpush1.bf16.msra.mxu0 0
    %1041 = vmatprep.subr.bf16.mxu0 0
    %1042 = vmatpush1.bf16.msra.mxu0 0
    %1043 = vmatprep.subr.bf16.mxu0 0
    %1044 = vmatpush1.bf16.msra.mxu0 0
    %1045 = vmatprep.subr.bf16.mxu0 0
    %1046 = vmatpush1.bf16.msra.mxu0 0
    %1047 = vmatprep.subr.bf16.mxu0 0
    %1048 = vmatpush1.bf16.msra.mxu0 0
    %1049 = vmatprep.subr.bf16.mxu0 0
    %1050 = vmatpush1.bf16.msra.mxu0 0
    %1051 = vmatprep.subr.bf16.mxu0 0
    %1052 = vmatpush1.bf16.msra.mxu0 0
    %1053 = vmatprep.subr.bf16.mxu0 0
    %1054 = vmatpush1.bf16.msra.mxu0 0
    %1055 = vmatprep.subr.bf16.mxu0 0
    %1056 = vmatpush1.bf16.msra.mxu0 0
    %1057 = vmatprep.subr.bf16.mxu0 0
    %1058 = vmatpush1.bf16.msra.mxu0 0
    %1059 = vmatprep.subr.bf16.mxu0 0
    %1060 = vmatpush1.bf16.msra.mxu0 0
    %1061 = vmatprep.subr.bf16.mxu0 0
    %1062 = vmatpush1.bf16.msra.mxu0 0
    %1063 = vmatprep.subr.bf16.mxu0 0
    %1064 = vmatpush1.bf16.msra.mxu0 0
    %1065 = vmatprep.mubr.bf16.mxu0 0
    %1066 = vmatmul.mubr.bf16.gmra.mrb[0].mxu0 %v1028
    %v1067 = vpop.f32.mrb[0].mxu0
    %v1068 = vadd.f32 0.0, %v1067
    %v1069 = vpop.f32.mrb[0].mxu0
    %v1070 = vpop.f32.mrb[0].mxu0
    %v1071 = vpop.f32.mrb[0].mxu0
    %1072 = vdwg.mxu0
    %1073 = vrot.lane.b32.xlu0 %v439, 48
    %v1074 = vpop.permute.xlu0 %1073
    %v1076 = vsel %vm443, %v1024, 0
    %v1079 = vsel %vm183, %v1074, 0
    %1081 = vmatprep.subr.bf16.mxu0 0
    %1082 = vmatpush1.bf16.msra.mxu0 %v1079
    %1083 = vmatprep.subr.bf16.mxu0 0
    %1084 = vmatpush1.bf16.msra.mxu0 0
    %1085 = vmatprep.subr.bf16.mxu0 0
    %1086 = vmatpush1.bf16.msra.mxu0 0
    %1087 = vmatprep.subr.bf16.mxu0 0
    %1088 = vmatpush1.bf16.msra.mxu0 0
    %1089 = vmatprep.subr.bf16.mxu0 0
    %1090 = vmatpush1.bf16.msra.mxu0 0
    %1091 = vmatprep.subr.bf16.mxu0 0
    %1092 = vmatpush1.bf16.msra.mxu0 0
    %1093 = vmatprep.subr.bf16.mxu0 0
    %1094 = vmatpush1.bf16.msra.mxu0 0
    %1095 = vmatprep.subr.bf16.mxu0 0
    %1096 = vmatpush1.bf16.msra.mxu0 0
    %1097 = vmatprep.subr.bf16.mxu0 0
    %1098 = vmatpush1.bf16.msra.mxu0 0
    %1099 = vmatprep.subr.bf16.mxu0 0
    %1100 = vmatpush1.bf16.msra.mxu0 0
    %1101 = vmatprep.subr.bf16.mxu0 0
    %1102 = vmatpush1.bf16.msra.mxu0 0
    %1103 = vmatprep.subr.bf16.mxu0 0
    %1104 = vmatpush1.bf16.msra.mxu0 0
    %1105 = vmatprep.subr.bf16.mxu0 0
    %1106 = vmatpush1.bf16.msra.mxu0 0
    %1107 = vmatprep.subr.bf16.mxu0 0
    %1108 = vmatpush1.bf16.msra.mxu0 0
    %1109 = vmatprep.subr.bf16.mxu0 0
    %1110 = vmatpush1.bf16.msra.mxu0 0
    %1111 = vmatprep.subr.bf16.mxu0 0
    %1112 = vmatpush1.bf16.msra.mxu0 0
    %1113 = vmatprep.mubr.bf16.mxu0 0
    %1114 = vmatmul.mubr.bf16.gmra.mrb[0].mxu0 %v1076
    %v1115 = vpop.f32.mrb[0].mxu0
    %v1116 = vadd.f32 0.0, %v1115
    %v1117 = vpop.f32.mrb[0].mxu0
    %v1118 = vpop.f32.mrb[0].mxu0
    %v1119 = vpop.f32.mrb[0].mxu0
    %1120 = vdwg.mxu0
    %1121 = vrot.lane.b32.xlu0 %v438, 104
    %v1122 = vpop.permute.xlu0 %1121
    %1123 = vrot.lane.b32.xlu0 %v438, 72
    %v1124 = vpop.permute.xlu0 %1123
    %v1126 = vsel %vm443, %v1122, 0
    %v1129 = vsel %vm443, %v1124, 0
    %1131 = vmatprep.subr.bf16.mxu0 0
    %1132 = vmatpush1.bf16.xpose.msra.mxu0 %v1129
    %1133 = vmatprep.subr.bf16.mxu0 0
    %1134 = vmatpush1.bf16.xpose.msra.mxu0 0
    %1135 = vmatprep.subr.bf16.mxu0 0
    %1136 = vmatpush1.bf16.xpose.msra.mxu0 0
    %1137 = vmatprep.subr.bf16.mxu0 0
    %1138 = vmatpush1.bf16.xpose.msra.mxu0 0
    %1139 = vmatprep.subr.bf16.mxu0 0
    %1140 = vmatpush1.bf16.xpose.msra.mxu0 0
    %1141 = vmatprep.subr.bf16.mxu0 0
    %1142 = vmatpush1.bf16.xpose.msra.mxu0 0
    %1143 = vmatprep.subr.bf16.mxu0 0
    %1144 = vmatpush1.bf16.xpose.msra.mxu0 0
    %1145 = vmatprep.subr.bf16.mxu0 0
    %1146 = vmatpush1.bf16.xpose.msra.mxu0 0
    %1147 = vmatprep.subr.bf16.mxu0 0
    %1148 = vmatpush1.bf16.xpose.msra.mxu0 0
    %1149 = vmatprep.subr.bf16.mxu0 0
    %1150 = vmatpush1.bf16.xpose.msra.mxu0 0
    %1151 = vmatprep.subr.bf16.mxu0 0
    %1152 = vmatpush1.bf16.xpose.msra.mxu0 0
    %1153 = vmatprep.subr.bf16.mxu0 0
    %1154 = vmatpush1.bf16.xpose.msra.mxu0 0
    %1155 = vmatprep.subr.bf16.mxu0 0
    %1156 = vmatpush1.bf16.xpose.msra.mxu0 0
    %1157 = vmatprep.subr.bf16.mxu0 0
    %1158 = vmatpush1.bf16.xpose.msra.mxu0 0
    %1159 = vmatprep.subr.bf16.mxu0 0
    %1160 = vmatpush1.bf16.xpose.msra.mxu0 0
    %1161 = vmatprep.subr.bf16.mxu0 0
    %1162 = vmatpush1.bf16.xpose.msra.mxu0 0
    %1163 = vmatprep.mubr.bf16.mxu0 0
    %1164 = vmatmul.mubr.bf16.gmra.mrb[0].mxu0 %v1126
    %v1165 = vpop.f32.mrb[0].mxu0
    %v1166 = vadd.f32 0.0, %v1165
    %v1167 = vpop.f32.mrb[0].mxu0
    %v1168 = vpop.f32.mrb[0].mxu0
    %v1169 = vpop.f32.mrb[0].mxu0
    %1170 = vdwg.mxu0
    %1171 = vrot.lane.b32.xlu0 %v439, 104
    %v1172 = vpop.permute.xlu0 %1171
    %1173 = vrot.lane.b32.xlu0 %v439, 72
    %v1174 = vpop.permute.xlu0 %1173
    %v1176 = vsel %vm443, %v1172, 0
    %v1179 = vsel %vm443, %v1174, 0
    %1181 = vmatprep.subr.bf16.mxu0 0
    %1182 = vmatpush1.bf16.xpose.msra.mxu0 %v1179
    %1183 = vmatprep.subr.bf16.mxu0 0
    %1184 = vmatpush1.bf16.xpose.msra.mxu0 0
    %1185 = vmatprep.subr.bf16.mxu0 0
    %1186 = vmatpush1.bf16.xpose.msra.mxu0 0
    %1187 = vmatprep.subr.bf16.mxu0 0
    %1188 = vmatpush1.bf16.xpose.msra.mxu0 0
    %1189 = vmatprep.subr.bf16.mxu0 0
    %1190 = vmatpush1.bf16.xpose.msra.mxu0 0
    %1191 = vmatprep.subr.bf16.mxu0 0
    %1192 = vmatpush1.bf16.xpose.msra.mxu0 0
    %1193 = vmatprep.subr.bf16.mxu0 0
    %1194 = vmatpush1.bf16.xpose.msra.mxu0 0
    %1195 = vmatprep.subr.bf16.mxu0 0
    %1196 = vmatpush1.bf16.xpose.msra.mxu0 0
    %1197 = vmatprep.subr.bf16.mxu0 0
    %1198 = vmatpush1.bf16.xpose.msra.mxu0 0
    %1199 = vmatprep.subr.bf16.mxu0 0
    %1200 = vmatpush1.bf16.xpose.msra.mxu0 0
    %1201 = vmatprep.subr.bf16.mxu0 0
    %1202 = vmatpush1.bf16.xpose.msra.mxu0 0
    %1203 = vmatprep.subr.bf16.mxu0 0
    %1204 = vmatpush1.bf16.xpose.msra.mxu0 0
    %1205 = vmatprep.subr.bf16.mxu0 0
    %1206 = vmatpush1.bf16.xpose.msra.mxu0 0
    %1207 = vmatprep.subr.bf16.mxu0 0
    %1208 = vmatpush1.bf16.xpose.msra.mxu0 0
    %1209 = vmatprep.subr.bf16.mxu0 0
    %1210 = vmatpush1.bf16.xpose.msra.mxu0 0
    %1211 = vmatprep.subr.bf16.mxu0 0
    %1212 = vmatpush1.bf16.xpose.msra.mxu0 0
    %1213 = vmatprep.mubr.bf16.mxu0 0
    %1214 = vmatmul.mubr.bf16.gmra.mrb[0].mxu0 %v1176
    %v1215 = vpop.f32.mrb[0].mxu0
    %v1216 = vadd.f32 0.0, %v1215
    %v1217 = vpop.f32.mrb[0].mxu0
    %v1218 = vpop.f32.mrb[0].mxu0
    %v1219 = vpop.f32.mrb[0].mxu0
    %1220 = vdwg.mxu0
    %v1221 = vmul.f32 %v1166, 0.35355338
    %v1222 = vmul.f32 %v1216, 0.35355338
    %v1223 = vadd.f32 %v1221, %v544
    %v1224 = vadd.f32 %v1222, %v548
    %v1225 = vsel %vm443, %v1223, -inf
    %1226 = vmax.xlane.f32.xlu0 %v1225
    %v1227 = vpop.xlane.xlu0 %1226
    %v1228 = vsel %vm443, %v1224, -inf
    %1229 = vmax.xlane.f32.xlu0 %v1228
    %v1230 = vpop.xlane.xlu0 %1229
    %v1231 = vsub.f32 %v1223, %v1227
    %v1232 = vsub.f32 %v1224, %v1230
    %v1233 = vmul.f32 %v1231, 1.442695
    %v1234 = vpow.pop %v1233
    %v1235 = vmul.f32 %v1232, 1.442695
    %v1236 = vpow.pop %v1235
    %v1237 = vsel %vm443, %v1234, 0.0
    %1238 = vadd.xlane.f32.xlu0 %v1237
    %v1239 = vpop.xlane.xlu0 %1238
    %v1240 = vsel %vm443, %v1236, 0.0
    %1241 = vadd.xlane.f32.xlu0 %v1240
    %v1242 = vpop.xlane.xlu0 %1241
    %v1243 = vrcp.pop %v1239
    %v1244 = vmul.f32 %v1234, %v1243
    %v1245 = vrcp.pop %v1242
    %v1246 = vmul.f32 %v1236, %v1245
    %v1247 = vpack.c.bf16 %v1244, %v1244
    %v1248 = vpack.c.bf16 %v1246, %v1246
    %1249 = vrot.lane.b32.xlu0 %v438, 40
    %v1250 = vpop.permute.xlu0 %1249
    %v1252 = vsel %vm443, %v1247, 0
    %v1255 = vsel %vm183, %v1250, 0
    %1257 = vmatprep.subr.bf16.mxu0 0
    %1258 = vmatpush1.bf16.msra.mxu0 %v1255
    %1259 = vmatprep.subr.bf16.mxu0 0
    %1260 = vmatpush1.bf16.msra.mxu0 0
    %1261 = vmatprep.subr.bf16.mxu0 0
    %1262 = vmatpush1.bf16.msra.mxu0 0
    %1263 = vmatprep.subr.bf16.mxu0 0
    %1264 = vmatpush1.bf16.msra.mxu0 0
    %1265 = vmatprep.subr.bf16.mxu0 0
    %1266 = vmatpush1.bf16.msra.mxu0 0
    %1267 = vmatprep.subr.bf16.mxu0 0
    %1268 = vmatpush1.bf16.msra.mxu0 0
    %1269 = vmatprep.subr.bf16.mxu0 0
    %1270 = vmatpush1.bf16.msra.mxu0 0
    %1271 = vmatprep.subr.bf16.mxu0 0
    %1272 = vmatpush1.bf16.msra.mxu0 0
    %1273 = vmatprep.subr.bf16.mxu0 0
    %1274 = vmatpush1.bf16.msra.mxu0 0
    %1275 = vmatprep.subr.bf16.mxu0 0
    %1276 = vmatpush1.bf16.msra.mxu0 0
    %1277 = vmatprep.subr.bf16.mxu0 0
    %1278 = vmatpush1.bf16.msra.mxu0 0
    %1279 = vmatprep.subr.bf16.mxu0 0
    %1280 = vmatpush1.bf16.msra.mxu0 0
    %1281 = vmatprep.subr.bf16.mxu0 0
    %1282 = vmatpush1.bf16.msra.mxu0 0
    %1283 = vmatprep.subr.bf16.mxu0 0
    %1284 = vmatpush1.bf16.msra.mxu0 0
    %1285 = vmatprep.subr.bf16.mxu0 0
    %1286 = vmatpush1.bf16.msra.mxu0 0
    %1287 = vmatprep.subr.bf16.mxu0 0
    %1288 = vmatpush1.bf16.msra.mxu0 0
    %1289 = vmatprep.mubr.bf16.mxu0 0
    %1290 = vmatmul.mubr.bf16.gmra.mrb[0].mxu0 %v1252
    %v1291 = vpop.f32.mrb[0].mxu0
    %v1292 = vadd.f32 0.0, %v1291
    %v1293 = vpop.f32.mrb[0].mxu0
    %v1294 = vpop.f32.mrb[0].mxu0
    %v1295 = vpop.f32.mrb[0].mxu0
    %1296 = vdwg.mxu0
    %1297 = vrot.lane.b32.xlu0 %v439, 40
    %v1298 = vpop.permute.xlu0 %1297
    %v1300 = vsel %vm443, %v1248, 0
    %v1303 = vsel %vm183, %v1298, 0
    %1305 = vmatprep.subr.bf16.mxu0 0
    %1306 = vmatpush1.bf16.msra.mxu0 %v1303
    %1307 = vmatprep.subr.bf16.mxu0 0
    %1308 = vmatpush1.bf16.msra.mxu0 0
    %1309 = vmatprep.subr.bf16.mxu0 0
    %1310 = vmatpush1.bf16.msra.mxu0 0
    %1311 = vmatprep.subr.bf16.mxu0 0
    %1312 = vmatpush1.bf16.msra.mxu0 0
    %1313 = vmatprep.subr.bf16.mxu0 0
    %1314 = vmatpush1.bf16.msra.mxu0 0
    %1315 = vmatprep.subr.bf16.mxu0 0
    %1316 = vmatpush1.bf16.msra.mxu0 0
    %1317 = vmatprep.subr.bf16.mxu0 0
    %1318 = vmatpush1.bf16.msra.mxu0 0
    %1319 = vmatprep.subr.bf16.mxu0 0
    %1320 = vmatpush1.bf16.msra.mxu0 0
    %1321 = vmatprep.subr.bf16.mxu0 0
    %1322 = vmatpush1.bf16.msra.mxu0 0
    %1323 = vmatprep.subr.bf16.mxu0 0
    %1324 = vmatpush1.bf16.msra.mxu0 0
    %1325 = vmatprep.subr.bf16.mxu0 0
    %1326 = vmatpush1.bf16.msra.mxu0 0
    %1327 = vmatprep.subr.bf16.mxu0 0
    %1328 = vmatpush1.bf16.msra.mxu0 0
    %1329 = vmatprep.subr.bf16.mxu0 0
    %1330 = vmatpush1.bf16.msra.mxu0 0
    %1331 = vmatprep.subr.bf16.mxu0 0
    %1332 = vmatpush1.bf16.msra.mxu0 0
    %1333 = vmatprep.subr.bf16.mxu0 0
    %1334 = vmatpush1.bf16.msra.mxu0 0
    %1335 = vmatprep.subr.bf16.mxu0 0
    %1336 = vmatpush1.bf16.msra.mxu0 0
    %1337 = vmatprep.mubr.bf16.mxu0 0
    %1338 = vmatmul.mubr.bf16.gmra.mrb[0].mxu0 %v1300
    %v1339 = vpop.f32.mrb[0].mxu0
    %v1340 = vadd.f32 0.0, %v1339
    %v1341 = vpop.f32.mrb[0].mxu0
    %v1342 = vpop.f32.mrb[0].mxu0
    %v1343 = vpop.f32.mrb[0].mxu0
    %1344 = vdwg.mxu0
    %1347 = vrot.lane.b32.xlu0 %v844, 8
    %v1348 = vpop.permute.xlu0 %1347
    %1349 = vrot.lane.b32.xlu0 %v892, 8
    %v1350 = vpop.permute.xlu0 %1349
    %1355 = vrot.lane.b32.xlu0 %v1068, 16
    %v1356 = vpop.permute.xlu0 %1355
    %1357 = vrot.lane.b32.xlu0 %v1116, 16
    %v1358 = vpop.permute.xlu0 %1357
    %1363 = vrot.lane.b32.xlu0 %v1292, 24
    %v1364 = vpop.permute.xlu0 %1363
    %1365 = vrot.lane.b32.xlu0 %v1340, 24
    %v1366 = vpop.permute.xlu0 %1365
    %v1369 = vsel %vm443, %v620, %v1348
    %v1370 = vsel %vm443, %v668, %v1350
    %vm1371 = vcmask 130048
    %v1372 = vsel %vm1371, %v1369, %v1356
    %v1373 = vsel %vm1371, %v1370, %v1358
    %vm1374 = vcmask 195584
    %v1375 = vsel %vm1374, %v1372, %v1364
    %v1376 = vsel %vm1374, %v1373, %v1366
    %v1377 = vpack.c.bf16 %v1376, %v1375
    %v1379 = vlaneseq
    %v1380 = vshrl.u32 %v1379, 7
    %v1381 = vsub.s32 0, %v1380
    %v1382 = vrot.slane %v356, %v1381
    %v1388 = vunpack.c.l.b16 %v352
    %v1389 = vunpack.c.l.b16 %v353
    %v1390 = vunpack.c.l.b16 %v354
    %v1391 = vunpack.c.l.b16 %v355
    %v1392 = vpack.c.b16 %v1389, %v1388
    %v1393 = vpack.c.b16 %v1391, %v1390
    %v1397 = vsel %vm276, %v1377, 0
    %1399 = vmatprep.subr.bf16.mxu0 0
    %1400 = vmatpush1.bf16.msra.mxu0 %v1392
    %1401 = vmatprep.subr.bf16.mxu0 0
    %1402 = vmatpush1.bf16.msra.mxu0 %v1393
    %1403 = vmatprep.subr.bf16.mxu0 0
    %1404 = vmatpush1.bf16.msra.mxu0 0
    %1405 = vmatprep.subr.bf16.mxu0 0
    %1406 = vmatpush1.bf16.msra.mxu0 0
    %1407 = vmatprep.subr.bf16.mxu0 0
    %1408 = vmatpush1.bf16.msra.mxu0 0
    %1409 = vmatprep.subr.bf16.mxu0 0
    %1410 = vmatpush1.bf16.msra.mxu0 0
    %1411 = vmatprep.subr.bf16.mxu0 0
    %1412 = vmatpush1.bf16.msra.mxu0 0
    %1413 = vmatprep.subr.bf16.mxu0 0
    %1414 = vmatpush1.bf16.msra.mxu0 0
    %1415 = vmatprep.subr.bf16.mxu0 0
    %1416 = vmatpush1.bf16.msra.mxu0 0
    %1417 = vmatprep.subr.bf16.mxu0 0
    %1418 = vmatpush1.bf16.msra.mxu0 0
    %1419 = vmatprep.subr.bf16.mxu0 0
    %1420 = vmatpush1.bf16.msra.mxu0 0
    %1421 = vmatprep.subr.bf16.mxu0 0
    %1422 = vmatpush1.bf16.msra.mxu0 0
    %1423 = vmatprep.subr.bf16.mxu0 0
    %1424 = vmatpush1.bf16.msra.mxu0 0
    %1425 = vmatprep.subr.bf16.mxu0 0
    %1426 = vmatpush1.bf16.msra.mxu0 0
    %1427 = vmatprep.subr.bf16.mxu0 0
    %1428 = vmatpush1.bf16.msra.mxu0 0
    %1429 = vmatprep.subr.bf16.mxu0 0
    %1430 = vmatpush1.bf16.msra.mxu0 0
    %1431 = vmatprep.mubr.bf16.mxu0 0
    %1432 = vmatmul.mubr.bf16.gmra.mrb[0].mxu0 %v1397
    %v1433 = vpop.f32.mrb[0].mxu0
    %v1434 = vadd.f32 %v1382, %v1433
    %v1435 = vpop.f32.mrb[0].mxu0
    %v1436 = vpop.f32.mrb[0].mxu0
    %v1437 = vadd.f32 %v1382, %v1436
    %v1438 = vpop.f32.mrb[0].mxu0
    %1439 = vdwg.mxu0
    %v1440 = vadd.f32 %v1434, %v318
    %v1441 = vadd.f32 %v1437, %v319
    %v1442 = vsel %vm276, %v1440, 0.0
    %1443 = vadd.xlane.f32.xlu0 %v1442
    %v1444 = vpop.xlane.xlu0 %1443
    %v1445 = vsel %vm276, %v1441, 0.0
    %1446 = vadd.xlane.f32.xlu0 %v1445
    %v1447 = vpop.xlane.xlu0 %1446
    %v1448 = vmul.f32 %v1444, %v283
    %v1449 = vmul.f32 %v1447, %v283
    %v1450 = vsub.f32 %v1440, %v1448
    %v1451 = vsub.f32 %v1441, %v1449
    %v1452 = vmul.f32 %v1450, %v1450
    %v1453 = vmul.f32 %v1451, %v1451
    %v1454 = vsel %vm276, %v1452, 0.0
    %1455 = vadd.xlane.f32.xlu0 %v1454
    %v1456 = vpop.xlane.xlu0 %1455
    %v1457 = vsel %vm276, %v1453, 0.0
    %1458 = vadd.xlane.f32.xlu0 %v1457
    %v1459 = vpop.xlane.xlu0 %1458
    %v1460 = vmul.f32 %v1456, %v283
    %v1461 = vmul.f32 %v1459, %v283
    %v1462 = vadd.f32 %v1460, 1e-12
    %v1463 = vadd.f32 %v1461, 1e-12
    %v1464 = vrsqrt.pop %v1462
    %v1465 = vrsqrt.pop %v1463
    %v1466 = vmul.f32 %v1450, %v1464
    %v1467 = vmul.f32 %v1451, %v1465
    %v1469 = vlaneseq
    %v1470 = vshrl.u32 %v1469, 7
    %v1471 = vsub.s32 0, %v1470
    %v1472 = vrot.slane %v357, %v1471
    %v1474 = vmul.f32 %v1466, %v1472
    %v1475 = vmul.f32 %v1467, %v1472
    %v1477 = vlaneseq
    %v1478 = vshrl.u32 %v1477, 7
    %v1479 = vsub.s32 0, %v1478
    %v1480 = vrot.slane %v358, %v1479
    %v1482 = vadd.f32 %v1474, %v1480
    %v1483 = vadd.f32 %v1475, %v1480
    %v1484 = vpack.c.bf16 %v1483, %v1482
    %v1486 = vlaneseq
    %v1487 = vshrl.u32 %v1486, 7
    %v1488 = vsub.s32 0, %v1487
    %v1489 = vrot.slane %v363, %v1488
    %v1495 = vunpack.c.l.b16 %v359
    %v1496 = vunpack.c.l.b16 %v360
    %v1497 = vunpack.c.l.b16 %v361
    %v1498 = vunpack.c.l.b16 %v362
    %v1499 = vpack.c.b16 %v1496, %v1495
    %v1500 = vpack.c.b16 %v1498, %v1497
    %v1504 = vsel %vm276, %v1484, 0
    %1506 = vmatprep.subr.bf16.mxu0 0
    %1507 = vmatpush1.bf16.msra.mxu0 %v1499
    %1508 = vmatprep.subr.bf16.mxu0 0
    %1509 = vmatpush1.bf16.msra.mxu0 %v1500
    %1510 = vmatprep.subr.bf16.mxu0 0
    %1511 = vmatpush1.bf16.msra.mxu0 0
    %1512 = vmatprep.subr.bf16.mxu0 0
    %1513 = vmatpush1.bf16.msra.mxu0 0
    %1514 = vmatprep.subr.bf16.mxu0 0
    %1515 = vmatpush1.bf16.msra.mxu0 0
    %1516 = vmatprep.subr.bf16.mxu0 0
    %1517 = vmatpush1.bf16.msra.mxu0 0
    %1518 = vmatprep.subr.bf16.mxu0 0
    %1519 = vmatpush1.bf16.msra.mxu0 0
    %1520 = vmatprep.subr.bf16.mxu0 0
    %1521 = vmatpush1.bf16.msra.mxu0 0
    %1522 = vmatprep.subr.bf16.mxu0 0
    %1523 = vmatpush1.bf16.msra.mxu0 0
    %1524 = vmatprep.subr.bf16.mxu0 0
    %1525 = vmatpush1.bf16.msra.mxu0 0
    %1526 = vmatprep.subr.bf16.mxu0 0
    %1527 = vmatpush1.bf16.msra.mxu0 0
    %1528 = vmatprep.subr.bf16.mxu0 0
    %1529 = vmatpush1.bf16.msra.mxu0 0
    %1530 = vmatprep.subr.bf16.mxu0 0
    %1531 = vmatpush1.bf16.msra.mxu0 0
    %1532 = vmatprep.subr.bf16.mxu0 0
    %1533 = vmatpush1.bf16.msra.mxu0 0
    %1534 = vmatprep.subr.bf16.mxu0 0
    %1535 = vmatpush1.bf16.msra.mxu0 0
    %1536 = vmatprep.subr.bf16.mxu0 0
    %1537 = vmatpush1.bf16.msra.mxu0 0
    %1538 = vmatprep.mubr.bf16.mxu0 0
    %1539 = vmatmul.mubr.bf16.gmra.mrb[0].mxu0 %v1504
    %v1540 = vpop.f32.mrb[0].mxu0
    %v1541 = vadd.f32 %v1489, %v1540
    %v1542 = vpop.f32.mrb[0].mxu0
    %v1543 = vpop.f32.mrb[0].mxu0
    %v1544 = vadd.f32 %v1489, %v1543
    %v1545 = vpop.f32.mrb[0].mxu0
    %1546 = vdwg.mxu0
    %v1547 = vmul.f32 %v1541, 0.5
    %v1548 = vmul.f32 %v1544, 0.5
    %v1549 = vmul.f32 %v1541, 0.044715
    %v1550 = vmul.f32 %v1544, 0.044715
    %v1551 = vmul.f32 %v1549, %v1541
    %v1552 = vmul.f32 %v1550, %v1544
    %v1553 = vmul.f32 %v1551, %v1541
    %v1554 = vmul.f32 %v1552, %v1544
    %v1555 = vadd.f32 %v1541, %v1553
    %v1556 = vadd.f32 %v1544, %v1554
    %v1557 = vmul.f32 %v1555, 0.7978846
    %v1558 = vmul.f32 %v1556, 0.7978846
    %v1559 = vtanh.pop %v1557
    %v1560 = vtanh.pop %v1558
    %v1561 = vadd.f32 %v1559, 1.0
    %v1562 = vadd.f32 %v1560, 1.0
    %v1563 = vmul.f32 %v1547, %v1561
    %v1564 = vmul.f32 %v1548, %v1562
    %v1565 = vpack.c.bf16 %v1564, %v1563
    %v1567 = vlaneseq
    %v1568 = vshrl.u32 %v1567, 7
    %v1569 = vsub.s32 0, %v1568
    %v1570 = vrot.slane %v372, %v1569
    %v1580 = vunpack.c.l.b16 %v364
    %v1581 = vunpack.c.l.b16 %v365
    %v1582 = vunpack.c.l.b16 %v366
    %v1583 = vunpack.c.l.b16 %v367
    %v1584 = vunpack.c.l.b16 %v368
    %v1585 = vunpack.c.l.b16 %v369
    %v1586 = vunpack.c.l.b16 %v370
    %v1587 = vunpack.c.l.b16 %v371
    %v1588 = vpack.c.b16 %v1581, %v1580
    %v1589 = vpack.c.b16 %v1583, %v1582
    %v1590 = vpack.c.b16 %v1585, %v1584
    %v1591 = vpack.c.b16 %v1587, %v1586
    %vm1596 = vcmask 523264
    %v1598 = vsel %vm1596, %v1565, 0
    %1600 = vmatprep.subr.bf16.mxu0 0
    %1601 = vmatpush1.bf16.msra.mxu0 %v1588
    %1602 = vmatprep.subr.bf16.mxu0 0
    %1603 = vmatpush1.bf16.msra.mxu0 %v1589
    %1604 = vmatprep.subr.bf16.mxu0 0
    %1605 = vmatpush1.bf16.msra.mxu0 %v1590
    %1606 = vmatprep.subr.bf16.mxu0 0
    %1607 = vmatpush1.bf16.msra.mxu0 %v1591
    %1608 = vmatprep.subr.bf16.mxu0 0
    %1609 = vmatpush1.bf16.msra.mxu0 0
    %1610 = vmatprep.subr.bf16.mxu0 0
    %1611 = vmatpush1.bf16.msra.mxu0 0
    %1612 = vmatprep.subr.bf16.mxu0 0
    %1613 = vmatpush1.bf16.msra.mxu0 0
    %1614 = vmatprep.subr.bf16.mxu0 0
    %1615 = vmatpush1.bf16.msra.mxu0 0
    %1616 = vmatprep.subr.bf16.mxu0 0
    %1617 = vmatpush1.bf16.msra.mxu0 0
    %1618 = vmatprep.subr.bf16.mxu0 0
    %1619 = vmatpush1.bf16.msra.mxu0 0
    %1620 = vmatprep.subr.bf16.mxu0 0
    %1621 = vmatpush1.bf16.msra.mxu0 0
    %1622 = vmatprep.subr.bf16.mxu0 0
    %1623 = vmatpush1.bf16.msra.mxu0 0
    %1624 = vmatprep.subr.bf16.mxu0 0
    %1625 = vmatpush1.bf16.msra.mxu0 0
    %1626 = vmatprep.subr.bf16.mxu0 0
    %1627 = vmatpush1.bf16.msra.mxu0 0
    %1628 = vmatprep.subr.bf16.mxu0 0
    %1629 = vmatpush1.bf16.msra.mxu0 0
    %1630 = vmatprep.subr.bf16.mxu0 0
    %1631 = vmatpush1.bf16.msra.mxu0 0
    %1632 = vmatprep.mubr.bf16.mxu0 0
    %1633 = vmatmul.mubr.bf16.gmra.mrb[0].mxu0 %v1598
    %v1634 = vpop.f32.mrb[0].mxu0
    %v1635 = vadd.f32 %v1570, %v1634
    %v1636 = vpop.f32.mrb[0].mxu0
    %v1637 = vpop.f32.mrb[0].mxu0
    %v1638 = vadd.f32 %v1570, %v1637
    %v1639 = vpop.f32.mrb[0].mxu0
    %1640 = vdwg.mxu0
    %v1641 = vadd.f32 %v1635, %v1482
    %v1642 = vadd.f32 %v1638, %v1483
    %v1643 = vsel %vm276, %v1641, 0.0
    %1644 = vadd.xlane.f32.xlu0 %v1643
    %v1645 = vpop.xlane.xlu0 %1644
    %v1646 = vsel %vm276, %v1642, 0.0
    %1647 = vadd.xlane.f32.xlu0 %v1646
    %v1648 = vpop.xlane.xlu0 %1647
    %v1649 = vmul.f32 %v1645, %v283
    %v1650 = vmul.f32 %v1648, %v283
    %v1651 = vsub.f32 %v1641, %v1649
    %v1652 = vsub.f32 %v1642, %v1650
    %v1653 = vmul.f32 %v1651, %v1651
    %v1654 = vmul.f32 %v1652, %v1652
    %v1655 = vsel %vm276, %v1653, 0.0
    %1656 = vadd.xlane.f32.xlu0 %v1655
    %v1657 = vpop.xlane.xlu0 %1656
    %v1658 = vsel %vm276, %v1654, 0.0
    %1659 = vadd.xlane.f32.xlu0 %v1658
    %v1660 = vpop.xlane.xlu0 %1659
    %v1661 = vmul.f32 %v1657, %v283
    %v1662 = vmul.f32 %v1660, %v283
    %v1663 = vadd.f32 %v1661, 1e-12
    %v1664 = vadd.f32 %v1662, 1e-12
    %v1665 = vrsqrt.pop %v1663
    %v1666 = vrsqrt.pop %v1664
    %v1667 = vmul.f32 %v1651, %v1665
    %v1668 = vmul.f32 %v1652, %v1666
    %v1670 = vlaneseq
    %v1671 = vshrl.u32 %v1670, 7
    %v1672 = vsub.s32 0, %v1671
    %v1673 = vrot.slane %v373, %v1672
    %v1675 = vmul.f32 %v1667, %v1673
    %v1676 = vmul.f32 %v1668, %v1673
    %v1678 = vlaneseq
    %v1679 = vshrl.u32 %v1678, 7
    %v1680 = vsub.s32 0, %v1679
    %v1681 = vrot.slane %v374, %v1680
    %v1683 = vadd.f32 %v1675, %v1681
    %v1684 = vadd.f32 %v1676, %v1681
    %v1685 = vld [vmem:[%s41] sm:$0xf]
    %v1686 = vld [vmem:[%s41 + $0x4] sm:$0xf]
    %v1687 = vld [vmem:[%s41 + $0x8] sm:$0xf]
    %v1688 = vld [vmem:[%s41 + $0xc] sm:$0xf]
    %v1689 = vld [vmem:[%s43] sm:$0x1]
    %v1690 = vld [vmem:[%s45] sm:$0xf]
    %v1691 = vld [vmem:[%s45 + $0x4] sm:$0xf]
    %v1692 = vld [vmem:[%s45 + $0x8] sm:$0xf]
    %v1693 = vld [vmem:[%s45 + $0xc] sm:$0xf]
    %v1694 = vld [vmem:[%s47] sm:$0x1]
    %v1695 = vld [vmem:[%s49] sm:$0x1]
    %v1696 = vld [vmem:[%s51] sm:$0x1]
    %v1697 = vld [vmem:[%s53] sm:$0xf]
    %v1698 = vld [vmem:[%s53 + $0x4] sm:$0xf]
    %v1699 = vld [vmem:[%s53 + $0x8] sm:$0xf]
    %v1700 = vld [vmem:[%s53 + $0xc] sm:$0xf]
    %v1701 = vld [vmem:[%s55] sm:$0x1]
    %v1702 = vld [vmem:[%s57] sm:$0xf]
    %v1703 = vld [vmem:[%s57 + $0x4] sm:$0xf]
    %v1704 = vld [vmem:[%s57 + $0x8] sm:$0xf]
    %v1705 = vld [vmem:[%s57 + $0xc] sm:$0xf]
    %v1706 = vld [vmem:[%s57 + $0x10] sm:$0xf]
    %v1707 = vld [vmem:[%s57 + $0x14] sm:$0xf]
    %v1708 = vld [vmem:[%s57 + $0x18] sm:$0xf]
    %v1709 = vld [vmem:[%s57 + $0x1c] sm:$0xf]
    %v1710 = vld [vmem:[%s59] sm:$0x1]
    %v1711 = vld [vmem:[%s61] sm:$0x1]
    %v1712 = vld [vmem:[%s63] sm:$0x1]
    %v1713 = vpack.c.bf16 %v1684, %v1683
    %v1715 = vlaneseq
    %v1716 = vshrl.u32 %v1715, 7
    %v1717 = vsub.s32 0, %v1716
    %v1718 = vrot.slane %v1689, %v1717
    %v1724 = vunpack.c.l.b16 %v1685
    %v1725 = vunpack.c.l.b16 %v1686
    %v1726 = vunpack.c.l.b16 %v1687
    %v1727 = vunpack.c.l.b16 %v1688
    %v1728 = vpack.c.b16 %v1725, %v1724
    %v1729 = vpack.c.b16 %v1727, %v1726
    %v1733 = vsel %vm276, %v1713, 0
    %1735 = vmatprep.subr.bf16.mxu0 0
    %1736 = vmatpush1.bf16.msra.mxu0 %v1728
    %1737 = vmatprep.subr.bf16.mxu0 0
    %1738 = vmatpush1.bf16.msra.mxu0 %v1729
    %1739 = vmatprep.subr.bf16.mxu0 0
    %1740 = vmatpush1.bf16.msra.mxu0 0
    %1741 = vmatprep.subr.bf16.mxu0 0
    %1742 = vmatpush1.bf16.msra.mxu0 0
    %1743 = vmatprep.subr.bf16.mxu0 0
    %1744 = vmatpush1.bf16.msra.mxu0 0
    %1745 = vmatprep.subr.bf16.mxu0 0
    %1746 = vmatpush1.bf16.msra.mxu0 0
    %1747 = vmatprep.subr.bf16.mxu0 0
    %1748 = vmatpush1.bf16.msra.mxu0 0
    %1749 = vmatprep.subr.bf16.mxu0 0
    %1750 = vmatpush1.bf16.msra.mxu0 0
    %1751 = vmatprep.subr.bf16.mxu0 0
    %1752 = vmatpush1.bf16.msra.mxu0 0
    %1753 = vmatprep.subr.bf16.mxu0 0
    %1754 = vmatpush1.bf16.msra.mxu0 0
    %1755 = vmatprep.subr.bf16.mxu0 0
    %1756 = vmatpush1.bf16.msra.mxu0 0
    %1757 = vmatprep.subr.bf16.mxu0 0
    %1758 = vmatpush1.bf16.msra.mxu0 0
    %1759 = vmatprep.subr.bf16.mxu0 0
    %1760 = vmatpush1.bf16.msra.mxu0 0
    %1761 = vmatprep.subr.bf16.mxu0 0
    %1762 = vmatpush1.bf16.msra.mxu0 0
    %1763 = vmatprep.subr.bf16.mxu0 0
    %1764 = vmatpush1.bf16.msra.mxu0 0
    %1765 = vmatprep.subr.bf16.mxu0 0
    %1766 = vmatpush1.bf16.msra.mxu0 0
    %1767 = vmatprep.mubr.bf16.mxu0 0
    %1768 = vmatmul.mubr.bf16.gmra.mrb[0].mxu0 %v1733
    %v1769 = vpop.f32.mrb[0].mxu0
    %v1770 = vadd.f32 %v1718, %v1769
    %v1771 = vpop.f32.mrb[0].mxu0
    %v1772 = vpop.f32.mrb[0].mxu0
    %v1773 = vadd.f32 %v1718, %v1772
    %v1774 = vpop.f32.mrb[0].mxu0
    %1775 = vdwg.mxu0
    %v1776 = vpack.c.bf16 %v1770, %v1770
    %v1777 = vpack.c.bf16 %v1773, %v1773
    %1779 = vrot.lane.b32.xlu0 %v1776, 96
    %v1780 = vpop.permute.xlu0 %1779
    %v1782 = vsel %vm443, %v1776, 0
    %v1785 = vsel %vm443, %v1780, 0
    %1787 = vmatprep.subr.bf16.mxu0 0
    %1788 = vmatpush1.bf16.xpose.msra.mxu0 %v1785
    %1789 = vmatprep.subr.bf16.mxu0 0
    %1790 = vmatpush1.bf16.xpose.msra.mxu0 0
    %1791 = vmatprep.subr.bf16.mxu0 0
    %1792 = vmatpush1.bf16.xpose.msra.mxu0 0
    %1793 = vmatprep.subr.bf16.mxu0 0
    %1794 = vmatpush1.bf16.xpose.msra.mxu0 0
    %1795 = vmatprep.subr.bf16.mxu0 0
    %1796 = vmatpush1.bf16.xpose.msra.mxu0 0
    %1797 = vmatprep.subr.bf16.mxu0 0
    %1798 = vmatpush1.bf16.xpose.msra.mxu0 0
    %1799 = vmatprep.subr.bf16.mxu0 0
    %1800 = vmatpush1.bf16.xpose.msra.mxu0 0
    %1801 = vmatprep.subr.bf16.mxu0 0
    %1802 = vmatpush1.bf16.xpose.msra.mxu0 0
    %1803 = vmatprep.subr.bf16.mxu0 0
    %1804 = vmatpush1.bf16.xpose.msra.mxu0 0
    %1805 = vmatprep.subr.bf16.mxu0 0
    %1806 = vmatpush1.bf16.xpose.msra.mxu0 0
    %1807 = vmatprep.subr.bf16.mxu0 0
    %1808 = vmatpush1.bf16.xpose.msra.mxu0 0
    %1809 = vmatprep.subr.bf16.mxu0 0
    %1810 = vmatpush1.bf16.xpose.msra.mxu0 0
    %1811 = vmatprep.subr.bf16.mxu0 0
    %1812 = vmatpush1.bf16.xpose.msra.mxu0 0
    %1813 = vmatprep.subr.bf16.mxu0 0
    %1814 = vmatpush1.bf16.xpose.msra.mxu0 0
    %1815 = vmatprep.subr.bf16.mxu0 0
    %1816 = vmatpush1.bf16.xpose.msra.mxu0 0
    %1817 = vmatprep.subr.bf16.mxu0 0
    %1818 = vmatpush1.bf16.xpose.msra.mxu0 0
    %1819 = vmatprep.mubr.bf16.mxu0 0
    %1820 = vmatmul.mubr.bf16.gmra.mrb[0].mxu0 %v1782
    %v1821 = vpop.f32.mrb[0].mxu0
    %v1822 = vadd.f32 0.0, %v1821
    %v1823 = vpop.f32.mrb[0].mxu0
    %v1824 = vpop.f32.mrb[0].mxu0
    %v1825 = vpop.f32.mrb[0].mxu0
    %1826 = vdwg.mxu0
    %1828 = vrot.lane.b32.xlu0 %v1777, 96
    %v1829 = vpop.permute.xlu0 %1828
    %v1831 = vsel %vm443, %v1777, 0
    %v1834 = vsel %vm443, %v1829, 0
    %1836 = vmatprep.subr.bf16.mxu0 0
    %1837 = vmatpush1.bf16.xpose.msra.mxu0 %v1834
    %1838 = vmatprep.subr.bf16.mxu0 0
    %1839 = vmatpush1.bf16.xpose.msra.mxu0 0
    %1840 = vmatprep.subr.bf16.mxu0 0
    %1841 = vmatpush1.bf16.xpose.msra.mxu0 0
    %1842 = vmatprep.subr.bf16.mxu0 0
    %1843 = vmatpush1.bf16.xpose.msra.mxu0 0
    %1844 = vmatprep.subr.bf16.mxu0 0
    %1845 = vmatpush1.bf16.xpose.msra.mxu0 0
    %1846 = vmatprep.subr.bf16.mxu0 0
    %1847 = vmatpush1.bf16.xpose.msra.mxu0 0
    %1848 = vmatprep.subr.bf16.mxu0 0
    %1849 = vmatpush1.bf16.xpose.msra.mxu0 0
    %1850 = vmatprep.subr.bf16.mxu0 0
    %1851 = vmatpush1.bf16.xpose.msra.mxu0 0
    %1852 = vmatprep.subr.bf16.mxu0 0
    %1853 = vmatpush1.bf16.xpose.msra.mxu0 0
    %1854 = vmatprep.subr.bf16.mxu0 0
    %1855 = vmatpush1.bf16.xpose.msra.mxu0 0
    %1856 = vmatprep.subr.bf16.mxu0 0
    %1857 = vmatpush1.bf16.xpose.msra.mxu0 0
    %1858 = vmatprep.subr.bf16.mxu0 0
    %1859 = vmatpush1.bf16.xpose.msra.mxu0 0
    %1860 = vmatprep.subr.bf16.mxu0 0
    %1861 = vmatpush1.bf16.xpose.msra.mxu0 0
    %1862 = vmatprep.subr.bf16.mxu0 0
    %1863 = vmatpush1.bf16.xpose.msra.mxu0 0
    %1864 = vmatprep.subr.bf16.mxu0 0
    %1865 = vmatpush1.bf16.xpose.msra.mxu0 0
    %1866 = vmatprep.subr.bf16.mxu0 0
    %1867 = vmatpush1.bf16.xpose.msra.mxu0 0
    %1868 = vmatprep.mubr.bf16.mxu0 0
    %1869 = vmatmul.mubr.bf16.gmra.mrb[0].mxu0 %v1831
    %v1870 = vpop.f32.mrb[0].mxu0
    %v1871 = vadd.f32 0.0, %v1870
    %v1872 = vpop.f32.mrb[0].mxu0
    %v1873 = vpop.f32.mrb[0].mxu0
    %v1874 = vpop.f32.mrb[0].mxu0
    %1875 = vdwg.mxu0
    %v1876 = vmul.f32 %v1822, 0.35355338
    %v1877 = vmul.f32 %v1871, 0.35355338
    %v1878 = vadd.f32 %v1876, %v544
    %v1879 = vadd.f32 %v1877, %v548
    %v1880 = vsel %vm443, %v1878, -inf
    %1881 = vmax.xlane.f32.xlu0 %v1880
    %v1882 = vpop.xlane.xlu0 %1881
    %v1883 = vsel %vm443, %v1879, -inf
    %1884 = vmax.xlane.f32.xlu0 %v1883
    %v1885 = vpop.xlane.xlu0 %1884
    %v1886 = vsub.f32 %v1878, %v1882
    %v1887 = vsub.f32 %v1879, %v1885
    %v1888 = vmul.f32 %v1886, 1.442695
    %v1889 = vpow.pop %v1888
    %v1890 = vmul.f32 %v1887, 1.442695
    %v1891 = vpow.pop %v1890
    %v1892 = vsel %vm443, %v1889, 0.0
    %1893 = vadd.xlane.f32.xlu0 %v1892
    %v1894 = vpop.xlane.xlu0 %1893
    %v1895 = vsel %vm443, %v1891, 0.0
    %1896 = vadd.xlane.f32.xlu0 %v1895
    %v1897 = vpop.xlane.xlu0 %1896
    %v1898 = vrcp.pop %v1894
    %v1899 = vmul.f32 %v1889, %v1898
    %v1900 = vrcp.pop %v1897
    %v1901 = vmul.f32 %v1891, %v1900
    %v1902 = vpack.c.bf16 %v1899, %v1899
    %v1903 = vpack.c.bf16 %v1901, %v1901
    %1904 = vrot.lane.b32.xlu0 %v1776, 64
    %v1905 = vpop.permute.xlu0 %1904
    %v1907 = vsel %vm443, %v1902, 0
    %v1910 = vsel %vm183, %v1905, 0
    %1912 = vmatprep.subr.bf16.mxu0 0
    %1913 = vmatpush1.bf16.msra.mxu0 %v1910
    %1914 = vmatprep.subr.bf16.mxu0 0
    %1915 = vmatpush1.bf16.msra.mxu0 0
    %1916 = vmatprep.subr.bf16.mxu0 0
    %1917 = vmatpush1.bf16.msra.mxu0 0
    %1918 = vmatprep.subr.bf16.mxu0 0
    %1919 = vmatpush1.bf16.msra.mxu0 0
    %1920 = vmatprep.subr.bf16.mxu0 0
    %1921 = vmatpush1.bf16.msra.mxu0 0
    %1922 = vmatprep.subr.bf16.mxu0 0
    %1923 = vmatpush1.bf16.msra.mxu0 0
    %1924 = vmatprep.subr.bf16.mxu0 0
    %1925 = vmatpush1.bf16.msra.mxu0 0
    %1926 = vmatprep.subr.bf16.mxu0 0
    %1927 = vmatpush1.bf16.msra.mxu0 0
    %1928 = vmatprep.subr.bf16.mxu0 0
    %1929 = vmatpush1.bf16.msra.mxu0 0
    %1930 = vmatprep.subr.bf16.mxu0 0
    %1931 = vmatpush1.bf16.msra.mxu0 0
    %1932 = vmatprep.subr.bf16.mxu0 0
    %1933 = vmatpush1.bf16.msra.mxu0 0
    %1934 = vmatprep.subr.bf16.mxu0 0
    %1935 = vmatpush1.bf16.msra.mxu0 0
    %1936 = vmatprep.subr.bf16.mxu0 0
    %1937 = vmatpush1.bf16.msra.mxu0 0
    %1938 = vmatprep.subr.bf16.mxu0 0
    %1939 = vmatpush1.bf16.msra.mxu0 0
    %1940 = vmatprep.subr.bf16.mxu0 0
    %1941 = vmatpush1.bf16.msra.mxu0 0
    %1942 = vmatprep.subr.bf16.mxu0 0
    %1943 = vmatpush1.bf16.msra.mxu0 0
    %1944 = vmatprep.mubr.bf16.mxu0 0
    %1945 = vmatmul.mubr.bf16.gmra.mrb[0].mxu0 %v1907
    %v1946 = vpop.f32.mrb[0].mxu0
    %v1947 = vadd.f32 0.0, %v1946
    %v1948 = vpop.f32.mrb[0].mxu0
    %v1949 = vpop.f32.mrb[0].mxu0
    %v1950 = vpop.f32.mrb[0].mxu0
    %1951 = vdwg.mxu0
    %1952 = vrot.lane.b32.xlu0 %v1777, 64
    %v1953 = vpop.permute.xlu0 %1952
    %v1955 = vsel %vm443, %v1903, 0
    %v1958 = vsel %vm183, %v1953, 0
    %1960 = vmatprep.subr.bf16.mxu0 0
    %1961 = vmatpush1.bf16.msra.mxu0 %v1958
    %1962 = vmatprep.subr.bf16.mxu0 0
    %1963 = vmatpush1.bf16.msra.mxu0 0
    %1964 = vmatprep.subr.bf16.mxu0 0
    %1965 = vmatpush1.bf16.msra.mxu0 0
    %1966 = vmatprep.subr.bf16.mxu0 0
    %1967 = vmatpush1.bf16.msra.mxu0 0
    %1968 = vmatprep.subr.bf16.mxu0 0
    %1969 = vmatpush1.bf16.msra.mxu0 0
    %1970 = vmatprep.subr.bf16.mxu0 0
    %1971 = vmatpush1.bf16.msra.mxu0 0
    %1972 = vmatprep.subr.bf16.mxu0 0
    %1973 = vmatpush1.bf16.msra.mxu0 0
    %1974 = vmatprep.subr.bf16.mxu0 0
    %1975 = vmatpush1.bf16.msra.mxu0 0
    %1976 = vmatprep.subr.bf16.mxu0 0
    %1977 = vmatpush1.bf16.msra.mxu0 0
    %1978 = vmatprep.subr.bf16.mxu0 0
    %1979 = vmatpush1.bf16.msra.mxu0 0
    %1980 = vmatprep.subr.bf16.mxu0 0
    %1981 = vmatpush1.bf16.msra.mxu0 0
    %1982 = vmatprep.subr.bf16.mxu0 0
    %1983 = vmatpush1.bf16.msra.mxu0 0
    %1984 = vmatprep.subr.bf16.mxu0 0
    %1985 = vmatpush1.bf16.msra.mxu0 0
    %1986 = vmatprep.subr.bf16.mxu0 0
    %1987 = vmatpush1.bf16.msra.mxu0 0
    %1988 = vmatprep.subr.bf16.mxu0 0
    %1989 = vmatpush1.bf16.msra.mxu0 0
    %1990 = vmatprep.subr.bf16.mxu0 0
    %1991 = vmatpush1.bf16.msra.mxu0 0
    %1992 = vmatprep.mubr.bf16.mxu0 0
    %1993 = vmatmul.mubr.bf16.gmra.mrb[0].mxu0 %v1955
    %v1994 = vpop.f32.mrb[0].mxu0
    %v1995 = vadd.f32 0.0, %v1994
    %v1996 = vpop.f32.mrb[0].mxu0
    %v1997 = vpop.f32.mrb[0].mxu0
    %v1998 = vpop.f32.mrb[0].mxu0
    %1999 = vdwg.mxu0
    %2000 = vrot.lane.b32.xlu0 %v1776, 120
    %v2001 = vpop.permute.xlu0 %2000
    %2002 = vrot.lane.b32.xlu0 %v1776, 88
    %v2003 = vpop.permute.xlu0 %2002
    %v2005 = vsel %vm443, %v2001, 0
    %v2008 = vsel %vm443, %v2003, 0
    %2010 = vmatprep.subr.bf16.mxu0 0
    %2011 = vmatpush1.bf16.xpose.msra.mxu0 %v2008
    %2012 = vmatprep.subr.bf16.mxu0 0
    %2013 = vmatpush1.bf16.xpose.msra.mxu0 0
    %2014 = vmatprep.subr.bf16.mxu0 0
    %2015 = vmatpush1.bf16.xpose.msra.mxu0 0
    %2016 = vmatprep.subr.bf16.mxu0 0
    %2017 = vmatpush1.bf16.xpose.msra.mxu0 0
    %2018 = vmatprep.subr.bf16.mxu0 0
    %2019 = vmatpush1.bf16.xpose.msra.mxu0 0
    %2020 = vmatprep.subr.bf16.mxu0 0
    %2021 = vmatpush1.bf16.xpose.msra.mxu0 0
    %2022 = vmatprep.subr.bf16.mxu0 0
    %2023 = vmatpush1.bf16.xpose.msra.mxu0 0
    %2024 = vmatprep.subr.bf16.mxu0 0
    %2025 = vmatpush1.bf16.xpose.msra.mxu0 0
    %2026 = vmatprep.subr.bf16.mxu0 0
    %2027 = vmatpush1.bf16.xpose.msra.mxu0 0
    %2028 = vmatprep.subr.bf16.mxu0 0
    %2029 = vmatpush1.bf16.xpose.msra.mxu0 0
    %2030 = vmatprep.subr.bf16.mxu0 0
    %2031 = vmatpush1.bf16.xpose.msra.mxu0 0
    %2032 = vmatprep.subr.bf16.mxu0 0
    %2033 = vmatpush1.bf16.xpose.msra.mxu0 0
    %2034 = vmatprep.subr.bf16.mxu0 0
    %2035 = vmatpush1.bf16.xpose.msra.mxu0 0
    %2036 = vmatprep.subr.bf16.mxu0 0
    %2037 = vmatpush1.bf16.xpose.msra.mxu0 0
    %2038 = vmatprep.subr.bf16.mxu0 0
    %2039 = vmatpush1.bf16.xpose.msra.mxu0 0
    %2040 = vmatprep.subr.bf16.mxu0 0
    %2041 = vmatpush1.bf16.xpose.msra.mxu0 0
    %2042 = vmatprep.mubr.bf16.mxu0 0
    %2043 = vmatmul.mubr.bf16.gmra.mrb[0].mxu0 %v2005
    %v2044 = vpop.f32.mrb[0].mxu0
    %v2045 = vadd.f32 0.0, %v2044
    %v2046 = vpop.f32.mrb[0].mxu0
    %v2047 = vpop.f32.mrb[0].mxu0
    %v2048 = vpop.f32.mrb[0].mxu0
    %2049 = vdwg.mxu0
    %2050 = vrot.lane.b32.xlu0 %v1777, 120
    %v2051 = vpop.permute.xlu0 %2050
    %2052 = vrot.lane.b32.xlu0 %v1777, 88
    %v2053 = vpop.permute.xlu0 %2052
    %v2055 = vsel %vm443, %v2051, 0
    %v2058 = vsel %vm443, %v2053, 0
    %2060 = vmatprep.subr.bf16.mxu0 0
    %2061 = vmatpush1.bf16.xpose.msra.mxu0 %v2058
    %2062 = vmatprep.subr.bf16.mxu0 0
    %2063 = vmatpush1.bf16.xpose.msra.mxu0 0
    %2064 = vmatprep.subr.bf16.mxu0 0
    %2065 = vmatpush1.bf16.xpose.msra.mxu0 0
    %2066 = vmatprep.subr.bf16.mxu0 0
    %2067 = vmatpush1.bf16.xpose.msra.mxu0 0
    %2068 = vmatprep.subr.bf16.mxu0 0
    %2069 = vmatpush1.bf16.xpose.msra.mxu0 0
    %2070 = vmatprep.subr.bf16.mxu0 0
    %2071 = vmatpush1.bf16.xpose.msra.mxu0 0
    %2072 = vmatprep.subr.bf16.mxu0 0
    %2073 = vmatpush1.bf16.xpose.msra.mxu0 0
    %2074 = vmatprep.subr.bf16.mxu0 0
    %2075 = vmatpush1.bf16.xpose.msra.mxu0 0
    %2076 = vmatprep.subr.bf16.mxu0 0
    %2077 = vmatpush1.bf16.xpose.msra.mxu0 0
    %2078 = vmatprep.subr.bf16.mxu0 0
    %2079 = vmatpush1.bf16.xpose.msra.mxu0 0
    %2080 = vmatprep.subr.bf16.mxu0 0
    %2081 = vmatpush1.bf16.xpose.msra.mxu0 0
    %2082 = vmatprep.subr.bf16.mxu0 0
    %2083 = vmatpush1.bf16.xpose.msra.mxu0 0
    %2084 = vmatprep.subr.bf16.mxu0 0
    %2085 = vmatpush1.bf16.xpose.msra.mxu0 0
    %2086 = vmatprep.subr.bf16.mxu0 0
    %2087 = vmatpush1.bf16.xpose.msra.mxu0 0
    %2088 = vmatprep.subr.bf16.mxu0 0
    %2089 = vmatpush1.bf16.xpose.msra.mxu0 0
    %2090 = vmatprep.subr.bf16.mxu0 0
    %2091 = vmatpush1.bf16.xpose.msra.mxu0 0
    %2092 = vmatprep.mubr.bf16.mxu0 0
    %2093 = vmatmul.mubr.bf16.gmra.mrb[0].mxu0 %v2055
    %v2094 = vpop.f32.mrb[0].mxu0
    %v2095 = vadd.f32 0.0, %v2094
    %v2096 = vpop.f32.mrb[0].mxu0
    %v2097 = vpop.f32.mrb[0].mxu0
    %v2098 = vpop.f32.mrb[0].mxu0
    %2099 = vdwg.mxu0
    %v2100 = vmul.f32 %v2045, 0.35355338
    %v2101 = vmul.f32 %v2095, 0.35355338
    %v2102 = vadd.f32 %v2100, %v544
    %v2103 = vadd.f32 %v2101, %v548
    %v2104 = vsel %vm443, %v2102, -inf
    %2105 = vmax.xlane.f32.xlu0 %v2104
    %v2106 = vpop.xlane.xlu0 %2105
    %v2107 = vsel %vm443, %v2103, -inf
    %2108 = vmax.xlane.f32.xlu0 %v2107
    %v2109 = vpop.xlane.xlu0 %2108
    %v2110 = vsub.f32 %v2102, %v2106
    %v2111 = vsub.f32 %v2103, %v2109
    %v2112 = vmul.f32 %v2110, 1.442695
    %v2113 = vpow.pop %v2112
    %v2114 = vmul.f32 %v2111, 1.442695
    %v2115 = vpow.pop %v2114
    %v2116 = vsel %vm443, %v2113, 0.0
    %2117 = vadd.xlane.f32.xlu0 %v2116
    %v2118 = vpop.xlane.xlu0 %2117
    %v2119 = vsel %vm443, %v2115, 0.0
    %2120 = vadd.xlane.f32.xlu0 %v2119
    %v2121 = vpop.xlane.xlu0 %2120
    %v2122 = vrcp.pop %v2118
    %v2123 = vmul.f32 %v2113, %v2122
    %v2124 = vrcp.pop %v2121
    %v2125 = vmul.f32 %v2115, %v2124
    %v2126 = vpack.c.bf16 %v2123, %v2123
    %v2127 = vpack.c.bf16 %v2125, %v2125
    %2128 = vrot.lane.b32.xlu0 %v1776, 56
    %v2129 = vpop.permute.xlu0 %2128
    %v2131 = vsel %vm443, %v2126, 0
    %v2134 = vsel %vm183, %v2129, 0
    %2136 = vmatprep.subr.bf16.mxu0 0
    %2137 = vmatpush1.bf16.msra.mxu0 %v2134
    %2138 = vmatprep.subr.bf16.mxu0 0
    %2139 = vmatpush1.bf16.msra.mxu0 0
    %2140 = vmatprep.subr.bf16.mxu0 0
    %2141 = vmatpush1.bf16.msra.mxu0 0
    %2142 = vmatprep.subr.bf16.mxu0 0
    %2143 = vmatpush1.bf16.msra.mxu0 0
    %2144 = vmatprep.subr.bf16.mxu0 0
    %2145 = vmatpush1.bf16.msra.mxu0 0
    %2146 = vmatprep.subr.bf16.mxu0 0
    %2147 = vmatpush1.bf16.msra.mxu0 0
    %2148 = vmatprep.subr.bf16.mxu0 0
    %2149 = vmatpush1.bf16.msra.mxu0 0
    %2150 = vmatprep.subr.bf16.mxu0 0
    %2151 = vmatpush1.bf16.msra.mxu0 0
    %2152 = vmatprep.subr.bf16.mxu0 0
    %2153 = vmatpush1.bf16.msra.mxu0 0
    %2154 = vmatprep.subr.bf16.mxu0 0
    %2155 = vmatpush1.bf16.msra.mxu0 0
    %2156 = vmatprep.subr.bf16.mxu0 0
    %2157 = vmatpush1.bf16.msra.mxu0 0
    %2158 = vmatprep.subr.bf16.mxu0 0
    %2159 = vmatpush1.bf16.msra.mxu0 0
    %2160 = vmatprep.subr.bf16.mxu0 0
    %2161 = vmatpush1.bf16.msra.mxu0 0
    %2162 = vmatprep.subr.bf16.mxu0 0
    %2163 = vmatpush1.bf16.msra.mxu0 0
    %2164 = vmatprep.subr.bf16.mxu0 0
    %2165 = vmatpush1.bf16.msra.mxu0 0
    %2166 = vmatprep.subr.bf16.mxu0 0
    %2167 = vmatpush1.bf16.msra.mxu0 0
    %2168 = vmatprep.mubr.bf16.mxu0 0
    %2169 = vmatmul.mubr.bf16.gmra.mrb[0].mxu0 %v2131
    %v2170 = vpop.f32.mrb[0].mxu0
    %v2171 = vadd.f32 0.0, %v2170
    %v2172 = vpop.f32.mrb[0].mxu0
    %v2173 = vpop.f32.mrb[0].mxu0
    %v2174 = vpop.f32.mrb[0].mxu0
    %2175 = vdwg.mxu0
    %2176 = vrot.lane.b32.xlu0 %v1777, 56
    %v2177 = vpop.permute.xlu0 %2176
    %v2179 = vsel %vm443, %v2127, 0
    %v2182 = vsel %vm183, %v2177, 0
    %2184 = vmatprep.subr.bf16.mxu0 0
    %2185 = vmatpush1.bf16.msra.mxu0 %v2182
    %2186 = vmatprep.subr.bf16.mxu0 0
    %2187 = vmatpush1.bf16.msra.mxu0 0
    %2188 = vmatprep.subr.bf16.mxu0 0
    %2189 = vmatpush1.bf16.msra.mxu0 0
    %2190 = vmatprep.subr.bf16.mxu0 0
    %2191 = vmatpush1.bf16.msra.mxu0 0
    %2192 = vmatprep.subr.bf16.mxu0 0
    %2193 = vmatpush1.bf16.msra.mxu0 0
    %2194 = vmatprep.subr.bf16.mxu0 0
    %2195 = vmatpush1.bf16.msra.mxu0 0
    %2196 = vmatprep.subr.bf16.mxu0 0
    %2197 = vmatpush1.bf16.msra.mxu0 0
    %2198 = vmatprep.subr.bf16.mxu0 0
    %2199 = vmatpush1.bf16.msra.mxu0 0
    %2200 = vmatprep.subr.bf16.mxu0 0
    %2201 = vmatpush1.bf16.msra.mxu0 0
    %2202 = vmatprep.subr.bf16.mxu0 0
    %2203 = vmatpush1.bf16.msra.mxu0 0
    %2204 = vmatprep.subr.bf16.mxu0 0
    %2205 = vmatpush1.bf16.msra.mxu0 0
    %2206 = vmatprep.subr.bf16.mxu0 0
    %2207 = vmatpush1.bf16.msra.mxu0 0
    %2208 = vmatprep.subr.bf16.mxu0 0
    %2209 = vmatpush1.bf16.msra.mxu0 0
    %2210 = vmatprep.subr.bf16.mxu0 0
    %2211 = vmatpush1.bf16.msra.mxu0 0
    %2212 = vmatprep.subr.bf16.mxu0 0
    %2213 = vmatpush1.bf16.msra.mxu0 0
    %2214 = vmatprep.subr.bf16.mxu0 0
    %2215 = vmatpush1.bf16.msra.mxu0 0
    %2216 = vmatprep.mubr.bf16.mxu0 0
    %2217 = vmatmul.mubr.bf16.gmra.mrb[0].mxu0 %v2179
    %v2218 = vpop.f32.mrb[0].mxu0
    %v2219 = vadd.f32 0.0, %v2218
    %v2220 = vpop.f32.mrb[0].mxu0
    %v2221 = vpop.f32.mrb[0].mxu0
    %v2222 = vpop.f32.mrb[0].mxu0
    %2223 = vdwg.mxu0
    %2224 = vrot.lane.b32.xlu0 %v1776, 112
    %v2225 = vpop.permute.xlu0 %2224
    %2226 = vrot.lane.b32.xlu0 %v1776, 80
    %v2227 = vpop.permute.xlu0 %2226
    %v2229 = vsel %vm443, %v2225, 0
    %v2232 = vsel %vm443, %v2227, 0
    %2234 = vmatprep.subr.bf16.mxu0 0
    %2235 = vmatpush1.bf16.xpose.msra.mxu0 %v2232
    %2236 = vmatprep.subr.bf16.mxu0 0
    %2237 = vmatpush1.bf16.xpose.msra.mxu0 0
    %2238 = vmatprep.subr.bf16.mxu0 0
    %2239 = vmatpush1.bf16.xpose.msra.mxu0 0
    %2240 = vmatprep.subr.bf16.mxu0 0
    %2241 = vmatpush1.bf16.xpose.msra.mxu0 0
    %2242 = vmatprep.subr.bf16.mxu0 0
    %2243 = vmatpush1.bf16.xpose.msra.mxu0 0
    %2244 = vmatprep.subr.bf16.mxu0 0
    %2245 = vmatpush1.bf16.xpose.msra.mxu0 0
    %2246 = vmatprep.subr.bf16.mxu0 0
    %2247 = vmatpush1.bf16.xpose.msra.mxu0 0
    %2248 = vmatprep.subr.bf16.mxu0 0
    %2249 = vmatpush1.bf16.xpose.msra.mxu0 0
    %2250 = vmatprep.subr.bf16.mxu0 0
    %2251 = vmatpush1.bf16.xpose.msra.mxu0 0
    %2252 = vmatprep.subr.bf16.mxu0 0
    %2253 = vmatpush1.bf16.xpose.msra.mxu0 0
    %2254 = vmatprep.subr.bf16.mxu0 0
    %2255 = vmatpush1.bf16.xpose.msra.mxu0 0
    %2256 = vmatprep.subr.bf16.mxu0 0
    %2257 = vmatpush1.bf16.xpose.msra.mxu0 0
    %2258 = vmatprep.subr.bf16.mxu0 0
    %2259 = vmatpush1.bf16.xpose.msra.mxu0 0
    %2260 = vmatprep.subr.bf16.mxu0 0
    %2261 = vmatpush1.bf16.xpose.msra.mxu0 0
    %2262 = vmatprep.subr.bf16.mxu0 0
    %2263 = vmatpush1.bf16.xpose.msra.mxu0 0
    %2264 = vmatprep.subr.bf16.mxu0 0
    %2265 = vmatpush1.bf16.xpose.msra.mxu0 0
    %2266 = vmatprep.mubr.bf16.mxu0 0
    %2267 = vmatmul.mubr.bf16.gmra.mrb[0].mxu0 %v2229
    %v2268 = vpop.f32.mrb[0].mxu0
    %v2269 = vadd.f32 0.0, %v2268
    %v2270 = vpop.f32.mrb[0].mxu0
    %v2271 = vpop.f32.mrb[0].mxu0
    %v2272 = vpop.f32.mrb[0].mxu0
    %2273 = vdwg.mxu0
    %2274 = vrot.lane.b32.xlu0 %v1777, 112
    %v2275 = vpop.permute.xlu0 %2274
    %2276 = vrot.lane.b32.xlu0 %v1777, 80
    %v2277 = vpop.permute.xlu0 %2276
    %v2279 = vsel %vm443, %v2275, 0
    %v2282 = vsel %vm443, %v2277, 0
    %2284 = vmatprep.subr.bf16.mxu0 0
    %2285 = vmatpush1.bf16.xpose.msra.mxu0 %v2282
    %2286 = vmatprep.subr.bf16.mxu0 0
    %2287 = vmatpush1.bf16.xpose.msra.mxu0 0
    %2288 = vmatprep.subr.bf16.mxu0 0
    %2289 = vmatpush1.bf16.xpose.msra.mxu0 0
    %2290 = vmatprep.subr.bf16.mxu0 0
    %2291 = vmatpush1.bf16.xpose.msra.mxu0 0
    %2292 = vmatprep.subr.bf16.mxu0 0
    %2293 = vmatpush1.bf16.xpose.msra.mxu0 0
    %2294 = vmatprep.subr.bf16.mxu0 0
    %2295 = vmatpush1.bf16.xpose.msra.mxu0 0
    %2296 = vmatprep.subr.bf16.mxu0 0
    %2297 = vmatpush1.bf16.xpose.msra.mxu0 0
    %2298 = vmatprep.subr.bf16.mxu0 0
    %2299 = vmatpush1.bf16.xpose.msra.mxu0 0
    %2300 = vmatprep.subr.bf16.mxu0 0
    %2301 = vmatpush1.bf16.xpose.msra.mxu0 0
    %2302 = vmatprep.subr.bf16.mxu0 0
    %2303 = vmatpush1.bf16.xpose.msra.mxu0 0
    %2304 = vmatprep.subr.bf16.mxu0 0
    %2305 = vmatpush1.bf16.xpose.msra.mxu0 0
    %2306 = vmatprep.subr.bf16.mxu0 0
    %2307 = vmatpush1.bf16.xpose.msra.mxu0 0
    %2308 = vmatprep.subr.bf16.mxu0 0
    %2309 = vmatpush1.bf16.xpose.msra.mxu0 0
    %2310 = vmatprep.subr.bf16.mxu0 0
    %2311 = vmatpush1.bf16.xpose.msra.mxu0 0
    %2312 = vmatprep.subr.bf16.mxu0 0
    %2313 = vmatpush1.bf16.xpose.msra.mxu0 0
    %2314 = vmatprep.subr.bf16.mxu0 0
    %2315 = vmatpush1.bf16.xpose.msra.mxu0 0
    %2316 = vmatprep.mubr.bf16.mxu0 0
    %2317 = vmatmul.mubr.bf16.gmra.mrb[0].mxu0 %v2279
    %v2318 = vpop.f32.mrb[0].mxu0
    %v2319 = vadd.f32 0.0, %v2318
    %v2320 = vpop.f32.mrb[0].mxu0
    %v2321 = vpop.f32.mrb[0].mxu0
    %v2322 = vpop.f32.mrb[0].mxu0
    %2323 = vdwg.mxu0
    %v2324 = vmul.f32 %v2269, 0.35355338
    %v2325 = vmul.f32 %v2319, 0.35355338
    %v2326 = vadd.f32 %v2324, %v544
    %v2327 = vadd.f32 %v2325, %v548
    %v2328 = vsel %vm443, %v2326, -inf
    %2329 = vmax.xlane.f32.xlu0 %v2328
    %v2330 = vpop.xlane.xlu0 %2329
    %v2331 = vsel %vm443, %v2327, -inf
    %2332 = vmax.xlane.f32.xlu0 %v2331
    %v2333 = vpop.xlane.xlu0 %2332
    %v2334 = vsub.f32 %v2326, %v2330
    %v2335 = vsub.f32 %v2327, %v2333
    %v2336 = vmul.f32 %v2334, 1.442695
    %v2337 = vpow.pop %v2336
    %v2338 = vmul.f32 %v2335, 1.442695
    %v2339 = vpow.pop %v2338
    %v2340 = vsel %vm443, %v2337, 0.0
    %2341 = vadd.xlane.f32.xlu0 %v2340
    %v2342 = vpop.xlane.xlu0 %2341
    %v2343 = vsel %vm443, %v2339, 0.0
    %2344 = vadd.xlane.f32.xlu0 %v2343
    %v2345 = vpop.xlane.xlu0 %2344
    %v2346 = vrcp.pop %v2342
    %v2347 = vmul.f32 %v2337, %v2346
    %v2348 = vrcp.pop %v2345
    %v2349 = vmul.f32 %v2339, %v2348
    %v2350 = vpack.c.bf16 %v2347, %v2347
    %v2351 = vpack.c.bf16 %v2349, %v2349
    %2352 = vrot.lane.b32.xlu0 %v1776, 48
    %v2353 = vpop.permute.xlu0 %2352
    %v2355 = vsel %vm443, %v2350, 0
    %v2358 = vsel %vm183, %v2353, 0
    %2360 = vmatprep.subr.bf16.mxu0 0
    %2361 = vmatpush1.bf16.msra.mxu0 %v2358
    %2362 = vmatprep.subr.bf16.mxu0 0
    %2363 = vmatpush1.bf16.msra.mxu0 0
    %2364 = vmatprep.subr.bf16.mxu0 0
    %2365 = vmatpush1.bf16.msra.mxu0 0
    %2366 = vmatprep.subr.bf16.mxu0 0
    %2367 = vmatpush1.bf16.msra.mxu0 0
    %2368 = vmatprep.subr.bf16.mxu0 0
    %2369 = vmatpush1.bf16.msra.mxu0 0
    %2370 = vmatprep.subr.bf16.mxu0 0
    %2371 = vmatpush1.bf16.msra.mxu0 0
    %2372 = vmatprep.subr.bf16.mxu0 0
    %2373 = vmatpush1.bf16.msra.mxu0 0
    %2374 = vmatprep.subr.bf16.mxu0 0
    %2375 = vmatpush1.bf16.msra.mxu0 0
    %2376 = vmatprep.subr.bf16.mxu0 0
    %2377 = vmatpush1.bf16.msra.mxu0 0
    %2378 = vmatprep.subr.bf16.mxu0 0
    %2379 = vmatpush1.bf16.msra.mxu0 0
    %2380 = vmatprep.subr.bf16.mxu0 0
    %2381 = vmatpush1.bf16.msra.mxu0 0
    %2382 = vmatprep.subr.bf16.mxu0 0
    %2383 = vmatpush1.bf16.msra.mxu0 0
    %2384 = vmatprep.subr.bf16.mxu0 0
    %2385 = vmatpush1.bf16.msra.mxu0 0
    %2386 = vmatprep.subr.bf16.mxu0 0
    %2387 = vmatpush1.bf16.msra.mxu0 0
    %2388 = vmatprep.subr.bf16.mxu0 0
    %2389 = vmatpush1.bf16.msra.mxu0 0
    %2390 = vmatprep.subr.bf16.mxu0 0
    %2391 = vmatpush1.bf16.msra.mxu0 0
    %2392 = vmatprep.mubr.bf16.mxu0 0
    %2393 = vmatmul.mubr.bf16.gmra.mrb[0].mxu0 %v2355
    %v2394 = vpop.f32.mrb[0].mxu0
    %v2395 = vadd.f32 0.0, %v2394
    %v2396 = vpop.f32.mrb[0].mxu0
    %v2397 = vpop.f32.mrb[0].mxu0
    %v2398 = vpop.f32.mrb[0].mxu0
    %2399 = vdwg.mxu0
    %2400 = vrot.lane.b32.xlu0 %v1777, 48
    %v2401 = vpop.permute.xlu0 %2400
    %v2403 = vsel %vm443, %v2351, 0
    %v2406 = vsel %vm183, %v2401, 0
    %2408 = vmatprep.subr.bf16.mxu0 0
    %2409 = vmatpush1.bf16.msra.mxu0 %v2406
    %2410 = vmatprep.subr.bf16.mxu0 0
    %2411 = vmatpush1.bf16.msra.mxu0 0
    %2412 = vmatprep.subr.bf16.mxu0 0
    %2413 = vmatpush1.bf16.msra.mxu0 0
    %2414 = vmatprep.subr.bf16.mxu0 0
    %2415 = vmatpush1.bf16.msra.mxu0 0
    %2416 = vmatprep.subr.bf16.mxu0 0
    %2417 = vmatpush1.bf16.msra.mxu0 0
    %2418 = vmatprep.subr.bf16.mxu0 0
    %2419 = vmatpush1.bf16.msra.mxu0 0
    %2420 = vmatprep.subr.bf16.mxu0 0
    %2421 = vmatpush1.bf16.msra.mxu0 0
    %2422 = vmatprep.subr.bf16.mxu0 0
    %2423 = vmatpush1.bf16.msra.mxu0 0
    %2424 = vmatprep.subr.bf16.mxu0 0
    %2425 = vmatpush1.bf16.msra.mxu0 0
    %2426 = vmatprep.subr.bf16.mxu0 0
    %2427 = vmatpush1.bf16.msra.mxu0 0
    %2428 = vmatprep.subr.bf16.mxu0 0
    %2429 = vmatpush1.bf16.msra.mxu0 0
    %2430 = vmatprep.subr.bf16.mxu0 0
    %2431 = vmatpush1.bf16.msra.mxu0 0
    %2432 = vmatprep.subr.bf16.mxu0 0
    %2433 = vmatpush1.bf16.msra.mxu0 0
    %2434 = vmatprep.subr.bf16.mxu0 0
    %2435 = vmatpush1.bf16.msra.mxu0 0
    %2436 = vmatprep.subr.bf16.mxu0 0
    %2437 = vmatpush1.bf16.msra.mxu0 0
    %2438 = vmatprep.subr.bf16.mxu0 0
    %2439 = vmatpush1.bf16.msra.mxu0 0
    %2440 = vmatprep.mubr.bf16.mxu0 0
    %2441 = vmatmul.mubr.bf16.gmra.mrb[0].mxu0 %v2403
    %v2442 = vpop.f32.mrb[0].mxu0
    %v2443 = vadd.f32 0.0, %v2442
    %v2444 = vpop.f32.mrb[0].mxu0
    %v2445 = vpop.f32.mrb[0].mxu0
    %v2446 = vpop.f32.mrb[0].mxu0
    %2447 = vdwg.mxu0
    %2448 = vrot.lane.b32.xlu0 %v1776, 104
    %v2449 = vpop.permute.xlu0 %2448
    %2450 = vrot.lane.b32.xlu0 %v1776, 72
    %v2451 = vpop.permute.xlu0 %2450
    %v2453 = vsel %vm443, %v2449, 0
    %v2456 = vsel %vm443, %v2451, 0
    %2458 = vmatprep.subr.bf16.mxu0 0
    %2459 = vmatpush1.bf16.xpose.msra.mxu0 %v2456
    %2460 = vmatprep.subr.bf16.mxu0 0
    %2461 = vmatpush1.bf16.xpose.msra.mxu0 0
    %2462 = vmatprep.subr.bf16.mxu0 0
    %2463 = vmatpush1.bf16.xpose.msra.mxu0 0
    %2464 = vmatprep.subr.bf16.mxu0 0
    %2465 = vmatpush1.bf16.xpose.msra.mxu0 0
    %2466 = vmatprep.subr.bf16.mxu0 0
    %2467 = vmatpush1.bf16.xpose.msra.mxu0 0
    %2468 = vmatprep.subr.bf16.mxu0 0
    %2469 = vmatpush1.bf16.xpose.msra.mxu0 0
    %2470 = vmatprep.subr.bf16.mxu0 0
    %2471 = vmatpush1.bf16.xpose.msra.mxu0 0
    %2472 = vmatprep.subr.bf16.mxu0 0
    %2473 = vmatpush1.bf16.xpose.msra.mxu0 0
    %2474 = vmatprep.subr.bf16.mxu0 0
    %2475 = vmatpush1.bf16.xpose.msra.mxu0 0
    %2476 = vmatprep.subr.bf16.mxu0 0
    %2477 = vmatpush1.bf16.xpose.msra.mxu0 0
    %2478 = vmatprep.subr.bf16.mxu0 0
    %2479 = vmatpush1.bf16.xpose.msra.mxu0 0
    %2480 = vmatprep.subr.bf16.mxu0 0
    %2481 = vmatpush1.bf16.xpose.msra.mxu0 0
    %2482 = vmatprep.subr.bf16.mxu0 0
    %2483 = vmatpush1.bf16.xpose.msra.mxu0 0
    %2484 = vmatprep.subr.bf16.mxu0 0
    %2485 = vmatpush1.bf16.xpose.msra.mxu0 0
    %2486 = vmatprep.subr.bf16.mxu0 0
    %2487 = vmatpush1.bf16.xpose.msra.mxu0 0
    %2488 = vmatprep.subr.bf16.mxu0 0
    %2489 = vmatpush1.bf16.xpose.msra.mxu0 0
    %2490 = vmatprep.mubr.bf16.mxu0 0
    %2491 = vmatmul.mubr.bf16.gmra.mrb[0].mxu0 %v2453
    %v2492 = vpop.f32.mrb[0].mxu0
    %v2493 = vadd.f32 0.0, %v2492
    %v2494 = vpop.f32.mrb[0].mxu0
    %v2495 = vpop.f32.mrb[0].mxu0
    %v2496 = vpop.f32.mrb[0].mxu0
    %2497 = vdwg.mxu0
    %2498 = vrot.lane.b32.xlu0 %v1777, 104
    %v2499 = vpop.permute.xlu0 %2498
    %2500 = vrot.lane.b32.xlu0 %v1777, 72
    %v2501 = vpop.permute.xlu0 %2500
    %v2503 = vsel %vm443, %v2499, 0
    %v2506 = vsel %vm443, %v2501, 0
    %2508 = vmatprep.subr.bf16.mxu0 0
    %2509 = vmatpush1.bf16.xpose.msra.mxu0 %v2506
    %2510 = vmatprep.subr.bf16.mxu0 0
    %2511 = vmatpush1.bf16.xpose.msra.mxu0 0
    %2512 = vmatprep.subr.bf16.mxu0 0
    %2513 = vmatpush1.bf16.xpose.msra.mxu0 0
    %2514 = vmatprep.subr.bf16.mxu0 0
    %2515 = vmatpush1.bf16.xpose.msra.mxu0 0
    %2516 = vmatprep.subr.bf16.mxu0 0
    %2517 = vmatpush1.bf16.xpose.msra.mxu0 0
    %2518 = vmatprep.subr.bf16.mxu0 0
    %2519 = vmatpush1.bf16.xpose.msra.mxu0 0
    %2520 = vmatprep.subr.bf16.mxu0 0
    %2521 = vmatpush1.bf16.xpose.msra.mxu0 0
    %2522 = vmatprep.subr.bf16.mxu0 0
    %2523 = vmatpush1.bf16.xpose.msra.mxu0 0
    %2524 = vmatprep.subr.bf16.mxu0 0
    %2525 = vmatpush1.bf16.xpose.msra.mxu0 0
    %2526 = vmatprep.subr.bf16.mxu0 0
    %2527 = vmatpush1.bf16.xpose.msra.mxu0 0
    %2528 = vmatprep.subr.bf16.mxu0 0
    %2529 = vmatpush1.bf16.xpose.msra.mxu0 0
    %2530 = vmatprep.subr.bf16.mxu0 0
    %2531 = vmatpush1.bf16.xpose.msra.mxu0 0
    %2532 = vmatprep.subr.bf16.mxu0 0
    %2533 = vmatpush1.bf16.xpose.msra.mxu0 0
    %2534 = vmatprep.subr.bf16.mxu0 0
    %2535 = vmatpush1.bf16.xpose.msra.mxu0 0
    %2536 = vmatprep.subr.bf16.mxu0 0
    %2537 = vmatpush1.bf16.xpose.msra.mxu0 0
    %2538 = vmatprep.subr.bf16.mxu0 0
    %2539 = vmatpush1.bf16.xpose.msra.mxu0 0
    %2540 = vmatprep.mubr.bf16.mxu0 0
    %2541 = vmatmul.mubr.bf16.gmra.mrb[0].mxu0 %v2503
    %v2542 = vpop.f32.mrb[0].mxu0
    %v2543 = vadd.f32 0.0, %v2542
    %v2544 = vpop.f32.mrb[0].mxu0
    %v2545 = vpop.f32.mrb[0].mxu0
    %v2546 = vpop.f32.mrb[0].mxu0
    %2547 = vdwg.mxu0
    %v2548 = vmul.f32 %v2493, 0.35355338
    %v2549 = vmul.f32 %v2543, 0.35355338
    %v2550 = vadd.f32 %v2548, %v544
    %v2551 = vadd.f32 %v2549, %v548
    %v2552 = vsel %vm443, %v2550, -inf
    %2553 = vmax.xlane.f32.xlu0 %v2552
    %v2554 = vpop.xlane.xlu0 %2553
    %v2555 = vsel %vm443, %v2551, -inf
    %2556 = vmax.xlane.f32.xlu0 %v2555
    %v2557 = vpop.xlane.xlu0 %2556
    %v2558 = vsub.f32 %v2550, %v2554
    %v2559 = vsub.f32 %v2551, %v2557
    %v2560 = vmul.f32 %v2558, 1.442695
    %v2561 = vpow.pop %v2560
    %v2562 = vmul.f32 %v2559, 1.442695
    %v2563 = vpow.pop %v2562
    %v2564 = vsel %vm443, %v2561, 0.0
    %2565 = vadd.xlane.f32.xlu0 %v2564
    %v2566 = vpop.xlane.xlu0 %2565
    %v2567 = vsel %vm443, %v2563, 0.0
    %2568 = vadd.xlane.f32.xlu0 %v2567
    %v2569 = vpop.xlane.xlu0 %2568
    %v2570 = vrcp.pop %v2566
    %v2571 = vmul.f32 %v2561, %v2570
    %v2572 = vrcp.pop %v2569
    %v2573 = vmul.f32 %v2563, %v2572
    %v2574 = vpack.c.bf16 %v2571, %v2571
    %v2575 = vpack.c.bf16 %v2573, %v2573
    %2576 = vrot.lane.b32.xlu0 %v1776, 40
    %v2577 = vpop.permute.xlu0 %2576
    %v2579 = vsel %vm443, %v2574, 0
    %v2582 = vsel %vm183, %v2577, 0
    %2584 = vmatprep.subr.bf16.mxu0 0
    %2585 = vmatpush1.bf16.msra.mxu0 %v2582
    %2586 = vmatprep.subr.bf16.mxu0 0
    %2587 = vmatpush1.bf16.msra.mxu0 0
    %2588 = vmatprep.subr.bf16.mxu0 0
    %2589 = vmatpush1.bf16.msra.mxu0 0
    %2590 = vmatprep.subr.bf16.mxu0 0
    %2591 = vmatpush1.bf16.msra.mxu0 0
    %2592 = vmatprep.subr.bf16.mxu0 0
    %2593 = vmatpush1.bf16.msra.mxu0 0
    %2594 = vmatprep.subr.bf16.mxu0 0
    %2595 = vmatpush1.bf16.msra.mxu0 0
    %2596 = vmatprep.subr.bf16.mxu0 0
    %2597 = vmatpush1.bf16.msra.mxu0 0
    %2598 = vmatprep.subr.bf16.mxu0 0
    %2599 = vmatpush1.bf16.msra.mxu0 0
    %2600 = vmatprep.subr.bf16.mxu0 0
    %2601 = vmatpush1.bf16.msra.mxu0 0
    %2602 = vmatprep.subr.bf16.mxu0 0
    %2603 = vmatpush1.bf16.msra.mxu0 0
    %2604 = vmatprep.subr.bf16.mxu0 0
    %2605 = vmatpush1.bf16.msra.mxu0 0
    %2606 = vmatprep.subr.bf16.mxu0 0
    %2607 = vmatpush1.bf16.msra.mxu0 0
    %2608 = vmatprep.subr.bf16.mxu0 0
    %2609 = vmatpush1.bf16.msra.mxu0 0
    %2610 = vmatprep.subr.bf16.mxu0 0
    %2611 = vmatpush1.bf16.msra.mxu0 0
    %2612 = vmatprep.subr.bf16.mxu0 0
    %2613 = vmatpush1.bf16.msra.mxu0 0
    %2614 = vmatprep.subr.bf16.mxu0 0
    %2615 = vmatpush1.bf16.msra.mxu0 0
    %2616 = vmatprep.mubr.bf16.mxu0 0
    %2617 = vmatmul.mubr.bf16.gmra.mrb[0].mxu0 %v2579
    %v2618 = vpop.f32.mrb[0].mxu0
    %v2619 = vadd.f32 0.0, %v2618
    %v2620 = vpop.f32.mrb[0].mxu0
    %v2621 = vpop.f32.mrb[0].mxu0
    %v2622 = vpop.f32.mrb[0].mxu0
    %2623 = vdwg.mxu0
    %2624 = vrot.lane.b32.xlu0 %v1777, 40
    %v2625 = vpop.permute.xlu0 %2624
    %v2627 = vsel %vm443, %v2575, 0
    %v2630 = vsel %vm183, %v2625, 0
    %2632 = vmatprep.subr.bf16.mxu0 0
    %2633 = vmatpush1.bf16.msra.mxu0 %v2630
    %2634 = vmatprep.subr.bf16.mxu0 0
    %2635 = vmatpush1.bf16.msra.mxu0 0
    %2636 = vmatprep.subr.bf16.mxu0 0
    %2637 = vmatpush1.bf16.msra.mxu0 0
    %2638 = vmatprep.subr.bf16.mxu0 0
    %2639 = vmatpush1.bf16.msra.mxu0 0
    %2640 = vmatprep.subr.bf16.mxu0 0
    %2641 = vmatpush1.bf16.msra.mxu0 0
    %2642 = vmatprep.subr.bf16.mxu0 0
    %2643 = vmatpush1.bf16.msra.mxu0 0
    %2644 = vmatprep.subr.bf16.mxu0 0
    %2645 = vmatpush1.bf16.msra.mxu0 0
    %2646 = vmatprep.subr.bf16.mxu0 0
    %2647 = vmatpush1.bf16.msra.mxu0 0
    %2648 = vmatprep.subr.bf16.mxu0 0
    %2649 = vmatpush1.bf16.msra.mxu0 0
    %2650 = vmatprep.subr.bf16.mxu0 0
    %2651 = vmatpush1.bf16.msra.mxu0 0
    %2652 = vmatprep.subr.bf16.mxu0 0
    %2653 = vmatpush1.bf16.msra.mxu0 0
    %2654 = vmatprep.subr.bf16.mxu0 0
    %2655 = vmatpush1.bf16.msra.mxu0 0
    %2656 = vmatprep.subr.bf16.mxu0 0
    %2657 = vmatpush1.bf16.msra.mxu0 0
    %2658 = vmatprep.subr.bf16.mxu0 0
    %2659 = vmatpush1.bf16.msra.mxu0 0
    %2660 = vmatprep.subr.bf16.mxu0 0
    %2661 = vmatpush1.bf16.msra.mxu0 0
    %2662 = vmatprep.subr.bf16.mxu0 0
    %2663 = vmatpush1.bf16.msra.mxu0 0
    %2664 = vmatprep.mubr.bf16.mxu0 0
    %2665 = vmatmul.mubr.bf16.gmra.mrb[0].mxu0 %v2627
    %v2666 = vpop.f32.mrb[0].mxu0
    %v2667 = vadd.f32 0.0, %v2666
    %v2668 = vpop.f32.mrb[0].mxu0
    %v2669 = vpop.f32.mrb[0].mxu0
    %v2670 = vpop.f32.mrb[0].mxu0
    %2671 = vdwg.mxu0
    %2674 = vrot.lane.b32.xlu0 %v2171, 8
    %v2675 = vpop.permute.xlu0 %2674
    %2676 = vrot.lane.b32.xlu0 %v2219, 8
    %v2677 = vpop.permute.xlu0 %2676
    %2682 = vrot.lane.b32.xlu0 %v2395, 16
    %v2683 = vpop.permute.xlu0 %2682
    %2684 = vrot.lane.b32.xlu0 %v2443, 16
    %v2685 = vpop.permute.xlu0 %2684
    %2690 = vrot.lane.b32.xlu0 %v2619, 24
    %v2691 = vpop.permute.xlu0 %2690
    %2692 = vrot.lane.b32.xlu0 %v2667, 24
    %v2693 = vpop.permute.xlu0 %2692
    %v2696 = vsel %vm443, %v1947, %v2675
    %v2697 = vsel %vm443, %v1995, %v2677
    %v2698 = vsel %vm1371, %v2696, %v2683
    %v2699 = vsel %vm1371, %v2697, %v2685
    %v2700 = vsel %vm1374, %v2698, %v2691
    %v2701 = vsel %vm1374, %v2699, %v2693
    %v2702 = vpack.c.bf16 %v2701, %v2700
    %v2704 = vlaneseq
    %v2705 = vshrl.u32 %v2704, 7
    %v2706 = vsub.s32 0, %v2705
    %v2707 = vrot.slane %v1694, %v2706
    %v2713 = vunpack.c.l.b16 %v1690
    %v2714 = vunpack.c.l.b16 %v1691
    %v2715 = vunpack.c.l.b16 %v1692
    %v2716 = vunpack.c.l.b16 %v1693
    %v2717 = vpack.c.b16 %v2714, %v2713
    %v2718 = vpack.c.b16 %v2716, %v2715
    %v2722 = vsel %vm276, %v2702, 0
    %2724 = vmatprep.subr.bf16.mxu0 0
    %2725 = vmatpush1.bf16.msra.mxu0 %v2717
    %2726 = vmatprep.subr.bf16.mxu0 0
    %2727 = vmatpush1.bf16.msra.mxu0 %v2718
    %2728 = vmatprep.subr.bf16.mxu0 0
    %2729 = vmatpush1.bf16.msra.mxu0 0
    %2730 = vmatprep.subr.bf16.mxu0 0
    %2731 = vmatpush1.bf16.msra.mxu0 0
    %2732 = vmatprep.subr.bf16.mxu0 0
    %2733 = vmatpush1.bf16.msra.mxu0 0
    %2734 = vmatprep.subr.bf16.mxu0 0
    %2735 = vmatpush1.bf16.msra.mxu0 0
    %2736 = vmatprep.subr.bf16.mxu0 0
    %2737 = vmatpush1.bf16.msra.mxu0 0
    %2738 = vmatprep.subr.bf16.mxu0 0
    %2739 = vmatpush1.bf16.msra.mxu0 0
    %2740 = vmatprep.subr.bf16.mxu0 0
    %2741 = vmatpush1.bf16.msra.mxu0 0
    %2742 = vmatprep.subr.bf16.mxu0 0
    %2743 = vmatpush1.bf16.msra.mxu0 0
    %2744 = vmatprep.subr.bf16.mxu0 0
    %2745 = vmatpush1.bf16.msra.mxu0 0
    %2746 = vmatprep.subr.bf16.mxu0 0
    %2747 = vmatpush1.bf16.msra.mxu0 0
    %2748 = vmatprep.subr.bf16.mxu0 0
    %2749 = vmatpush1.bf16.msra.mxu0 0
    %2750 = vmatprep.subr.bf16.mxu0 0
    %2751 = vmatpush1.bf16.msra.mxu0 0
    %2752 = vmatprep.subr.bf16.mxu0 0
    %2753 = vmatpush1.bf16.msra.mxu0 0
    %2754 = vmatprep.subr.bf16.mxu0 0
    %2755 = vmatpush1.bf16.msra.mxu0 0
    %2756 = vmatprep.mubr.bf16.mxu0 0
    %2757 = vmatmul.mubr.bf16.gmra.mrb[0].mxu0 %v2722
    %v2758 = vpop.f32.mrb[0].mxu0
    %v2759 = vadd.f32 %v2707, %v2758
    %v2760 = vpop.f32.mrb[0].mxu0
    %v2761 = vpop.f32.mrb[0].mxu0
    %v2762 = vadd.f32 %v2707, %v2761
    %v2763 = vpop.f32.mrb[0].mxu0
    %2764 = vdwg.mxu0
    %v2765 = vadd.f32 %v2759, %v1683
    %v2766 = vadd.f32 %v2762, %v1684
    %v2767 = vsel %vm276, %v2765, 0.0
    %2768 = vadd.xlane.f32.xlu0 %v2767
    %v2769 = vpop.xlane.xlu0 %2768
    %v2770 = vsel %vm276, %v2766, 0.0
    %2771 = vadd.xlane.f32.xlu0 %v2770
    %v2772 = vpop.xlane.xlu0 %2771
    %v2773 = vmul.f32 %v2769, %v283
    %v2774 = vmul.f32 %v2772, %v283
    %v2775 = vsub.f32 %v2765, %v2773
    %v2776 = vsub.f32 %v2766, %v2774
    %v2777 = vmul.f32 %v2775, %v2775
    %v2778 = vmul.f32 %v2776, %v2776
    %v2779 = vsel %vm276, %v2777, 0.0
    %2780 = vadd.xlane.f32.xlu0 %v2779
    %v2781 = vpop.xlane.xlu0 %2780
    %v2782 = vsel %vm276, %v2778, 0.0
    %2783 = vadd.xlane.f32.xlu0 %v2782
    %v2784 = vpop.xlane.xlu0 %2783
    %v2785 = vmul.f32 %v2781, %v283
    %v2786 = vmul.f32 %v2784, %v283
    %v2787 = vadd.f32 %v2785, 1e-12
    %v2788 = vadd.f32 %v2786, 1e-12
    %v2789 = vrsqrt.pop %v2787
    %v2790 = vrsqrt.pop %v2788
    %v2791 = vmul.f32 %v2775, %v2789
    %v2792 = vmul.f32 %v2776, %v2790
    %v2794 = vlaneseq
    %v2795 = vshrl.u32 %v2794, 7
    %v2796 = vsub.s32 0, %v2795
    %v2797 = vrot.slane %v1695, %v2796
    %v2799 = vmul.f32 %v2791, %v2797
    %v2800 = vmul.f32 %v2792, %v2797
    %v2802 = vlaneseq
    %v2803 = vshrl.u32 %v2802, 7
    %v2804 = vsub.s32 0, %v2803
    %v2805 = vrot.slane %v1696, %v2804
    %v2807 = vadd.f32 %v2799, %v2805
    %v2808 = vadd.f32 %v2800, %v2805
    %v2809 = vpack.c.bf16 %v2808, %v2807
    %v2811 = vlaneseq
    %v2812 = vshrl.u32 %v2811, 7
    %v2813 = vsub.s32 0, %v2812
    %v2814 = vrot.slane %v1701, %v2813
    %v2820 = vunpack.c.l.b16 %v1697
    %v2821 = vunpack.c.l.b16 %v1698
    %v2822 = vunpack.c.l.b16 %v1699
    %v2823 = vunpack.c.l.b16 %v1700
    %v2824 = vpack.c.b16 %v2821, %v2820
    %v2825 = vpack.c.b16 %v2823, %v2822
    %v2829 = vsel %vm276, %v2809, 0
    %2831 = vmatprep.subr.bf16.mxu0 0
    %2832 = vmatpush1.bf16.msra.mxu0 %v2824
    %2833 = vmatprep.subr.bf16.mxu0 0
    %2834 = vmatpush1.bf16.msra.mxu0 %v2825
    %2835 = vmatprep.subr.bf16.mxu0 0
    %2836 = vmatpush1.bf16.msra.mxu0 0
    %2837 = vmatprep.subr.bf16.mxu0 0
    %2838 = vmatpush1.bf16.msra.mxu0 0
    %2839 = vmatprep.subr.bf16.mxu0 0
    %2840 = vmatpush1.bf16.msra.mxu0 0
    %2841 = vmatprep.subr.bf16.mxu0 0
    %2842 = vmatpush1.bf16.msra.mxu0 0
    %2843 = vmatprep.subr.bf16.mxu0 0
    %2844 = vmatpush1.bf16.msra.mxu0 0
    %2845 = vmatprep.subr.bf16.mxu0 0
    %2846 = vmatpush1.bf16.msra.mxu0 0
    %2847 = vmatprep.subr.bf16.mxu0 0
    %2848 = vmatpush1.bf16.msra.mxu0 0
    %2849 = vmatprep.subr.bf16.mxu0 0
    %2850 = vmatpush1.bf16.msra.mxu0 0
    %2851 = vmatprep.subr.bf16.mxu0 0
    %2852 = vmatpush1.bf16.msra.mxu0 0
    %2853 = vmatprep.subr.bf16.mxu0 0
    %2854 = vmatpush1.bf16.msra.mxu0 0
    %2855 = vmatprep.subr.bf16.mxu0 0
    %2856 = vmatpush1.bf16.msra.mxu0 0
    %2857 = vmatprep.subr.bf16.mxu0 0
    %2858 = vmatpush1.bf16.msra.mxu0 0
    %2859 = vmatprep.subr.bf16.mxu0 0
    %2860 = vmatpush1.bf16.msra.mxu0 0
    %2861 = vmatprep.subr.bf16.mxu0 0
    %2862 = vmatpush1.bf16.msra.mxu0 0
    %2863 = vmatprep.mubr.bf16.mxu0 0
    %2864 = vmatmul.mubr.bf16.gmra.mrb[0].mxu0 %v2829
    %v2865 = vpop.f32.mrb[0].mxu0
    %v2866 = vadd.f32 %v2814, %v2865
    %v2867 = vpop.f32.mrb[0].mxu0
    %v2868 = vpop.f32.mrb[0].mxu0
    %v2869 = vadd.f32 %v2814, %v2868
    %v2870 = vpop.f32.mrb[0].mxu0
    %2871 = vdwg.mxu0
    %v2872 = vmul.f32 %v2866, 0.5
    %v2873 = vmul.f32 %v2869, 0.5
    %v2874 = vmul.f32 %v2866, 0.044715
    %v2875 = vmul.f32 %v2869, 0.044715
    %v2876 = vmul.f32 %v2874, %v2866
    %v2877 = vmul.f32 %v2875, %v2869
    %v2878 = vmul.f32 %v2876, %v2866
    %v2879 = vmul.f32 %v2877, %v2869
    %v2880 = vadd.f32 %v2866, %v2878
    %v2881 = vadd.f32 %v2869, %v2879
    %v2882 = vmul.f32 %v2880, 0.7978846
    %v2883 = vmul.f32 %v2881, 0.7978846
    %v2884 = vtanh.pop %v2882
    %v2885 = vtanh.pop %v2883
    %v2886 = vadd.f32 %v2884, 1.0
    %v2887 = vadd.f32 %v2885, 1.0
    %v2888 = vmul.f32 %v2872, %v2886
    %v2889 = vmul.f32 %v2873, %v2887
    %v2890 = vpack.c.bf16 %v2889, %v2888
    %v2892 = vlaneseq
    %v2893 = vshrl.u32 %v2892, 7
    %v2894 = vsub.s32 0, %v2893
    %v2895 = vrot.slane %v1710, %v2894
    %v2905 = vunpack.c.l.b16 %v1702
    %v2906 = vunpack.c.l.b16 %v1703
    %v2907 = vunpack.c.l.b16 %v1704
    %v2908 = vunpack.c.l.b16 %v1705
    %v2909 = vunpack.c.l.b16 %v1706
    %v2910 = vunpack.c.l.b16 %v1707
    %v2911 = vunpack.c.l.b16 %v1708
    %v2912 = vunpack.c.l.b16 %v1709
    %v2913 = vpack.c.b16 %v2906, %v2905
    %v2914 = vpack.c.b16 %v2908, %v2907
    %v2915 = vpack.c.b16 %v2910, %v2909
    %v2916 = vpack.c.b16 %v2912, %v2911
    %v2922 = vsel %vm1596, %v2890, 0
    %2924 = vmatprep.subr.bf16.mxu0 0
    %2925 = vmatpush1.bf16.msra.mxu0 %v2913
    %2926 = vmatprep.subr.bf16.mxu0 0
    %2927 = vmatpush1.bf16.msra.mxu0 %v2914
    %2928 = vmatprep.subr.bf16.mxu0 0
    %2929 = vmatpush1.bf16.msra.mxu0 %v2915
    %2930 = vmatprep.subr.bf16.mxu0 0
    %2931 = vmatpush1.bf16.msra.mxu0 %v2916
    %2932 = vmatprep.subr.bf16.mxu0 0
    %2933 = vmatpush1.bf16.msra.mxu0 0
    %2934 = vmatprep.subr.bf16.mxu0 0
    %2935 = vmatpush1.bf16.msra.mxu0 0
    %2936 = vmatprep.subr.bf16.mxu0 0
    %2937 = vmatpush1.bf16.msra.mxu0 0
    %2938 = vmatprep.subr.bf16.mxu0 0
    %2939 = vmatpush1.bf16.msra.mxu0 0
    %2940 = vmatprep.subr.bf16.mxu0 0
    %2941 = vmatpush1.bf16.msra.mxu0 0
    %2942 = vmatprep.subr.bf16.mxu0 0
    %2943 = vmatpush1.bf16.msra.mxu0 0
    %2944 = vmatprep.subr.bf16.mxu0 0
    %2945 = vmatpush1.bf16.msra.mxu0 0
    %2946 = vmatprep.subr.bf16.mxu0 0
    %2947 = vmatpush1.bf16.msra.mxu0 0
    %2948 = vmatprep.subr.bf16.mxu0 0
    %2949 = vmatpush1.bf16.msra.mxu0 0
    %2950 = vmatprep.subr.bf16.mxu0 0
    %2951 = vmatpush1.bf16.msra.mxu0 0
    %2952 = vmatprep.subr.bf16.mxu0 0
    %2953 = vmatpush1.bf16.msra.mxu0 0
    %2954 = vmatprep.subr.bf16.mxu0 0
    %2955 = vmatpush1.bf16.msra.mxu0 0
    %2956 = vmatprep.mubr.bf16.mxu0 0
    %2957 = vmatmul.mubr.bf16.gmra.mrb[0].mxu0 %v2922
    %v2958 = vpop.f32.mrb[0].mxu0
    %v2959 = vadd.f32 %v2895, %v2958
    %v2960 = vpop.f32.mrb[0].mxu0
    %v2961 = vpop.f32.mrb[0].mxu0
    %v2962 = vadd.f32 %v2895, %v2961
    %v2963 = vpop.f32.mrb[0].mxu0
    %2964 = vdwg.mxu0
    %v2965 = vadd.f32 %v2959, %v2807
    %v2966 = vadd.f32 %v2962, %v2808
    %v2967 = vsel %vm276, %v2965, 0.0
    %2968 = vadd.xlane.f32.xlu0 %v2967
    %v2969 = vpop.xlane.xlu0 %2968
    %v2970 = vsel %vm276, %v2966, 0.0
    %2971 = vadd.xlane.f32.xlu0 %v2970
    %v2972 = vpop.xlane.xlu0 %2971
    %v2973 = vmul.f32 %v2969, %v283
    %v2974 = vmul.f32 %v2972, %v283
    %v2975 = vsub.f32 %v2965, %v2973
    %v2976 = vsub.f32 %v2966, %v2974
    %v2977 = vmul.f32 %v2975, %v2975
    %v2978 = vmul.f32 %v2976, %v2976
    %v2979 = vsel %vm276, %v2977, 0.0
    %2980 = vadd.xlane.f32.xlu0 %v2979
    %v2981 = vpop.xlane.xlu0 %2980
    %v2982 = vsel %vm276, %v2978, 0.0
    %2983 = vadd.xlane.f32.xlu0 %v2982
    %v2984 = vpop.xlane.xlu0 %2983
    %v2985 = vmul.f32 %v2981, %v283
    %v2986 = vmul.f32 %v2984, %v283
    %v2987 = vadd.f32 %v2985, 1e-12
    %v2988 = vadd.f32 %v2986, 1e-12
    %v2989 = vrsqrt.pop %v2987
    %v2990 = vrsqrt.pop %v2988
    %v2991 = vmul.f32 %v2975, %v2989
    %v2992 = vmul.f32 %v2976, %v2990
    %v2994 = vlaneseq
    %v2995 = vshrl.u32 %v2994, 7
    %v2996 = vsub.s32 0, %v2995
    %v2997 = vrot.slane %v1711, %v2996
    %v2999 = vmul.f32 %v2991, %v2997
    %v3000 = vmul.f32 %v2992, %v2997
    %v3002 = vlaneseq
    %v3003 = vshrl.u32 %v3002, 7
    %v3004 = vsub.s32 0, %v3003
    %v3005 = vrot.slane %v1712, %v3004
    %v3007 = vadd.f32 %v2999, %v3005
    %v3008 = vadd.f32 %v3000, %v3005
    %v3009 = vpack.c.bf16 %v3008, %v3007
    %v3010 = vld [vmem:[%s65] sm:$0xf]
    %v3011 = vld [vmem:[%s65 + $0x4] sm:$0xf]
    %v3012 = vld [vmem:[%s65 + $0x8] sm:$0xf]
    %v3013 = vld [vmem:[%s65 + $0xc] sm:$0xf]
    %v3014 = vld [vmem:[%s67] sm:$0x1]
    %v3016 = vlaneseq
    %v3017 = vshrl.u32 %v3016, 7
    %v3018 = vsub.s32 0, %v3017
    %v3019 = vrot.slane %v3014, %v3018
    %v3025 = vunpack.c.l.b16 %v3010
    %v3026 = vunpack.c.l.b16 %v3011
    %v3027 = vunpack.c.l.b16 %v3012
    %v3028 = vunpack.c.l.b16 %v3013
    %v3029 = vpack.c.b16 %v3026, %v3025
    %v3030 = vpack.c.b16 %v3028, %v3027
    %v3034 = vsel %vm276, %v3009, 0
    %3036 = vmatprep.subr.bf16.mxu0 0
    %3037 = vmatpush1.bf16.msra.mxu0 %v3029
    %3038 = vmatprep.subr.bf16.mxu0 0
    %3039 = vmatpush1.bf16.msra.mxu0 %v3030
    %3040 = vmatprep.subr.bf16.mxu0 0
    %3041 = vmatpush1.bf16.msra.mxu0 0
    %3042 = vmatprep.subr.bf16.mxu0 0
    %3043 = vmatpush1.bf16.msra.mxu0 0
    %3044 = vmatprep.subr.bf16.mxu0 0
    %3045 = vmatpush1.bf16.msra.mxu0 0
    %3046 = vmatprep.subr.bf16.mxu0 0
    %3047 = vmatpush1.bf16.msra.mxu0 0
    %3048 = vmatprep.subr.bf16.mxu0 0
    %3049 = vmatpush1.bf16.msra.mxu0 0
    %3050 = vmatprep.subr.bf16.mxu0 0
    %3051 = vmatpush1.bf16.msra.mxu0 0
    %3052 = vmatprep.subr.bf16.mxu0 0
    %3053 = vmatpush1.bf16.msra.mxu0 0
    %3054 = vmatprep.subr.bf16.mxu0 0
    %3055 = vmatpush1.bf16.msra.mxu0 0
    %3056 = vmatprep.subr.bf16.mxu0 0
    %3057 = vmatpush1.bf16.msra.mxu0 0
    %3058 = vmatprep.subr.bf16.mxu0 0
    %3059 = vmatpush1.bf16.msra.mxu0 0
    %3060 = vmatprep.subr.bf16.mxu0 0
    %3061 = vmatpush1.bf16.msra.mxu0 0
    %3062 = vmatprep.subr.bf16.mxu0 0
    %3063 = vmatpush1.bf16.msra.mxu0 0
    %3064 = vmatprep.subr.bf16.mxu0 0
    %3065 = vmatpush1.bf16.msra.mxu0 0
    %3066 = vmatprep.subr.bf16.mxu0 0
    %3067 = vmatpush1.bf16.msra.mxu0 0
    %3068 = vmatprep.mubr.bf16.mxu0 0
    %3069 = vmatmul.mubr.bf16.gmra.mrb[0].mxu0 %v3034
    %v3070 = vpop.f32.mrb[0].mxu0
    %v3071 = vadd.f32 %v3019, %v3070
    %v3072 = vpop.f32.mrb[0].mxu0
    %v3073 = vpop.f32.mrb[0].mxu0
    %v3074 = vadd.f32 %v3019, %v3073
    %v3075 = vpop.f32.mrb[0].mxu0
    %3076 = vdwg.mxu0
    %3077 = vst [vmem:[%s69] sm:$0xff] %v3071
    %3078 = vst [vmem:[%s69 + $0x8] sm:$0xff] %v3074
    %v3079 = vld [vmem:[%s5] sm:$0xff]
    %v3080 = vld [vmem:[%s5 + $0x8] sm:$0xff]
    %vm3081 = vcmp.lt.s32.totalorder %v150, 5
    %v3082 = vsel %vm3081, %v3071, -1e+30
    %v3083 = vsel %vm3081, %v3074, -1e+30
    %3084 = vmax.xlane.f32.xlu0 %v3082
    %v3085 = vpop.xlane.xlu0 %3084
    %3086 = vmax.xlane.f32.xlu0 %v3083
    %v3087 = vpop.xlane.xlu0 %3086
    %v3088 = vsub.f32 %v3082, %v3085
    %v3089 = vsub.f32 %v3083, %v3087
    %v3090 = vmul.f32 %v3088, 1.442695
    %v3091 = vpow.pop %v3090
    %v3092 = vmul.f32 %v3089, 1.442695
    %v3093 = vpow.pop %v3092
    %3094 = vadd.xlane.f32.xlu0 %v3091
    %v3095 = vpop.xlane.xlu0 %3094
    %3096 = vadd.xlane.f32.xlu0 %v3093
    %v3097 = vpop.xlane.xlu0 %3096
    %v3098 = vlog2.pop %v3095
    %v3099 = vmul.f32 %v3098, 0.6931472
    %v3100 = vlog2.pop %v3097
    %v3101 = vmul.f32 %v3100, 0.6931472
    %v3102 = vadd.f32 %v3099, %v3085
    %v3103 = vadd.f32 %v3101, %v3087
    %3104 = vset.pattern.permute.xlu0 0
    %3105 = vperm.xlu0 %3104, %v3079
    %v3106 = vpop.permute.xlu0 %3105
    %3107 = vset.pattern.permute.xlu0 0
    %3108 = vperm.xlu0 %3107, %v3080
    %v3109 = vpop.permute.xlu0 %3108
    %vm3110 = vcmp.eq.s32.totalorder %v150, %v3106
    %vm3111 = vcmp.eq.s32.totalorder %v150, %v3109
    %v3112 = vsel %vm3110, 1, 0
    %v3113 = vsel %vm3111, 1, 0
    %v3114 = vcvt.s32.f32 %v3112
    %v3115 = vcvt.s32.f32 %v3113
    %v3116 = vmul.f32 %v3082, %v3114
    %v3117 = vmul.f32 %v3083, %v3115
    %3118 = vadd.xlane.f32.xlu0 %v3116
    %v3119 = vpop.xlane.xlu0 %3118
    %3120 = vadd.xlane.f32.xlu0 %v3117
    %v3121 = vpop.xlane.xlu0 %3120
    %vm3122 = vcmp.ne.s32.totalorder %v3079, 4294967196
    %vm3123 = vcmp.ne.s32.totalorder %v3080, 4294967196
    %v3124 = vsel %vm3122, 1, 0
    %v3125 = vsel %vm3123, 1, 0
    %v3126 = vcvt.s32.f32 %v3124
    %v3127 = vcvt.s32.f32 %v3125
    %v3128 = vsub.f32 %v3102, %v3119
    %v3129 = vsub.f32 %v3103, %v3121
    %v3130 = vmul.f32 %v3128, %v3126
    %v3131 = vmul.f32 %v3129, %v3127
    %vm3132 = vcmask 7168
    %v3133 = vsel %vm3132, %v3130, 0.0
    %v3134 = vsel %vm3132, %v3131, 0.0
    %v3135 = vadd.f32 %v3133, %v3134
    %3136 = vadd.xlane.f32.xlu0 %v3135
    %v3137 = vpop.xlane.xlu0 %3136
    %v3138 = vrot.slane %v3137, 4
    %v3139 = vadd.f32 %v3137, %v3138
    %v3140 = vrot.slane %v3139, 2
    %v3141 = vadd.f32 %v3139, %v3140
    %v3142 = vrot.slane %v3141, 1
    %v3143 = vadd.f32 %v3141, %v3142
    %s3144 = vtos %v3143
    %v3145 = vsel %vm3132, %v3126, 0.0
    %v3146 = vsel %vm3132, %v3127, 0.0
    %v3147 = vadd.f32 %v3145, %v3146
    %3148 = vadd.xlane.f32.xlu0 %v3147
    %v3149 = vpop.xlane.xlu0 %3148
    %v3150 = vrot.slane %v3149, 4
    %v3151 = vadd.f32 %v3149, %v3150
    %v3152 = vrot.slane %v3151, 2
    %v3153 = vadd.f32 %v3151, %v3152
    %v3154 = vrot.slane %v3153, 1
    %v3155 = vadd.f32 %v3153, %v3154
    %s3156 = vtos %v3155
    %s3157 = smax.f32 %s3156, 1.0
    %v3158 = vstv %s3157
    %v3159 = vrcp.pop %v3158
    %s3160 = vtos %v3159
    %s3161 = smul.f32 %s3144, %s3160
    %v3162 = vstv %s3161
    %vm3163 = vcmask 0
    %3164 = vst.msk [vmem:[#allocation2] sm:$0x1] %vm3163, %v3162
    // Predicated region
    $region138: #{forward.1} parent=1 // pred_check
      _
    $region139: #{forward.1} parent=1 // pred_check_branch
      %3166 = sbr.rel (0) target = $region141
    $region140: #{forward.1} parent=1 // pred_region
      _
    $region141: #{forward.1} parent=1 // pred_fallthru
      _
    // Predicated region
    $region142: #{forward.1} parent=1 // pred_check
      _
    $region143: #{forward.1} parent=1 // pred_check_branch
      %3168 = sbr.rel (0) target = $region145
    $region144: #{forward.1} parent=1 // pred_region
      %s3170 = ssub.s32 16, 16
      %3171 = vsyncadd [#allocation3], %s3170
      %s3173 = sshll.u32 [#allocation2], 4
      %s3174 = int_to_ptr.vmem [resolvable:$true] %s3173
      %3176 = dma.vmem_to_hbm [thread:$0]  %s3174, 16, %s71, [#allocation3]
    $region145: #{forward.1} parent=1 // pred_fallthru
      _
    // Predicated region
    $region146: #{forward.1} parent=1 // pred_check
      _
    $region147: #{forward.1} parent=1 // pred_check_branch
      %3178 = sbr.rel (0) target = $region149
    $region148: #{forward.1} parent=1 // pred_region
      _
    $region149: #{forward.1} parent=1 // pred_fallthru
      _
    // Predicated region
    $region150: #{forward.1} parent=1 // pred_check
      _
    $region151: #{forward.1} parent=1 // pred_check_branch
      %3180 = sbr.rel (0) target = $region153
    $region152: #{forward.1} parent=1 // pred_region
      %3181 = dma.done [#allocation3], 16
    $region153: #{forward.1} parent=1 // pred_fallthru
      _
    %3182 = vsyncpa [#allocation3], 1

</llo_original>
